<compile_context>
chip_gen: v6e
topology: v6e:2x2x1
jax: 0.10.0
libtpu: 0.0.40
codegen_flags: <defaults>
</compile_context>

<pallas_src>
import functools
import math

import jax
import jax.numpy as jnp
from jax import lax
from jax.experimental import pallas as pl
from jax.experimental.pallas import tpu as pltpu


# ------------------------------------------------------------------ in-kernel helpers
def _layernorm(x, gamma, beta, eps=1e-6):
    mu = jnp.mean(x, axis=-1, keepdims=True)
    var = jnp.mean(jnp.square(x - mu), axis=-1, keepdims=True)
    return (x - mu) * lax.rsqrt(var + eps) * gamma + beta


def _gelu_tanh(x):
    # TODO(synk): PyTorch nn.GELU() default is exact erf-GELU; tanh approximation used here
    # for a guaranteed Mosaic lowering (EUP tanh). Numeric drift is ~1e-3.
    return 0.5 * x * (1.0 + jnp.tanh(0.7978845608028654 * (x + 0.044715 * x * x * x)))


# ------------------------------------------------------------------ fused block kernel
def _block_kernel(xs_ref, xg_ref,
                  g1_ref, b1_ref,
                  wqkv_ref, bqkv_ref,
                  wproj_ref, bproj_ref,
                  g2_ref, b2_ref,
                  wfc1_ref, bfc1_ref,
                  wfc2_ref, bfc2_ref,
                  ys_ref, yg_ref,
                  att_scratch,
                  *, num_head, scale):
    n_s = xs_ref.shape[0]
    # concat [x_sample, x_global] along tokens, entirely in VMEM
    x = jnp.concatenate([xs_ref[...], xg_ref[...]], axis=0).astype(jnp.float32)  # (N, C)
    N, C = x.shape
    D = C // num_head

    # ---- LayerNorm_1 (eps=1e-6, biased variance) ------------------------------------
    xn = _layernorm(x, g1_ref[...], b1_ref[...])

    # ---- QKV projection (single MXU matmul, bf16 operands, f32 accumulation) --------
    qkv = jnp.dot(xn.astype(jnp.bfloat16), wqkv_ref[...].astype(jnp.bfloat16),
                  preferred_element_type=jnp.float32) + bqkv_ref[...]             # (N, 3C)
    q = qkv[:, 0 * C:1 * C]
    k = qkv[:, 1 * C:2 * C]
    v = qkv[:, 2 * C:3 * C]

    # ---- multi-head attention (static unroll over the 8 heads) ----------------------
    for h in range(num_head):
        sl = slice(h * D, (h + 1) * D)
        qh = q[:, sl].astype(jnp.bfloat16)
        kh = k[:, sl].astype(jnp.bfloat16)
        vh = v[:, sl].astype(jnp.bfloat16)
        # scores = (q * scale) @ k^T, expressed as a contraction on the head dim
        s = lax.dot_general(qh, kh, (((1,), (1,)), ((), ())),
                            preferred_element_type=jnp.float32) * scale           # (N, N)
        m = jnp.max(s, axis=-1, keepdims=True)
        p = jnp.exp(s - m)
        p = p / jnp.sum(p, axis=-1, keepdims=True)
        att_scratch[:, sl] = jnp.dot(p.astype(jnp.bfloat16), vh,
                                     preferred_element_type=jnp.float32)           # (N, D)

    att = jnp.dot(att_scratch[...].astype(jnp.bfloat16),
                  wproj_ref[...].astype(jnp.bfloat16),
                  preferred_element_type=jnp.float32) + bproj_ref[...]             # (N, C)
    x1 = x + att                                                                    # residual 1

    # ---- LayerNorm_2 + MLP -----------------------------------------------------------
    x2 = _layernorm(x1, g2_ref[...], b2_ref[...])
    h1 = jnp.dot(x2.astype(jnp.bfloat16), wfc1_ref[...].astype(jnp.bfloat16),
                 preferred_element_type=jnp.float32) + bfc1_ref[...]               # (N, 4C)
    h1 = _gelu_tanh(h1)
    # TODO(synk): nn.Dropout(0.1) is identity at inference; not applied here.
    mlp = jnp.dot(h1.astype(jnp.bfloat16), wfc2_ref[...].astype(jnp.bfloat16),
                  preferred_element_type=jnp.float32) + bfc2_ref[...]              # (N, C)
    y = x1 + mlp                                                                    # residual 2

    # dense per-output stores; split back into sample / global tokens
    ys_ref[...] = y[:n_s, :].astype(ys_ref.dtype)
    yg_ref[...] = y[n_s:, :].astype(yg_ref.dtype)


# ------------------------------------------------------------------ wrapper
def inter_class_trans(x_sample, x_global, params, *, num_head=8):
    B, Ns, C = x_sample.shape
    Bg, Ng, Cg = x_global.shape
    assert B == Bg and C == Cg and C % num_head == 0
    N = Ns + Ng
    scale = (C // num_head) ** (-0.5)

    def rep(shape):  # broadcast (weight) spec: same block for every grid step
        zeros = (0,) * len(shape)
        return pl.BlockSpec(shape, lambda b, _z=zeros: _z)

    kern = functools.partial(_block_kernel, num_head=num_head, scale=scale)
    return pl.pallas_call(
        kern,
        out_shape=(jax.ShapeDtypeStruct((B, Ns, C), x_sample.dtype),
                   jax.ShapeDtypeStruct((B, Ng, C), x_global.dtype)),
        grid=(B,),
        in_specs=[
            pl.BlockSpec((None, Ns, C), lambda b: (b, 0, 0)),
            pl.BlockSpec((None, Ng, C), lambda b: (b, 0, 0)),
            rep((1, C)), rep((1, C)),            # LN1 gamma, beta
            rep((C, 3 * C)), rep((1, 3 * C)),    # W_qkv, b_qkv
            rep((C, C)), rep((1, C)),            # W_proj, b_proj
            rep((1, C)), rep((1, C)),            # LN2 gamma, beta
            rep((C, 4 * C)), rep((1, 4 * C)),    # W_fc1, b_fc1
            rep((4 * C, C)), rep((1, C)),        # W_fc2, b_fc2
        ],
        out_specs=(pl.BlockSpec((None, Ns, C), lambda b: (b, 0, 0)),
                   pl.BlockSpec((None, Ng, C), lambda b: (b, 0, 0))),
        scratch_shapes=[pltpu.VMEM((N, C), jnp.float32)],
        compiler_params=pltpu.CompilerParams(dimension_semantics=("parallel",)),
    )(x_sample, x_global,
      params["ln1_g"], params["ln1_b"],
      params["w_qkv"], params["b_qkv"],
      params["w_proj"], params["b_proj"],
      params["ln2_g"], params["ln2_b"],
      params["w_fc1"], params["b_fc1"],
      params["w_fc2"], params["b_fc2"])


# ------------------------------------------------------------------ params + reference
def init_params(key, dim):
    ks = jax.random.split(key, 8)

    def lin(kw, kb, fan_in, fan_out):
        bound = 1.0 / math.sqrt(fan_in)
        w = jax.random.uniform(kw, (fan_in, fan_out), jnp.float32, -bound, bound)
        b = jax.random.uniform(kb, (1, fan_out), jnp.float32, -bound, bound)
        return w, b

    w_qkv, b_qkv = lin(ks[0], ks[1], dim, 3 * dim)
    w_proj, b_proj = lin(ks[2], ks[3], dim, dim)
    w_fc1, b_fc1 = lin(ks[4], ks[5], dim, 4 * dim)
    w_fc2, b_fc2 = lin(ks[6], ks[7], 4 * dim, dim)
    return dict(
        ln1_g=jnp.ones((1, dim), jnp.float32), ln1_b=jnp.zeros((1, dim), jnp.float32),
        ln2_g=jnp.ones((1, dim), jnp.float32), ln2_b=jnp.zeros((1, dim), jnp.float32),
        w_qkv=w_qkv, b_qkv=b_qkv, w_proj=w_proj, b_proj=b_proj,
        w_fc1=w_fc1, b_fc1=b_fc1, w_fc2=w_fc2, b_fc2=b_fc2)


def reference(x_sample, x_global, params, *, num_head=8):
    """Plain-JAX mirror of the PyTorch module (weights stored as PyTorch W.T)."""
    x = jnp.concatenate([x_sample, x_global], axis=1)
    B, N, C = x.shape
    D = C // num_head

    def ln(v, g, b):
        mu = jnp.mean(v, -1, keepdims=True)
        var = jnp.mean((v - mu) ** 2, -1, keepdims=True)
        return (v - mu) / jnp.sqrt(var + 1e-6) * g + b

    h = x
    xn = ln(x, params["ln1_g"], params["ln1_b"])
    qkv = xn @ params["w_qkv"] + params["b_qkv"]
    qkv = qkv.reshape(B, N, 3, num_head, D).transpose(2, 3, 0, 1, 4)
    q, k, v = qkv[0] * (D ** -0.5), qkv[1], qkv[2]
    att = jax.nn.softmax(jnp.einsum('hbnd,hbmd->hbnm', q, k), axis=-1)
    av = jnp.einsum('hbnm,hbmd->hbnd', att, v).transpose(1, 2, 0, 3).reshape(B, N, C)
    x = h + (av @ params["w_proj"] + params["b_proj"])
    h = x
    xn2 = ln(x, params["ln2_g"], params["ln2_b"])
    h1 = _gelu_tanh(xn2 @ params["w_fc1"] + params["b_fc1"])
    x = h + (h1 @ params["w_fc2"] + params["b_fc2"])
    n_ij = x_sample.shape[1]
    return x[:, :n_ij, :], x[:, n_ij:, :]


# ------------------------------------------------------------------ demo / self-check
if __name__ == "__main__":
    B, Ns, Ng, C = 2, 16, 8, 32   # dim=32 -> num_head=8, head_dim=4

    key = jax.random.PRNGKey(0)
    kx1, kx2, kp = jax.random.split(key, 3)
    x_sample = jax.random.normal(kx1, (B, Ns, C), jnp.float32)
    x_global = jax.random.normal(kx2, (B, Ng, C), jnp.float32)
    params = init_params(kp, C)

    ys, yg = inter_class_trans(x_sample, x_global, params)
    ys, yg = jax.block_until_ready((ys, yg))

    assert ys.shape == (B, Ns, C), ys.shape
    assert yg.shape == (B, Ng, C), yg.shape
    assert bool(jnp.all(jnp.isfinite(ys))) and bool(jnp.all(jnp.isfinite(yg)))

    rs, rg = reference(x_sample, x_global, params)
    err = max(float(jnp.max(jnp.abs(ys - rs))), float(jnp.max(jnp.abs(yg - rg))))
    # bf16 MXU operands in the kernel vs. default-precision f32 reference -> small drift.
    assert err < 5e-2, f"max abs diff vs reference: {err}"

    print("KERNEL_OK")
</pallas_src>

<mosaic_0001>
module attributes {stable_mosaic.version = 11 : i64} {
  func.func @_block_kernel(%arg0: i32, %arg1: memref<1x16x32xf32, #tpu.memory_space<vmem>>, %arg2: memref<1x8x32xf32, #tpu.memory_space<vmem>>, %arg3: memref<1x32xf32, #tpu.memory_space<vmem>>, %arg4: memref<1x32xf32, #tpu.memory_space<vmem>>, %arg5: memref<32x96xf32, #tpu.memory_space<vmem>>, %arg6: memref<1x96xf32, #tpu.memory_space<vmem>>, %arg7: memref<32x32xf32, #tpu.memory_space<vmem>>, %arg8: memref<1x32xf32, #tpu.memory_space<vmem>>, %arg9: memref<1x32xf32, #tpu.memory_space<vmem>>, %arg10: memref<1x32xf32, #tpu.memory_space<vmem>>, %arg11: memref<32x128xf32, #tpu.memory_space<vmem>>, %arg12: memref<1x128xf32, #tpu.memory_space<vmem>>, %arg13: memref<128x32xf32, #tpu.memory_space<vmem>>, %arg14: memref<1x32xf32, #tpu.memory_space<vmem>>, %arg15: memref<1x16x32xf32, #tpu.memory_space<vmem>>, %arg16: memref<1x8x32xf32, #tpu.memory_space<vmem>>, %arg17: memref<24x32xf32, #tpu.memory_space<vmem>>) attributes {dimension_semantics = [#tpu.dimension_semantics<parallel>], iteration_bounds = array<i64: 2>, scalar_prefetch = 0 : i64, scratch_operands = 1 : i64, tpu.core_type = #tpu.core_type<tc>, window_params = [{transform_indices = @transform_0, window_bounds = array<i64: 1, 16, 32>}, {transform_indices = @transform_1, window_bounds = array<i64: 1, 8, 32>}, {pipeline_mode = #tpu.pipeline_mode<synchronous>, transform_indices = @transform_2, window_bounds = array<i64: 1, 32>}, {pipeline_mode = #tpu.pipeline_mode<synchronous>, transform_indices = @transform_3, window_bounds = array<i64: 1, 32>}, {pipeline_mode = #tpu.pipeline_mode<synchronous>, transform_indices = @transform_4, window_bounds = array<i64: 32, 96>}, {pipeline_mode = #tpu.pipeline_mode<synchronous>, transform_indices = @transform_5, window_bounds = array<i64: 1, 96>}, {pipeline_mode = #tpu.pipeline_mode<synchronous>, transform_indices = @transform_6, window_bounds = array<i64: 32, 32>}, {pipeline_mode = #tpu.pipeline_mode<synchronous>, transform_indices = @transform_7, window_bounds = array<i64: 1, 32>}, {pipeline_mode = #tpu.pipeline_mode<synchronous>, transform_indices = @transform_8, window_bounds = array<i64: 1, 32>}, {pipeline_mode = #tpu.pipeline_mode<synchronous>, transform_indices = @transform_9, window_bounds = array<i64: 1, 32>}, {pipeline_mode = #tpu.pipeline_mode<synchronous>, transform_indices = @transform_10, window_bounds = array<i64: 32, 128>}, {pipeline_mode = #tpu.pipeline_mode<synchronous>, transform_indices = @transform_11, window_bounds = array<i64: 1, 128>}, {pipeline_mode = #tpu.pipeline_mode<synchronous>, transform_indices = @transform_12, window_bounds = array<i64: 128, 32>}, {pipeline_mode = #tpu.pipeline_mode<synchronous>, transform_indices = @transform_13, window_bounds = array<i64: 1, 32>}, {transform_indices = @transform_14, window_bounds = array<i64: 1, 16, 32>}, {transform_indices = @transform_15, window_bounds = array<i64: 1, 8, 32>}]} {
    %c0 = arith.constant 0 : index
    %c0_0 = arith.constant 0 : index
    %c0_1 = arith.constant 0 : index
    %0 = vector.load %arg1[%c0, %c0_0, %c0_1] : memref<1x16x32xf32, #tpu.memory_space<vmem>>, vector<1x16x32xf32>
    %1 = vector.shape_cast %0 : vector<1x16x32xf32> to vector<16x32xf32>
    %c0_2 = arith.constant 0 : index
    %c0_3 = arith.constant 0 : index
    %c0_4 = arith.constant 0 : index
    %2 = vector.load %arg2[%c0_2, %c0_3, %c0_4] : memref<1x8x32xf32, #tpu.memory_space<vmem>>, vector<1x8x32xf32>
    %3 = vector.shape_cast %2 : vector<1x8x32xf32> to vector<8x32xf32>
    %4 = tpu.concatenate %1, %3 in 0 : vector<16x32xf32>, vector<8x32xf32> -> vector<24x32xf32>
    %c0_5 = arith.constant 0 : index
    %c0_6 = arith.constant 0 : index
    %5 = vector.load %arg3[%c0_5, %c0_6] : memref<1x32xf32, #tpu.memory_space<vmem>>, vector<1x32xf32>
    %c0_7 = arith.constant 0 : index
    %c0_8 = arith.constant 0 : index
    %6 = vector.load %arg4[%c0_7, %c0_8] : memref<1x32xf32, #tpu.memory_space<vmem>>, vector<1x32xf32>
    %cst = arith.constant dense<0.000000e+00> : vector<24xf32>
    %7 = vector.multi_reduction <add>, %4, %cst [1] : vector<24x32xf32> to vector<24xf32>
    %8 = vector.shape_cast %7 : vector<24xf32> to vector<24x1xf32>
    %cst_9 = arith.constant 3.200000e+01 : f32
    %9 = vector.broadcast %cst_9 : f32 to vector<24x1xf32>
    %10 = arith.divf %8, %9 : vector<24x1xf32>
    %11 = vector.broadcast %10 : vector<24x1xf32> to vector<24x32xf32>
    %12 = arith.subf %4, %11 : vector<24x32xf32>
    %13 = arith.mulf %12, %12 : vector<24x32xf32>
    %cst_10 = arith.constant dense<0.000000e+00> : vector<24xf32>
    %14 = vector.multi_reduction <add>, %13, %cst_10 [1] : vector<24x32xf32> to vector<24xf32>
    %15 = vector.shape_cast %14 : vector<24xf32> to vector<24x1xf32>
    %cst_11 = arith.constant 3.200000e+01 : f32
    %16 = vector.broadcast %cst_11 : f32 to vector<24x1xf32>
    %17 = arith.divf %15, %16 : vector<24x1xf32>
    %18 = vector.broadcast %10 : vector<24x1xf32> to vector<24x32xf32>
    %19 = arith.subf %4, %18 : vector<24x32xf32>
    %cst_12 = arith.constant 9.99999997E-7 : f32
    %20 = vector.broadcast %cst_12 : f32 to vector<24x1xf32>
    %21 = arith.addf %17, %20 : vector<24x1xf32>
    %22 = math.rsqrt %21 : vector<24x1xf32>
    %23 = vector.broadcast %22 : vector<24x1xf32> to vector<24x32xf32>
    %24 = arith.mulf %19, %23 : vector<24x32xf32>
    %25 = vector.broadcast %5 : vector<1x32xf32> to vector<24x32xf32>
    %26 = arith.mulf %24, %25 : vector<24x32xf32>
    %27 = vector.broadcast %6 : vector<1x32xf32> to vector<24x32xf32>
    %28 = arith.addf %26, %27 : vector<24x32xf32>
    %29 = arith.truncf %28 : vector<24x32xf32> to vector<24x32xbf16>
    %c0_13 = arith.constant 0 : index
    %c0_14 = arith.constant 0 : index
    %30 = vector.load %arg5[%c0_13, %c0_14] : memref<32x96xf32, #tpu.memory_space<vmem>>, vector<32x96xf32>
    %31 = arith.truncf %30 : vector<32x96xf32> to vector<32x96xbf16>
    %cst_15 = arith.constant dense<0.000000e+00> : vector<24x96xf32>
    %32 = tpu.matmul %29, %31, %cst_15 {dimension_numbers = #tpu.dot_dimension_numbers<[1], [0], [0], [1], [0, 0, 1, 1], [], []>} : vector<24x32xbf16>, vector<32x96xbf16>, vector<24x96xf32> -> vector<24x96xf32>
    %c0_16 = arith.constant 0 : index
    %c0_17 = arith.constant 0 : index
    %33 = vector.load %arg6[%c0_16, %c0_17] : memref<1x96xf32, #tpu.memory_space<vmem>>, vector<1x96xf32>
    %34 = vector.broadcast %33 : vector<1x96xf32> to vector<24x96xf32>
    %35 = arith.addf %32, %34 : vector<24x96xf32>
    %36 = vector.extract_strided_slice %35 {offsets = [0, 0], sizes = [24, 32], strides = [1, 1]} : vector<24x96xf32> to vector<24x32xf32>
    %37 = vector.extract_strided_slice %35 {offsets = [0, 32], sizes = [24, 32], strides = [1, 1]} : vector<24x96xf32> to vector<24x32xf32>
    %38 = vector.extract_strided_slice %35 {offsets = [0, 64], sizes = [24, 32], strides = [1, 1]} : vector<24x96xf32> to vector<24x32xf32>
    %39 = vector.extract_strided_slice %36 {offsets = [0, 0], sizes = [24, 4], strides = [1, 1]} : vector<24x32xf32> to vector<24x4xf32>
    %40 = arith.truncf %39 : vector<24x4xf32> to vector<24x4xbf16>
    %41 = vector.extract_strided_slice %37 {offsets = [0, 0], sizes = [24, 4], strides = [1, 1]} : vector<24x32xf32> to vector<24x4xf32>
    %42 = arith.truncf %41 : vector<24x4xf32> to vector<24x4xbf16>
    %43 = vector.extract_strided_slice %38 {offsets = [0, 0], sizes = [24, 4], strides = [1, 1]} : vector<24x32xf32> to vector<24x4xf32>
    %44 = arith.truncf %43 : vector<24x4xf32> to vector<24x4xbf16>
    %cst_18 = arith.constant dense<0.000000e+00> : vector<24x24xf32>
    %45 = tpu.matmul %40, %42, %cst_18 {dimension_numbers = #tpu.dot_dimension_numbers<[1], [1], [0], [0], [0, 0, 1, 0], [], []>} : vector<24x4xbf16>, vector<24x4xbf16>, vector<24x24xf32> -> vector<24x24xf32>
    %cst_19 = arith.constant 5.000000e-01 : f32
    %46 = vector.broadcast %cst_19 : f32 to vector<24x24xf32>
    %47 = arith.mulf %45, %46 : vector<24x24xf32>
    %cst_20 = arith.constant dense<0xFF800000> : vector<24xf32>
    %48 = vector.multi_reduction <maximumf>, %47, %cst_20 [1] : vector<24x24xf32> to vector<24xf32>
    %49 = vector.shape_cast %48 : vector<24xf32> to vector<24x1xf32>
    %50 = vector.broadcast %49 : vector<24x1xf32> to vector<24x24xf32>
    %51 = arith.subf %47, %50 : vector<24x24xf32>
    %52 = math.exp %51 : vector<24x24xf32>
    %cst_21 = arith.constant dense<0.000000e+00> : vector<24xf32>
    %53 = vector.multi_reduction <add>, %52, %cst_21 [1] : vector<24x24xf32> to vector<24xf32>
    %54 = vector.shape_cast %53 : vector<24xf32> to vector<24x1xf32>
    %55 = vector.broadcast %54 : vector<24x1xf32> to vector<24x24xf32>
    %56 = arith.divf %52, %55 : vector<24x24xf32>
    %57 = arith.truncf %56 : vector<24x24xf32> to vector<24x24xbf16>
    %cst_22 = arith.constant dense<0.000000e+00> : vector<24x4xf32>
    %58 = tpu.matmul %57, %44, %cst_22 {dimension_numbers = #tpu.dot_dimension_numbers<[1], [0], [0], [1], [0, 0, 1, 1], [], []>} : vector<24x24xbf16>, vector<24x4xbf16>, vector<24x4xf32> -> vector<24x4xf32>
    %c0_23 = arith.constant 0 : index
    %c0_24 = arith.constant 0 : index
    %59 = vector.load %arg17[%c0_23, %c0_24] : memref<24x32xf32, #tpu.memory_space<vmem>>, vector<24x4xf32>
    tpu.vector_store %arg17[%c0_23, %c0_24], %58 {strides = array<i32>} : memref<24x32xf32, #tpu.memory_space<vmem>>, vector<24x4xf32>,
    %60 = vector.extract_strided_slice %36 {offsets = [0, 4], sizes = [24, 4], strides = [1, 1]} : vector<24x32xf32> to vector<24x4xf32>
    %61 = arith.truncf %60 : vector<24x4xf32> to vector<24x4xbf16>
    %62 = vector.extract_strided_slice %37 {offsets = [0, 4], sizes = [24, 4], strides = [1, 1]} : vector<24x32xf32> to vector<24x4xf32>
    %63 = arith.truncf %62 : vector<24x4xf32> to vector<24x4xbf16>
    %64 = vector.extract_strided_slice %38 {offsets = [0, 4], sizes = [24, 4], strides = [1, 1]} : vector<24x32xf32> to vector<24x4xf32>
    %65 = arith.truncf %64 : vector<24x4xf32> to vector<24x4xbf16>
    %cst_25 = arith.constant dense<0.000000e+00> : vector<24x24xf32>
    %66 = tpu.matmul %61, %63, %cst_25 {dimension_numbers = #tpu.dot_dimension_numbers<[1], [1], [0], [0], [0, 0, 1, 0], [], []>} : vector<24x4xbf16>, vector<24x4xbf16>, vector<24x24xf32> -> vector<24x24xf32>
    %cst_26 = arith.constant 5.000000e-01 : f32
    %67 = vector.broadcast %cst_26 : f32 to vector<24x24xf32>
    %68 = arith.mulf %66, %67 : vector<24x24xf32>
    %cst_27 = arith.constant dense<0xFF800000> : vector<24xf32>
    %69 = vector.multi_reduction <maximumf>, %68, %cst_27 [1] : vector<24x24xf32> to vector<24xf32>
    %70 = vector.shape_cast %69 : vector<24xf32> to vector<24x1xf32>
    %71 = vector.broadcast %70 : vector<24x1xf32> to vector<24x24xf32>
    %72 = arith.subf %68, %71 : vector<24x24xf32>
    %73 = math.exp %72 : vector<24x24xf32>
    %cst_28 = arith.constant dense<0.000000e+00> : vector<24xf32>
    %74 = vector.multi_reduction <add>, %73, %cst_28 [1] : vector<24x24xf32> to vector<24xf32>
    %75 = vector.shape_cast %74 : vector<24xf32> to vector<24x1xf32>
    %76 = vector.broadcast %75 : vector<24x1xf32> to vector<24x24xf32>
    %77 = arith.divf %73, %76 : vector<24x24xf32>
    %78 = arith.truncf %77 : vector<24x24xf32> to vector<24x24xbf16>
    %cst_29 = arith.constant dense<0.000000e+00> : vector<24x4xf32>
    %79 = tpu.matmul %78, %65, %cst_29 {dimension_numbers = #tpu.dot_dimension_numbers<[1], [0], [0], [1], [0, 0, 1, 1], [], []>} : vector<24x24xbf16>, vector<24x4xbf16>, vector<24x4xf32> -> vector<24x4xf32>
    %c0_30 = arith.constant 0 : index
    %c4 = arith.constant 4 : index
    %80 = vector.load %arg17[%c0_30, %c4] : memref<24x32xf32, #tpu.memory_space<vmem>>, vector<24x4xf32>
    tpu.vector_store %arg17[%c0_30, %c4], %79 {strides = array<i32>} : memref<24x32xf32, #tpu.memory_space<vmem>>, vector<24x4xf32>,
    %81 = vector.extract_strided_slice %36 {offsets = [0, 8], sizes = [24, 4], strides = [1, 1]} : vector<24x32xf32> to vector<24x4xf32>
    %82 = arith.truncf %81 : vector<24x4xf32> to vector<24x4xbf16>
    %83 = vector.extract_strided_slice %37 {offsets = [0, 8], sizes = [24, 4], strides = [1, 1]} : vector<24x32xf32> to vector<24x4xf32>
    %84 = arith.truncf %83 : vector<24x4xf32> to vector<24x4xbf16>
    %85 = vector.extract_strided_slice %38 {offsets = [0, 8], sizes = [24, 4], strides = [1, 1]} : vector<24x32xf32> to vector<24x4xf32>
    %86 = arith.truncf %85 : vector<24x4xf32> to vector<24x4xbf16>
    %cst_31 = arith.constant dense<0.000000e+00> : vector<24x24xf32>
    %87 = tpu.matmul %82, %84, %cst_31 {dimension_numbers = #tpu.dot_dimension_numbers<[1], [1], [0], [0], [0, 0, 1, 0], [], []>} : vector<24x4xbf16>, vector<24x4xbf16>, vector<24x24xf32> -> vector<24x24xf32>
    %cst_32 = arith.constant 5.000000e-01 : f32
    %88 = vector.broadcast %cst_32 : f32 to vector<24x24xf32>
    %89 = arith.mulf %87, %88 : vector<24x24xf32>
    %cst_33 = arith.constant dense<0xFF800000> : vector<24xf32>
    %90 = vector.multi_reduction <maximumf>, %89, %cst_33 [1] : vector<24x24xf32> to vector<24xf32>
    %91 = vector.shape_cast %90 : vector<24xf32> to vector<24x1xf32>
    %92 = vector.broadcast %91 : vector<24x1xf32> to vector<24x24xf32>
    %93 = arith.subf %89, %92 : vector<24x24xf32>
    %94 = math.exp %93 : vector<24x24xf32>
    %cst_34 = arith.constant dense<0.000000e+00> : vector<24xf32>
    %95 = vector.multi_reduction <add>, %94, %cst_34 [1] : vector<24x24xf32> to vector<24xf32>
    %96 = vector.shape_cast %95 : vector<24xf32> to vector<24x1xf32>
    %97 = vector.broadcast %96 : vector<24x1xf32> to vector<24x24xf32>
    %98 = arith.divf %94, %97 : vector<24x24xf32>
    %99 = arith.truncf %98 : vector<24x24xf32> to vector<24x24xbf16>
    %cst_35 = arith.constant dense<0.000000e+00> : vector<24x4xf32>
    %100 = tpu.matmul %99, %86, %cst_35 {dimension_numbers = #tpu.dot_dimension_numbers<[1], [0], [0], [1], [0, 0, 1, 1], [], []>} : vector<24x24xbf16>, vector<24x4xbf16>, vector<24x4xf32> -> vector<24x4xf32>
    %c0_36 = arith.constant 0 : index
    %c8 = arith.constant 8 : index
    %101 = vector.load %arg17[%c0_36, %c8] : memref<24x32xf32, #tpu.memory_space<vmem>>, vector<24x4xf32>
    tpu.vector_store %arg17[%c0_36, %c8], %100 {strides = array<i32>} : memref<24x32xf32, #tpu.memory_space<vmem>>, vector<24x4xf32>,
    %102 = vector.extract_strided_slice %36 {offsets = [0, 12], sizes = [24, 4], strides = [1, 1]} : vector<24x32xf32> to vector<24x4xf32>
    %103 = arith.truncf %102 : vector<24x4xf32> to vector<24x4xbf16>
    %104 = vector.extract_strided_slice %37 {offsets = [0, 12], sizes = [24, 4], strides = [1, 1]} : vector<24x32xf32> to vector<24x4xf32>
    %105 = arith.truncf %104 : vector<24x4xf32> to vector<24x4xbf16>
    %106 = vector.extract_strided_slice %38 {offsets = [0, 12], sizes = [24, 4], strides = [1, 1]} : vector<24x32xf32> to vector<24x4xf32>
    %107 = arith.truncf %106 : vector<24x4xf32> to vector<24x4xbf16>
    %cst_37 = arith.constant dense<0.000000e+00> : vector<24x24xf32>
    %108 = tpu.matmul %103, %105, %cst_37 {dimension_numbers = #tpu.dot_dimension_numbers<[1], [1], [0], [0], [0, 0, 1, 0], [], []>} : vector<24x4xbf16>, vector<24x4xbf16>, vector<24x24xf32> -> vector<24x24xf32>
    %cst_38 = arith.constant 5.000000e-01 : f32
    %109 = vector.broadcast %cst_38 : f32 to vector<24x24xf32>
    %110 = arith.mulf %108, %109 : vector<24x24xf32>
    %cst_39 = arith.constant dense<0xFF800000> : vector<24xf32>
    %111 = vector.multi_reduction <maximumf>, %110, %cst_39 [1] : vector<24x24xf32> to vector<24xf32>
    %112 = vector.shape_cast %111 : vector<24xf32> to vector<24x1xf32>
    %113 = vector.broadcast %112 : vector<24x1xf32> to vector<24x24xf32>
    %114 = arith.subf %110, %113 : vector<24x24xf32>
    %115 = math.exp %114 : vector<24x24xf32>
    %cst_40 = arith.constant dense<0.000000e+00> : vector<24xf32>
    %116 = vector.multi_reduction <add>, %115, %cst_40 [1] : vector<24x24xf32> to vector<24xf32>
    %117 = vector.shape_cast %116 : vector<24xf32> to vector<24x1xf32>
    %118 = vector.broadcast %117 : vector<24x1xf32> to vector<24x24xf32>
    %119 = arith.divf %115, %118 : vector<24x24xf32>
    %120 = arith.truncf %119 : vector<24x24xf32> to vector<24x24xbf16>
    %cst_41 = arith.constant dense<0.000000e+00> : vector<24x4xf32>
    %121 = tpu.matmul %120, %107, %cst_41 {dimension_numbers = #tpu.dot_dimension_numbers<[1], [0], [0], [1], [0, 0, 1, 1], [], []>} : vector<24x24xbf16>, vector<24x4xbf16>, vector<24x4xf32> -> vector<24x4xf32>
    %c0_42 = arith.constant 0 : index
    %c12 = arith.constant 12 : index
    %122 = vector.load %arg17[%c0_42, %c12] : memref<24x32xf32, #tpu.memory_space<vmem>>, vector<24x4xf32>
    tpu.vector_store %arg17[%c0_42, %c12], %121 {strides = array<i32>} : memref<24x32xf32, #tpu.memory_space<vmem>>, vector<24x4xf32>,
    %123 = vector.extract_strided_slice %36 {offsets = [0, 16], sizes = [24, 4], strides = [1, 1]} : vector<24x32xf32> to vector<24x4xf32>
    %124 = arith.truncf %123 : vector<24x4xf32> to vector<24x4xbf16>
    %125 = vector.extract_strided_slice %37 {offsets = [0, 16], sizes = [24, 4], strides = [1, 1]} : vector<24x32xf32> to vector<24x4xf32>
    %126 = arith.truncf %125 : vector<24x4xf32> to vector<24x4xbf16>
    %127 = vector.extract_strided_slice %38 {offsets = [0, 16], sizes = [24, 4], strides = [1, 1]} : vector<24x32xf32> to vector<24x4xf32>
    %128 = arith.truncf %127 : vector<24x4xf32> to vector<24x4xbf16>
    %cst_43 = arith.constant dense<0.000000e+00> : vector<24x24xf32>
    %129 = tpu.matmul %124, %126, %cst_43 {dimension_numbers = #tpu.dot_dimension_numbers<[1], [1], [0], [0], [0, 0, 1, 0], [], []>} : vector<24x4xbf16>, vector<24x4xbf16>, vector<24x24xf32> -> vector<24x24xf32>
    %cst_44 = arith.constant 5.000000e-01 : f32
    %130 = vector.broadcast %cst_44 : f32 to vector<24x24xf32>
    %131 = arith.mulf %129, %130 : vector<24x24xf32>
    %cst_45 = arith.constant dense<0xFF800000> : vector<24xf32>
    %132 = vector.multi_reduction <maximumf>, %131, %cst_45 [1] : vector<24x24xf32> to vector<24xf32>
    %133 = vector.shape_cast %132 : vector<24xf32> to vector<24x1xf32>
    %134 = vector.broadcast %133 : vector<24x1xf32> to vector<24x24xf32>
    %135 = arith.subf %131, %134 : vector<24x24xf32>
    %136 = math.exp %135 : vector<24x24xf32>
    %cst_46 = arith.constant dense<0.000000e+00> : vector<24xf32>
    %137 = vector.multi_reduction <add>, %136, %cst_46 [1] : vector<24x24xf32> to vector<24xf32>
    %138 = vector.shape_cast %137 : vector<24xf32> to vector<24x1xf32>
    %139 = vector.broadcast %138 : vector<24x1xf32> to vector<24x24xf32>
    %140 = arith.divf %136, %139 : vector<24x24xf32>
    %141 = arith.truncf %140 : vector<24x24xf32> to vector<24x24xbf16>
    %cst_47 = arith.constant dense<0.000000e+00> : vector<24x4xf32>
    %142 = tpu.matmul %141, %128, %cst_47 {dimension_numbers = #tpu.dot_dimension_numbers<[1], [0], [0], [1], [0, 0, 1, 1], [], []>} : vector<24x24xbf16>, vector<24x4xbf16>, vector<24x4xf32> -> vector<24x4xf32>
    %c0_48 = arith.constant 0 : index
    %c16 = arith.constant 16 : index
    %143 = vector.load %arg17[%c0_48, %c16] : memref<24x32xf32, #tpu.memory_space<vmem>>, vector<24x4xf32>
    tpu.vector_store %arg17[%c0_48, %c16], %142 {strides = array<i32>} : memref<24x32xf32, #tpu.memory_space<vmem>>, vector<24x4xf32>,
    %144 = vector.extract_strided_slice %36 {offsets = [0, 20], sizes = [24, 4], strides = [1, 1]} : vector<24x32xf32> to vector<24x4xf32>
    %145 = arith.truncf %144 : vector<24x4xf32> to vector<24x4xbf16>
    %146 = vector.extract_strided_slice %37 {offsets = [0, 20], sizes = [24, 4], strides = [1, 1]} : vector<24x32xf32> to vector<24x4xf32>
    %147 = arith.truncf %146 : vector<24x4xf32> to vector<24x4xbf16>
    %148 = vector.extract_strided_slice %38 {offsets = [0, 20], sizes = [24, 4], strides = [1, 1]} : vector<24x32xf32> to vector<24x4xf32>
    %149 = arith.truncf %148 : vector<24x4xf32> to vector<24x4xbf16>
    %cst_49 = arith.constant dense<0.000000e+00> : vector<24x24xf32>
    %150 = tpu.matmul %145, %147, %cst_49 {dimension_numbers = #tpu.dot_dimension_numbers<[1], [1], [0], [0], [0, 0, 1, 0], [], []>} : vector<24x4xbf16>, vector<24x4xbf16>, vector<24x24xf32> -> vector<24x24xf32>
    %cst_50 = arith.constant 5.000000e-01 : f32
    %151 = vector.broadcast %cst_50 : f32 to vector<24x24xf32>
    %152 = arith.mulf %150, %151 : vector<24x24xf32>
    %cst_51 = arith.constant dense<0xFF800000> : vector<24xf32>
    %153 = vector.multi_reduction <maximumf>, %152, %cst_51 [1] : vector<24x24xf32> to vector<24xf32>
    %154 = vector.shape_cast %153 : vector<24xf32> to vector<24x1xf32>
    %155 = vector.broadcast %154 : vector<24x1xf32> to vector<24x24xf32>
    %156 = arith.subf %152, %155 : vector<24x24xf32>
    %157 = math.exp %156 : vector<24x24xf32>
    %cst_52 = arith.constant dense<0.000000e+00> : vector<24xf32>
    %158 = vector.multi_reduction <add>, %157, %cst_52 [1] : vector<24x24xf32> to vector<24xf32>
    %159 = vector.shape_cast %158 : vector<24xf32> to vector<24x1xf32>
    %160 = vector.broadcast %159 : vector<24x1xf32> to vector<24x24xf32>
    %161 = arith.divf %157, %160 : vector<24x24xf32>
    %162 = arith.truncf %161 : vector<24x24xf32> to vector<24x24xbf16>
    %cst_53 = arith.constant dense<0.000000e+00> : vector<24x4xf32>
    %163 = tpu.matmul %162, %149, %cst_53 {dimension_numbers = #tpu.dot_dimension_numbers<[1], [0], [0], [1], [0, 0, 1, 1], [], []>} : vector<24x24xbf16>, vector<24x4xbf16>, vector<24x4xf32> -> vector<24x4xf32>
    %c0_54 = arith.constant 0 : index
    %c20 = arith.constant 20 : index
    %164 = vector.load %arg17[%c0_54, %c20] : memref<24x32xf32, #tpu.memory_space<vmem>>, vector<24x4xf32>
    tpu.vector_store %arg17[%c0_54, %c20], %163 {strides = array<i32>} : memref<24x32xf32, #tpu.memory_space<vmem>>, vector<24x4xf32>,
    %165 = vector.extract_strided_slice %36 {offsets = [0, 24], sizes = [24, 4], strides = [1, 1]} : vector<24x32xf32> to vector<24x4xf32>
    %166 = arith.truncf %165 : vector<24x4xf32> to vector<24x4xbf16>
    %167 = vector.extract_strided_slice %37 {offsets = [0, 24], sizes = [24, 4], strides = [1, 1]} : vector<24x32xf32> to vector<24x4xf32>
    %168 = arith.truncf %167 : vector<24x4xf32> to vector<24x4xbf16>
    %169 = vector.extract_strided_slice %38 {offsets = [0, 24], sizes = [24, 4], strides = [1, 1]} : vector<24x32xf32> to vector<24x4xf32>
    %170 = arith.truncf %169 : vector<24x4xf32> to vector<24x4xbf16>
    %cst_55 = arith.constant dense<0.000000e+00> : vector<24x24xf32>
    %171 = tpu.matmul %166, %168, %cst_55 {dimension_numbers = #tpu.dot_dimension_numbers<[1], [1], [0], [0], [0, 0, 1, 0], [], []>} : vector<24x4xbf16>, vector<24x4xbf16>, vector<24x24xf32> -> vector<24x24xf32>
    %cst_56 = arith.constant 5.000000e-01 : f32
    %172 = vector.broadcast %cst_56 : f32 to vector<24x24xf32>
    %173 = arith.mulf %171, %172 : vector<24x24xf32>
    %cst_57 = arith.constant dense<0xFF800000> : vector<24xf32>
    %174 = vector.multi_reduction <maximumf>, %173, %cst_57 [1] : vector<24x24xf32> to vector<24xf32>
    %175 = vector.shape_cast %174 : vector<24xf32> to vector<24x1xf32>
    %176 = vector.broadcast %175 : vector<24x1xf32> to vector<24x24xf32>
    %177 = arith.subf %173, %176 : vector<24x24xf32>
    %178 = math.exp %177 : vector<24x24xf32>
    %cst_58 = arith.constant dense<0.000000e+00> : vector<24xf32>
    %179 = vector.multi_reduction <add>, %178, %cst_58 [1] : vector<24x24xf32> to vector<24xf32>
    %180 = vector.shape_cast %179 : vector<24xf32> to vector<24x1xf32>
    %181 = vector.broadcast %180 : vector<24x1xf32> to vector<24x24xf32>
    %182 = arith.divf %178, %181 : vector<24x24xf32>
    %183 = arith.truncf %182 : vector<24x24xf32> to vector<24x24xbf16>
    %cst_59 = arith.constant dense<0.000000e+00> : vector<24x4xf32>
    %184 = tpu.matmul %183, %170, %cst_59 {dimension_numbers = #tpu.dot_dimension_numbers<[1], [0], [0], [1], [0, 0, 1, 1], [], []>} : vector<24x24xbf16>, vector<24x4xbf16>, vector<24x4xf32> -> vector<24x4xf32>
    %c0_60 = arith.constant 0 : index
    %c24 = arith.constant 24 : index
    %185 = vector.load %arg17[%c0_60, %c24] : memref<24x32xf32, #tpu.memory_space<vmem>>, vector<24x4xf32>
    tpu.vector_store %arg17[%c0_60, %c24], %184 {strides = array<i32>} : memref<24x32xf32, #tpu.memory_space<vmem>>, vector<24x4xf32>,
    %186 = vector.extract_strided_slice %36 {offsets = [0, 28], sizes = [24, 4], strides = [1, 1]} : vector<24x32xf32> to vector<24x4xf32>
    %187 = arith.truncf %186 : vector<24x4xf32> to vector<24x4xbf16>
    %188 = vector.extract_strided_slice %37 {offsets = [0, 28], sizes = [24, 4], strides = [1, 1]} : vector<24x32xf32> to vector<24x4xf32>
    %189 = arith.truncf %188 : vector<24x4xf32> to vector<24x4xbf16>
    %190 = vector.extract_strided_slice %38 {offsets = [0, 28], sizes = [24, 4], strides = [1, 1]} : vector<24x32xf32> to vector<24x4xf32>
    %191 = arith.truncf %190 : vector<24x4xf32> to vector<24x4xbf16>
    %cst_61 = arith.constant dense<0.000000e+00> : vector<24x24xf32>
    %192 = tpu.matmul %187, %189, %cst_61 {dimension_numbers = #tpu.dot_dimension_numbers<[1], [1], [0], [0], [0, 0, 1, 0], [], []>} : vector<24x4xbf16>, vector<24x4xbf16>, vector<24x24xf32> -> vector<24x24xf32>
    %cst_62 = arith.constant 5.000000e-01 : f32
    %193 = vector.broadcast %cst_62 : f32 to vector<24x24xf32>
    %194 = arith.mulf %192, %193 : vector<24x24xf32>
    %cst_63 = arith.constant dense<0xFF800000> : vector<24xf32>
    %195 = vector.multi_reduction <maximumf>, %194, %cst_63 [1] : vector<24x24xf32> to vector<24xf32>
    %196 = vector.shape_cast %195 : vector<24xf32> to vector<24x1xf32>
    %197 = vector.broadcast %196 : vector<24x1xf32> to vector<24x24xf32>
    %198 = arith.subf %194, %197 : vector<24x24xf32>
    %199 = math.exp %198 : vector<24x24xf32>
    %cst_64 = arith.constant dense<0.000000e+00> : vector<24xf32>
    %200 = vector.multi_reduction <add>, %199, %cst_64 [1] : vector<24x24xf32> to vector<24xf32>
    %201 = vector.shape_cast %200 : vector<24xf32> to vector<24x1xf32>
    %202 = vector.broadcast %201 : vector<24x1xf32> to vector<24x24xf32>
    %203 = arith.divf %199, %202 : vector<24x24xf32>
    %204 = arith.truncf %203 : vector<24x24xf32> to vector<24x24xbf16>
    %cst_65 = arith.constant dense<0.000000e+00> : vector<24x4xf32>
    %205 = tpu.matmul %204, %191, %cst_65 {dimension_numbers = #tpu.dot_dimension_numbers<[1], [0], [0], [1], [0, 0, 1, 1], [], []>} : vector<24x24xbf16>, vector<24x4xbf16>, vector<24x4xf32> -> vector<24x4xf32>
    %c0_66 = arith.constant 0 : index
    %c28 = arith.constant 28 : index
    %206 = vector.load %arg17[%c0_66, %c28] : memref<24x32xf32, #tpu.memory_space<vmem>>, vector<24x4xf32>
    tpu.vector_store %arg17[%c0_66, %c28], %205 {strides = array<i32>} : memref<24x32xf32, #tpu.memory_space<vmem>>, vector<24x4xf32>,
    %c0_67 = arith.constant 0 : index
    %c0_68 = arith.constant 0 : index
    %207 = vector.load %arg17[%c0_67, %c0_68] : memref<24x32xf32, #tpu.memory_space<vmem>>, vector<24x32xf32>
    %208 = arith.truncf %207 : vector<24x32xf32> to vector<24x32xbf16>
    %c0_69 = arith.constant 0 : index
    %c0_70 = arith.constant 0 : index
    %209 = vector.load %arg7[%c0_69, %c0_70] : memref<32x32xf32, #tpu.memory_space<vmem>>, vector<32x32xf32>
    %210 = arith.truncf %209 : vector<32x32xf32> to vector<32x32xbf16>
    %cst_71 = arith.constant dense<0.000000e+00> : vector<24x32xf32>
    %211 = tpu.matmul %208, %210, %cst_71 {dimension_numbers = #tpu.dot_dimension_numbers<[1], [0], [0], [1], [0, 0, 1, 1], [], []>} : vector<24x32xbf16>, vector<32x32xbf16>, vector<24x32xf32> -> vector<24x32xf32>
    %c0_72 = arith.constant 0 : index
    %c0_73 = arith.constant 0 : index
    %212 = vector.load %arg8[%c0_72, %c0_73] : memref<1x32xf32, #tpu.memory_space<vmem>>, vector<1x32xf32>
    %213 = vector.broadcast %212 : vector<1x32xf32> to vector<24x32xf32>
    %214 = arith.addf %211, %213 : vector<24x32xf32>
    %215 = arith.addf %4, %214 : vector<24x32xf32>
    %c0_74 = arith.constant 0 : index
    %c0_75 = arith.constant 0 : index
    %216 = vector.load %arg9[%c0_74, %c0_75] : memref<1x32xf32, #tpu.memory_space<vmem>>, vector<1x32xf32>
    %c0_76 = arith.constant 0 : index
    %c0_77 = arith.constant 0 : index
    %217 = vector.load %arg10[%c0_76, %c0_77] : memref<1x32xf32, #tpu.memory_space<vmem>>, vector<1x32xf32>
    %cst_78 = arith.constant dense<0.000000e+00> : vector<24xf32>
    %218 = vector.multi_reduction <add>, %215, %cst_78 [1] : vector<24x32xf32> to vector<24xf32>
    %219 = vector.shape_cast %218 : vector<24xf32> to vector<24x1xf32>
    %cst_79 = arith.constant 3.200000e+01 : f32
    %220 = vector.broadcast %cst_79 : f32 to vector<24x1xf32>
    %221 = arith.divf %219, %220 : vector<24x1xf32>
    %222 = vector.broadcast %221 : vector<24x1xf32> to vector<24x32xf32>
    %223 = arith.subf %215, %222 : vector<24x32xf32>
    %224 = arith.mulf %223, %223 : vector<24x32xf32>
    %cst_80 = arith.constant dense<0.000000e+00> : vector<24xf32>
    %225 = vector.multi_reduction <add>, %224, %cst_80 [1] : vector<24x32xf32> to vector<24xf32>
    %226 = vector.shape_cast %225 : vector<24xf32> to vector<24x1xf32>
    %cst_81 = arith.constant 3.200000e+01 : f32
    %227 = vector.broadcast %cst_81 : f32 to vector<24x1xf32>
    %228 = arith.divf %226, %227 : vector<24x1xf32>
    %229 = vector.broadcast %221 : vector<24x1xf32> to vector<24x32xf32>
    %230 = arith.subf %215, %229 : vector<24x32xf32>
    %cst_82 = arith.constant 9.99999997E-7 : f32
    %231 = vector.broadcast %cst_82 : f32 to vector<24x1xf32>
    %232 = arith.addf %228, %231 : vector<24x1xf32>
    %233 = math.rsqrt %232 : vector<24x1xf32>
    %234 = vector.broadcast %233 : vector<24x1xf32> to vector<24x32xf32>
    %235 = arith.mulf %230, %234 : vector<24x32xf32>
    %236 = vector.broadcast %216 : vector<1x32xf32> to vector<24x32xf32>
    %237 = arith.mulf %235, %236 : vector<24x32xf32>
    %238 = vector.broadcast %217 : vector<1x32xf32> to vector<24x32xf32>
    %239 = arith.addf %237, %238 : vector<24x32xf32>
    %240 = arith.truncf %239 : vector<24x32xf32> to vector<24x32xbf16>
    %c0_83 = arith.constant 0 : index
    %c0_84 = arith.constant 0 : index
    %241 = vector.load %arg11[%c0_83, %c0_84] : memref<32x128xf32, #tpu.memory_space<vmem>>, vector<32x128xf32>
    %242 = arith.truncf %241 : vector<32x128xf32> to vector<32x128xbf16>
    %cst_85 = arith.constant dense<0.000000e+00> : vector<24x128xf32>
    %243 = tpu.matmul %240, %242, %cst_85 {dimension_numbers = #tpu.dot_dimension_numbers<[1], [0], [0], [1], [0, 0, 1, 1], [], []>} : vector<24x32xbf16>, vector<32x128xbf16>, vector<24x128xf32> -> vector<24x128xf32>
    %c0_86 = arith.constant 0 : index
    %c0_87 = arith.constant 0 : index
    %244 = vector.load %arg12[%c0_86, %c0_87] : memref<1x128xf32, #tpu.memory_space<vmem>>, vector<1x128xf32>
    %245 = vector.broadcast %244 : vector<1x128xf32> to vector<24x128xf32>
    %246 = arith.addf %243, %245 : vector<24x128xf32>
    %cst_88 = arith.constant 5.000000e-01 : f32
    %247 = vector.broadcast %cst_88 : f32 to vector<24x128xf32>
    %248 = arith.mulf %247, %246 : vector<24x128xf32>
    %cst_89 = arith.constant 4.471500e-02 : f32
    %249 = vector.broadcast %cst_89 : f32 to vector<24x128xf32>
    %250 = arith.mulf %249, %246 : vector<24x128xf32>
    %251 = arith.mulf %250, %246 : vector<24x128xf32>
    %252 = arith.mulf %251, %246 : vector<24x128xf32>
    %253 = arith.addf %246, %252 : vector<24x128xf32>
    %cst_90 = arith.constant 0.797884583 : f32
    %254 = vector.broadcast %cst_90 : f32 to vector<24x128xf32>
    %255 = arith.mulf %254, %253 : vector<24x128xf32>
    %256 = math.tanh %255 : vector<24x128xf32>
    %cst_91 = arith.constant 1.000000e+00 : f32
    %257 = vector.broadcast %cst_91 : f32 to vector<24x128xf32>
    %258 = arith.addf %257, %256 : vector<24x128xf32>
    %259 = arith.mulf %248, %258 : vector<24x128xf32>
    %260 = arith.truncf %259 : vector<24x128xf32> to vector<24x128xbf16>
    %c0_92 = arith.constant 0 : index
    %c0_93 = arith.constant 0 : index
    %261 = vector.load %arg13[%c0_92, %c0_93] : memref<128x32xf32, #tpu.memory_space<vmem>>, vector<128x32xf32>
    %262 = arith.truncf %261 : vector<128x32xf32> to vector<128x32xbf16>
    %cst_94 = arith.constant dense<0.000000e+00> : vector<24x32xf32>
    %263 = tpu.matmul %260, %262, %cst_94 {dimension_numbers = #tpu.dot_dimension_numbers<[1], [0], [0], [1], [0, 0, 1, 1], [], []>} : vector<24x128xbf16>, vector<128x32xbf16>, vector<24x32xf32> -> vector<24x32xf32>
    %c0_95 = arith.constant 0 : index
    %c0_96 = arith.constant 0 : index
    %264 = vector.load %arg14[%c0_95, %c0_96] : memref<1x32xf32, #tpu.memory_space<vmem>>, vector<1x32xf32>
    %265 = vector.broadcast %264 : vector<1x32xf32> to vector<24x32xf32>
    %266 = arith.addf %263, %265 : vector<24x32xf32>
    %267 = arith.addf %215, %266 : vector<24x32xf32>
    %268 = vector.extract_strided_slice %267 {offsets = [0, 0], sizes = [16, 32], strides = [1, 1]} : vector<24x32xf32> to vector<16x32xf32>
    %c0_97 = arith.constant 0 : index
    %c0_98 = arith.constant 0 : index
    %c0_99 = arith.constant 0 : index
    %269 = vector.load %arg15[%c0_97, %c0_98, %c0_99] : memref<1x16x32xf32, #tpu.memory_space<vmem>>, vector<1x16x32xf32>
    %270 = vector.shape_cast %269 : vector<1x16x32xf32> to vector<16x32xf32>
    %271 = vector.shape_cast %268 : vector<16x32xf32> to vector<1x16x32xf32>
    tpu.vector_store %arg15[%c0_97, %c0_98, %c0_99], %271 {strides = array<i32>} : memref<1x16x32xf32, #tpu.memory_space<vmem>>, vector<1x16x32xf32>,
    %272 = vector.extract_strided_slice %267 {offsets = [16, 0], sizes = [8, 32], strides = [1, 1]} : vector<24x32xf32> to vector<8x32xf32>
    %c0_100 = arith.constant 0 : index
    %c0_101 = arith.constant 0 : index
    %c0_102 = arith.constant 0 : index
    %273 = vector.load %arg16[%c0_100, %c0_101, %c0_102] : memref<1x8x32xf32, #tpu.memory_space<vmem>>, vector<1x8x32xf32>
    %274 = vector.shape_cast %273 : vector<1x8x32xf32> to vector<8x32xf32>
    %275 = vector.shape_cast %272 : vector<8x32xf32> to vector<1x8x32xf32>
    tpu.vector_store %arg16[%c0_100, %c0_101, %c0_102], %275 {strides = array<i32>} : memref<1x8x32xf32, #tpu.memory_space<vmem>>, vector<1x8x32xf32>,
    return
  }
  func.func @transform_0(%arg0: i32) -> (i32, i32, i32) {
    %c0_i32 = arith.constant 0 : i32
    %c0_i32_0 = arith.constant 0 : i32
    %c0_i32_1 = arith.constant 0 : i32
    return %arg0, %c0_i32, %c0_i32_0 : i32, i32, i32
  }
  func.func @transform_1(%arg0: i32) -> (i32, i32, i32) {
    %c0_i32 = arith.constant 0 : i32
    %c0_i32_0 = arith.constant 0 : i32
    %c0_i32_1 = arith.constant 0 : i32
    return %arg0, %c0_i32, %c0_i32_0 : i32, i32, i32
  }
  func.func @transform_2(%arg0: i32) -> (i32, i32) {
    %c0_i32 = arith.constant 0 : i32
    %c0_i32_0 = arith.constant 0 : i32
    %c0_i32_1 = arith.constant 0 : i32
    return %c0_i32, %c0_i32_0 : i32, i32
  }
  func.func @transform_3(%arg0: i32) -> (i32, i32) {
    %c0_i32 = arith.constant 0 : i32
    %c0_i32_0 = arith.constant 0 : i32
    %c0_i32_1 = arith.constant 0 : i32
    return %c0_i32, %c0_i32_0 : i32, i32
  }
  func.func @transform_4(%arg0: i32) -> (i32, i32) {
    %c0_i32 = arith.constant 0 : i32
    %c0_i32_0 = arith.constant 0 : i32
    %c0_i32_1 = arith.constant 0 : i32
    return %c0_i32, %c0_i32_0 : i32, i32
  }
  func.func @transform_5(%arg0: i32) -> (i32, i32) {
    %c0_i32 = arith.constant 0 : i32
    %c0_i32_0 = arith.constant 0 : i32
    %c0_i32_1 = arith.constant 0 : i32
    return %c0_i32, %c0_i32_0 : i32, i32
  }
  func.func @transform_6(%arg0: i32) -> (i32, i32) {
    %c0_i32 = arith.constant 0 : i32
    %c0_i32_0 = arith.constant 0 : i32
    %c0_i32_1 = arith.constant 0 : i32
    return %c0_i32, %c0_i32_0 : i32, i32
  }
  func.func @transform_7(%arg0: i32) -> (i32, i32) {
    %c0_i32 = arith.constant 0 : i32
    %c0_i32_0 = arith.constant 0 : i32
    %c0_i32_1 = arith.constant 0 : i32
    return %c0_i32, %c0_i32_0 : i32, i32
  }
  func.func @transform_8(%arg0: i32) -> (i32, i32) {
    %c0_i32 = arith.constant 0 : i32
    %c0_i32_0 = arith.constant 0 : i32
    %c0_i32_1 = arith.constant 0 : i32
    return %c0_i32, %c0_i32_0 : i32, i32
  }
  func.func @transform_9(%arg0: i32) -> (i32, i32) {
    %c0_i32 = arith.constant 0 : i32
    %c0_i32_0 = arith.constant 0 : i32
    %c0_i32_1 = arith.constant 0 : i32
    return %c0_i32, %c0_i32_0 : i32, i32
  }
  func.func @transform_10(%arg0: i32) -> (i32, i32) {
    %c0_i32 = arith.constant 0 : i32
    %c0_i32_0 = arith.constant 0 : i32
    %c0_i32_1 = arith.constant 0 : i32
    return %c0_i32, %c0_i32_0 : i32, i32
  }
  func.func @transform_11(%arg0: i32) -> (i32, i32) {
    %c0_i32 = arith.constant 0 : i32
    %c0_i32_0 = arith.constant 0 : i32
    %c0_i32_1 = arith.constant 0 : i32
    return %c0_i32, %c0_i32_0 : i32, i32
  }
  func.func @transform_12(%arg0: i32) -> (i32, i32) {
    %c0_i32 = arith.constant 0 : i32
    %c0_i32_0 = arith.constant 0 : i32
    %c0_i32_1 = arith.constant 0 : i32
    return %c0_i32, %c0_i32_0 : i32, i32
  }
  func.func @transform_13(%arg0: i32) -> (i32, i32) {
    %c0_i32 = arith.constant 0 : i32
    %c0_i32_0 = arith.constant 0 : i32
    %c0_i32_1 = arith.constant 0 : i32
    return %c0_i32, %c0_i32_0 : i32, i32
  }
  func.func @transform_14(%arg0: i32) -> (i32, i32, i32) {
    %c0_i32 = arith.constant 0 : i32
    %c0_i32_0 = arith.constant 0 : i32
    %c0_i32_1 = arith.constant 0 : i32
    return %arg0, %c0_i32, %c0_i32_0 : i32, i32, i32
  }
  func.func @transform_15(%arg0: i32) -> (i32, i32, i32) {
    %c0_i32 = arith.constant 0 : i32
    %c0_i32_0 = arith.constant 0 : i32
    %c0_i32_1 = arith.constant 0 : i32
    return %arg0, %c0_i32, %c0_i32_0 : i32, i32, i32
  }
}

</mosaic_0001>

<llo_original>
// kernel: tpu_custom_call.1
$region0: #{tpu_custom_call.1}
  #allocation0 [shape = 'u32[]', space=smem, size = 0x4, offset = 0x4, fixed_abs, tag = 'smem constant byte address 0x4 - core index']
  #allocation1 [shape = 'u32[144,128]{1,0:T(1,128)}', space=vmem, size = 0x12000, scoped, tag = 'internal scratch']
  #allocation2 [shape = 'f32[24,32]{1,0:T(8,128)}', space=vmem, size = 0x3000, scoped, tag = 'scratch operand']
  %s0 = inlined_call_operand.vmem [shape: f32[2,16,32], index: 0, kind: input, shape index: {}]
  %s1 = inlined_call_operand.vmem [shape: f32[2,8,32], index: 1, kind: input, shape index: {}]
  %s2 = inlined_call_operand.vmem [shape: f32[1,32], index: 2, kind: input, shape index: {}]
  %s3 = inlined_call_operand.vmem [shape: f32[1,32], index: 3, kind: input, shape index: {}]
  %s4 = inlined_call_operand.vmem [shape: f32[32,96], index: 4, kind: input, shape index: {}]
  %s5 = inlined_call_operand.vmem [shape: f32[1,96], index: 5, kind: input, shape index: {}]
  %s6 = inlined_call_operand.vmem [shape: f32[32,32], index: 6, kind: input, shape index: {}]
  %s7 = inlined_call_operand.vmem [shape: f32[1,32], index: 7, kind: input, shape index: {}]
  %s8 = inlined_call_operand.vmem [shape: f32[1,32], index: 8, kind: input, shape index: {}]
  %s9 = inlined_call_operand.vmem [shape: f32[1,32], index: 9, kind: input, shape index: {}]
  %s10 = inlined_call_operand.vmem [shape: f32[32,128], index: 10, kind: input, shape index: {}]
  %s11 = inlined_call_operand.vmem [shape: f32[1,128], index: 11, kind: input, shape index: {}]
  %s12 = inlined_call_operand.vmem [shape: f32[128,32], index: 12, kind: input, shape index: {}]
  %s13 = inlined_call_operand.vmem [shape: f32[1,32], index: 13, kind: input, shape index: {}]
  %s14 = inlined_call_operand.hbm [shape: f32[2,16,32], index: 14, kind: output, shape index: {0}]
  %s15 = inlined_call_operand.hbm [shape: f32[2,8,32], index: 15, kind: output, shape index: {1}]
  %16 = xla_tuple %s14, %s15
  %s17 = sld [smem:[#allocation0]]
  $region97: #{tpu_custom_call.1} parent=0
    _
  %s19 = ssub.s32 1, %s17
  %s20 = scalar_select 0, %s19, %s17
  $region1: #{tpu_custom_call.1} parent=0
    #allocation3 [shape = 'u8[16384]{0}', space=vmem, size = 0x4000, scoped, tag = 'output window, operand 0']
    #allocation4 [shape = 's32[2]{0}', space=sflag, size = 0x8, scoped, tag = 'scoped memory for tpu_custom_call.1']
    #allocation5 [shape = 'u8[8192]{0}', space=vmem, size = 0x2000, scoped, tag = 'output window, operand 1']
    #allocation6 [shape = 's32[2]{0}', space=sflag, size = 0x8, scoped, tag = 'scoped memory for tpu_custom_call.1']
    %21 = vsyncpa [#allocation4], 0
    %s22 = scalar_lea.sflag [#allocation4], 1
    %23 = vsyncpa %s22, 0
    %24 = vsyncpa [#allocation6], 0
    %s25 = scalar_lea.sflag [#allocation6], 1
    %26 = vsyncpa %s25, 0
    loop: start=0, step=1, limit=4
    $region2: #{tpu_custom_call.1} parent=1 // loop_pre_header
      _
    $region3: #{tpu_custom_call.1} parent=1 // loop_header
      %s28 = sphi 0, %s32
      %p29 = scmp.ge.s32.totalorder %s28, 4
      %s38 = sphi 0, %s40
      %s41 = sphi 0, %s38
      %s42 = sphi 0, %s41
      %s58 = sphi 0, %s42
      %s64 = sphi 0, %s66
      %s67 = sphi 0, %s64
      %s68 = sphi 0, %s67
      %s84 = sphi 0, %s68
      %s88 = sphi 0, %s88
      %s90 = sphi 0, %s88
      %s91 = sphi 0, %s90
      %s105 = sphi 0, %s91
      %s109 = sphi 0, %s109
      %s111 = sphi 0, %s109
      %s112 = sphi 0, %s111
      %s126 = sphi 0, %s112
      %s130 = sphi 0, %s130
      %s132 = sphi 0, %s130
      %s133 = sphi 0, %s132
      %s147 = sphi 0, %s133
      %s151 = sphi 0, %s151
      %s153 = sphi 0, %s151
      %s154 = sphi 0, %s153
      %s168 = sphi 0, %s154
      %s172 = sphi 0, %s172
      %s174 = sphi 0, %s172
      %s175 = sphi 0, %s174
      %s189 = sphi 0, %s175
      %s193 = sphi 0, %s193
      %s195 = sphi 0, %s193
      %s196 = sphi 0, %s195
      %s210 = sphi 0, %s196
      %s214 = sphi 0, %s214
      %s216 = sphi 0, %s214
      %s217 = sphi 0, %s216
      %s231 = sphi 0, %s217
      %s235 = sphi 0, %s235
      %s237 = sphi 0, %s235
      %s238 = sphi 0, %s237
      %s252 = sphi 0, %s238
      %s256 = sphi 0, %s256
      %s258 = sphi 0, %s256
      %s259 = sphi 0, %s258
      %s273 = sphi 0, %s259
      %s277 = sphi 0, %s277
      %s279 = sphi 0, %s277
      %s280 = sphi 0, %s279
      %s294 = sphi 0, %s280
      %s298 = sphi 0, %s298
      %s300 = sphi 0, %s298
      %s301 = sphi 0, %s300
      %s315 = sphi 0, %s301
      %s319 = sphi 0, %s319
      %s321 = sphi 0, %s319
      %s322 = sphi 0, %s321
      %s336 = sphi 0, %s322
      %s342 = sphi 0, %s344
      %s345 = sphi 0, %s342
      %s346 = sphi 0, %s345
      %s362 = sphi 0, %s346
      %s368 = sphi 0, %s370
      %s371 = sphi 0, %s368
      %s372 = sphi 0, %s371
      %s388 = sphi 0, %s372
    $region4: #{tpu_custom_call.1} parent=1 // loop_header_branch
      %31 = sbr.rel (%p29) target = $region8
    $region5: #{tpu_custom_call.1} parent=1 // loop_body
      %s33 = ssub.s32 %s28, 1
      %s34 = ssub.s32 %s28, 2
      %s35 = sadd.s32 %s28, 1
      %s36 = ssub.s32 %s28, %s35
      %p37 = scmp.eq.s32.totalorder %s36, 0
      %s39 = sadd.s32 %s38, 1
      %s40 = scalar_select %p37, %s38, %s39
      %p43 = pneg %p37
      %p44 = scmp.eq.s32.totalorder %s28, 1
      %p45 = por %p43, %p44
      %p46 = scmp.ne.s32.totalorder %s38, %s41
      %p47 = scmp.eq.s32.totalorder %s28, 0
      %p48 = por %p46, %p47
      %p49 = scmp.ne.s32.totalorder %s38, %s41
      %p50 = scmp.eq.s32.totalorder %s33, 1
      %p51 = por %p49, %p50
      %p52 = scmp.ne.s32.totalorder %s41, %s42
      %p53 = scmp.eq.s32.totalorder %s33, 0
      %p54 = por %p52, %p53
      %p55 = scmp.ne.s32.totalorder %s41, %s42
      %p56 = scmp.eq.s32.totalorder %s34, 1
      %p57 = por %p55, %p56
      %p59 = scmp.ne.s32.totalorder %s42, %s58
      %p60 = scmp.eq.s32.totalorder %s34, 0
      %p61 = por %p59, %p60
      %s62 = ssub.s32 %s28, %s35
      %p63 = scmp.eq.s32.totalorder %s62, 0
      %s65 = sadd.s32 %s64, 1
      %s66 = scalar_select %p63, %s64, %s65
      %p69 = pneg %p63
      %p70 = scmp.eq.s32.totalorder %s28, 1
      %p71 = por %p69, %p70
      %p72 = scmp.ne.s32.totalorder %s64, %s67
      %p73 = scmp.eq.s32.totalorder %s28, 0
      %p74 = por %p72, %p73
      %p75 = scmp.ne.s32.totalorder %s64, %s67
      %p76 = scmp.eq.s32.totalorder %s33, 1
      %p77 = por %p75, %p76
      %p78 = scmp.ne.s32.totalorder %s67, %s68
      %p79 = scmp.eq.s32.totalorder %s33, 0
      %p80 = por %p78, %p79
      %p81 = scmp.ne.s32.totalorder %s67, %s68
      %p82 = scmp.eq.s32.totalorder %s34, 1
      %p83 = por %p81, %p82
      %p85 = scmp.ne.s32.totalorder %s68, %s84
      %p86 = scmp.eq.s32.totalorder %s34, 0
      %p87 = por %p85, %p86
      %s89 = sadd.s32 %s88, 1
      %p92 = scmp.eq.s32.totalorder %s28, 1
      %p93 = scmp.ne.s32.totalorder %s88, %s90
      %p94 = scmp.eq.s32.totalorder %s28, 0
      %p95 = por %p93, %p94
      %p96 = scmp.ne.s32.totalorder %s88, %s90
      %p97 = scmp.eq.s32.totalorder %s33, 1
      %p98 = por %p96, %p97
      %p99 = scmp.ne.s32.totalorder %s90, %s91
      %p100 = scmp.eq.s32.totalorder %s33, 0
      %p101 = por %p99, %p100
      %p102 = scmp.ne.s32.totalorder %s90, %s91
      %p103 = scmp.eq.s32.totalorder %s34, 1
      %p104 = por %p102, %p103
      %p106 = scmp.ne.s32.totalorder %s91, %s105
      %p107 = scmp.eq.s32.totalorder %s34, 0
      %p108 = por %p106, %p107
      %s110 = sadd.s32 %s109, 1
      %p113 = scmp.eq.s32.totalorder %s28, 1
      %p114 = scmp.ne.s32.totalorder %s109, %s111
      %p115 = scmp.eq.s32.totalorder %s28, 0
      %p116 = por %p114, %p115
      %p117 = scmp.ne.s32.totalorder %s109, %s111
      %p118 = scmp.eq.s32.totalorder %s33, 1
      %p119 = por %p117, %p118
      %p120 = scmp.ne.s32.totalorder %s111, %s112
      %p121 = scmp.eq.s32.totalorder %s33, 0
      %p122 = por %p120, %p121
      %p123 = scmp.ne.s32.totalorder %s111, %s112
      %p124 = scmp.eq.s32.totalorder %s34, 1
      %p125 = por %p123, %p124
      %p127 = scmp.ne.s32.totalorder %s112, %s126
      %p128 = scmp.eq.s32.totalorder %s34, 0
      %p129 = por %p127, %p128
      %s131 = sadd.s32 %s130, 1
      %p134 = scmp.eq.s32.totalorder %s28, 1
      %p135 = scmp.ne.s32.totalorder %s130, %s132
      %p136 = scmp.eq.s32.totalorder %s28, 0
      %p137 = por %p135, %p136
      %p138 = scmp.ne.s32.totalorder %s130, %s132
      %p139 = scmp.eq.s32.totalorder %s33, 1
      %p140 = por %p138, %p139
      %p141 = scmp.ne.s32.totalorder %s132, %s133
      %p142 = scmp.eq.s32.totalorder %s33, 0
      %p143 = por %p141, %p142
      %p144 = scmp.ne.s32.totalorder %s132, %s133
      %p145 = scmp.eq.s32.totalorder %s34, 1
      %p146 = por %p144, %p145
      %p148 = scmp.ne.s32.totalorder %s133, %s147
      %p149 = scmp.eq.s32.totalorder %s34, 0
      %p150 = por %p148, %p149
      %s152 = sadd.s32 %s151, 1
      %p155 = scmp.eq.s32.totalorder %s28, 1
      %p156 = scmp.ne.s32.totalorder %s151, %s153
      %p157 = scmp.eq.s32.totalorder %s28, 0
      %p158 = por %p156, %p157
      %p159 = scmp.ne.s32.totalorder %s151, %s153
      %p160 = scmp.eq.s32.totalorder %s33, 1
      %p161 = por %p159, %p160
      %p162 = scmp.ne.s32.totalorder %s153, %s154
      %p163 = scmp.eq.s32.totalorder %s33, 0
      %p164 = por %p162, %p163
      %p165 = scmp.ne.s32.totalorder %s153, %s154
      %p166 = scmp.eq.s32.totalorder %s34, 1
      %p167 = por %p165, %p166
      %p169 = scmp.ne.s32.totalorder %s154, %s168
      %p170 = scmp.eq.s32.totalorder %s34, 0
      %p171 = por %p169, %p170
      %s173 = sadd.s32 %s172, 1
      %p176 = scmp.eq.s32.totalorder %s28, 1
      %p177 = scmp.ne.s32.totalorder %s172, %s174
      %p178 = scmp.eq.s32.totalorder %s28, 0
      %p179 = por %p177, %p178
      %p180 = scmp.ne.s32.totalorder %s172, %s174
      %p181 = scmp.eq.s32.totalorder %s33, 1
      %p182 = por %p180, %p181
      %p183 = scmp.ne.s32.totalorder %s174, %s175
      %p184 = scmp.eq.s32.totalorder %s33, 0
      %p185 = por %p183, %p184
      %p186 = scmp.ne.s32.totalorder %s174, %s175
      %p187 = scmp.eq.s32.totalorder %s34, 1
      %p188 = por %p186, %p187
      %p190 = scmp.ne.s32.totalorder %s175, %s189
      %p191 = scmp.eq.s32.totalorder %s34, 0
      %p192 = por %p190, %p191
      %s194 = sadd.s32 %s193, 1
      %p197 = scmp.eq.s32.totalorder %s28, 1
      %p198 = scmp.ne.s32.totalorder %s193, %s195
      %p199 = scmp.eq.s32.totalorder %s28, 0
      %p200 = por %p198, %p199
      %p201 = scmp.ne.s32.totalorder %s193, %s195
      %p202 = scmp.eq.s32.totalorder %s33, 1
      %p203 = por %p201, %p202
      %p204 = scmp.ne.s32.totalorder %s195, %s196
      %p205 = scmp.eq.s32.totalorder %s33, 0
      %p206 = por %p204, %p205
      %p207 = scmp.ne.s32.totalorder %s195, %s196
      %p208 = scmp.eq.s32.totalorder %s34, 1
      %p209 = por %p207, %p208
      %p211 = scmp.ne.s32.totalorder %s196, %s210
      %p212 = scmp.eq.s32.totalorder %s34, 0
      %p213 = por %p211, %p212
      %s215 = sadd.s32 %s214, 1
      %p218 = scmp.eq.s32.totalorder %s28, 1
      %p219 = scmp.ne.s32.totalorder %s214, %s216
      %p220 = scmp.eq.s32.totalorder %s28, 0
      %p221 = por %p219, %p220
      %p222 = scmp.ne.s32.totalorder %s214, %s216
      %p223 = scmp.eq.s32.totalorder %s33, 1
      %p224 = por %p222, %p223
      %p225 = scmp.ne.s32.totalorder %s216, %s217
      %p226 = scmp.eq.s32.totalorder %s33, 0
      %p227 = por %p225, %p226
      %p228 = scmp.ne.s32.totalorder %s216, %s217
      %p229 = scmp.eq.s32.totalorder %s34, 1
      %p230 = por %p228, %p229
      %p232 = scmp.ne.s32.totalorder %s217, %s231
      %p233 = scmp.eq.s32.totalorder %s34, 0
      %p234 = por %p232, %p233
      %s236 = sadd.s32 %s235, 1
      %p239 = scmp.eq.s32.totalorder %s28, 1
      %p240 = scmp.ne.s32.totalorder %s235, %s237
      %p241 = scmp.eq.s32.totalorder %s28, 0
      %p242 = por %p240, %p241
      %p243 = scmp.ne.s32.totalorder %s235, %s237
      %p244 = scmp.eq.s32.totalorder %s33, 1
      %p245 = por %p243, %p244
      %p246 = scmp.ne.s32.totalorder %s237, %s238
      %p247 = scmp.eq.s32.totalorder %s33, 0
      %p248 = por %p246, %p247
      %p249 = scmp.ne.s32.totalorder %s237, %s238
      %p250 = scmp.eq.s32.totalorder %s34, 1
      %p251 = por %p249, %p250
      %p253 = scmp.ne.s32.totalorder %s238, %s252
      %p254 = scmp.eq.s32.totalorder %s34, 0
      %p255 = por %p253, %p254
      %s257 = sadd.s32 %s256, 1
      %p260 = scmp.eq.s32.totalorder %s28, 1
      %p261 = scmp.ne.s32.totalorder %s256, %s258
      %p262 = scmp.eq.s32.totalorder %s28, 0
      %p263 = por %p261, %p262
      %p264 = scmp.ne.s32.totalorder %s256, %s258
      %p265 = scmp.eq.s32.totalorder %s33, 1
      %p266 = por %p264, %p265
      %p267 = scmp.ne.s32.totalorder %s258, %s259
      %p268 = scmp.eq.s32.totalorder %s33, 0
      %p269 = por %p267, %p268
      %p270 = scmp.ne.s32.totalorder %s258, %s259
      %p271 = scmp.eq.s32.totalorder %s34, 1
      %p272 = por %p270, %p271
      %p274 = scmp.ne.s32.totalorder %s259, %s273
      %p275 = scmp.eq.s32.totalorder %s34, 0
      %p276 = por %p274, %p275
      %s278 = sadd.s32 %s277, 1
      %p281 = scmp.eq.s32.totalorder %s28, 1
      %p282 = scmp.ne.s32.totalorder %s277, %s279
      %p283 = scmp.eq.s32.totalorder %s28, 0
      %p284 = por %p282, %p283
      %p285 = scmp.ne.s32.totalorder %s277, %s279
      %p286 = scmp.eq.s32.totalorder %s33, 1
      %p287 = por %p285, %p286
      %p288 = scmp.ne.s32.totalorder %s279, %s280
      %p289 = scmp.eq.s32.totalorder %s33, 0
      %p290 = por %p288, %p289
      %p291 = scmp.ne.s32.totalorder %s279, %s280
      %p292 = scmp.eq.s32.totalorder %s34, 1
      %p293 = por %p291, %p292
      %p295 = scmp.ne.s32.totalorder %s280, %s294
      %p296 = scmp.eq.s32.totalorder %s34, 0
      %p297 = por %p295, %p296
      %s299 = sadd.s32 %s298, 1
      %p302 = scmp.eq.s32.totalorder %s28, 1
      %p303 = scmp.ne.s32.totalorder %s298, %s300
      %p304 = scmp.eq.s32.totalorder %s28, 0
      %p305 = por %p303, %p304
      %p306 = scmp.ne.s32.totalorder %s298, %s300
      %p307 = scmp.eq.s32.totalorder %s33, 1
      %p308 = por %p306, %p307
      %p309 = scmp.ne.s32.totalorder %s300, %s301
      %p310 = scmp.eq.s32.totalorder %s33, 0
      %p311 = por %p309, %p310
      %p312 = scmp.ne.s32.totalorder %s300, %s301
      %p313 = scmp.eq.s32.totalorder %s34, 1
      %p314 = por %p312, %p313
      %p316 = scmp.ne.s32.totalorder %s301, %s315
      %p317 = scmp.eq.s32.totalorder %s34, 0
      %p318 = por %p316, %p317
      %s320 = sadd.s32 %s319, 1
      %p323 = scmp.eq.s32.totalorder %s28, 1
      %p324 = scmp.ne.s32.totalorder %s319, %s321
      %p325 = scmp.eq.s32.totalorder %s28, 0
      %p326 = por %p324, %p325
      %p327 = scmp.ne.s32.totalorder %s319, %s321
      %p328 = scmp.eq.s32.totalorder %s33, 1
      %p329 = por %p327, %p328
      %p330 = scmp.ne.s32.totalorder %s321, %s322
      %p331 = scmp.eq.s32.totalorder %s33, 0
      %p332 = por %p330, %p331
      %p333 = scmp.ne.s32.totalorder %s321, %s322
      %p334 = scmp.eq.s32.totalorder %s34, 1
      %p335 = por %p333, %p334
      %p337 = scmp.ne.s32.totalorder %s322, %s336
      %p338 = scmp.eq.s32.totalorder %s34, 0
      %p339 = por %p337, %p338
      %s340 = ssub.s32 %s28, %s35
      %p341 = scmp.eq.s32.totalorder %s340, 0
      %s343 = sadd.s32 %s342, 1
      %s344 = scalar_select %p341, %s342, %s343
      %p347 = pneg %p341
      %p348 = scmp.eq.s32.totalorder %s28, 1
      %p349 = por %p347, %p348
      %p350 = scmp.ne.s32.totalorder %s342, %s345
      %p351 = scmp.eq.s32.totalorder %s28, 0
      %p352 = por %p350, %p351
      %p353 = scmp.ne.s32.totalorder %s342, %s345
      %p354 = scmp.eq.s32.totalorder %s33, 1
      %p355 = por %p353, %p354
      %p356 = scmp.ne.s32.totalorder %s345, %s346
      %p357 = scmp.eq.s32.totalorder %s33, 0
      %p358 = por %p356, %p357
      %p359 = scmp.ne.s32.totalorder %s345, %s346
      %p360 = scmp.eq.s32.totalorder %s34, 1
      %p361 = por %p359, %p360
      %p363 = scmp.ne.s32.totalorder %s346, %s362
      %p364 = scmp.eq.s32.totalorder %s34, 0
      %p365 = por %p363, %p364
      %s366 = ssub.s32 %s28, %s35
      %p367 = scmp.eq.s32.totalorder %s366, 0
      %s369 = sadd.s32 %s368, 1
      %s370 = scalar_select %p367, %s368, %s369
      %p373 = pneg %p367
      %p374 = scmp.eq.s32.totalorder %s28, 1
      %p375 = por %p373, %p374
      %p376 = scmp.ne.s32.totalorder %s368, %s371
      %p377 = scmp.eq.s32.totalorder %s28, 0
      %p378 = por %p376, %p377
      %p379 = scmp.ne.s32.totalorder %s368, %s371
      %p380 = scmp.eq.s32.totalorder %s33, 1
      %p381 = por %p379, %p380
      %p382 = scmp.ne.s32.totalorder %s371, %s372
      %p383 = scmp.eq.s32.totalorder %s33, 0
      %p384 = por %p382, %p383
      %p385 = scmp.ne.s32.totalorder %s371, %s372
      %p386 = scmp.eq.s32.totalorder %s34, 1
      %p387 = por %p385, %p386
      %p389 = scmp.ne.s32.totalorder %s372, %s388
      %p390 = scmp.eq.s32.totalorder %s34, 0
      %p391 = por %p389, %p390
      %p392 = scmp.le.s32.totalorder 1, %s28
      %p393 = scmp.lt.s32.totalorder %s28, 3
      %p394 = pnand %p392, %p393
      %p395 = pneg %p394
      // Predicated region
      $region9: #{tpu_custom_call.1} parent=5 // pred_check
        _
      $region10: #{tpu_custom_call.1} parent=5 // pred_check_branch
        %397 = sbr.rel (%p394) target = $region12
      $region11: #{tpu_custom_call.1} parent=5 // pred_region
        %s398 = ssub.s32 %s28, 1
        // Predicated region
        $region13: #{tpu_custom_call.1} parent=11 // pred_check
          %p399 = pneg %p101
        $region14: #{tpu_custom_call.1} parent=11 // pred_check_branch
          %401 = sbr.rel (%p399) target = $region16
        $region15: #{tpu_custom_call.1} parent=11 // pred_region
          _
        $region16: #{tpu_custom_call.1} parent=11 // pred_fallthru
          _
        // Predicated region
        $region17: #{tpu_custom_call.1} parent=11 // pred_check
          %p402 = pneg %p122
        $region18: #{tpu_custom_call.1} parent=11 // pred_check_branch
          %404 = sbr.rel (%p402) target = $region20
        $region19: #{tpu_custom_call.1} parent=11 // pred_region
          _
        $region20: #{tpu_custom_call.1} parent=11 // pred_fallthru
          _
        // Predicated region
        $region21: #{tpu_custom_call.1} parent=11 // pred_check
          %p405 = pneg %p143
        $region22: #{tpu_custom_call.1} parent=11 // pred_check_branch
          %407 = sbr.rel (%p405) target = $region24
        $region23: #{tpu_custom_call.1} parent=11 // pred_region
          _
        $region24: #{tpu_custom_call.1} parent=11 // pred_fallthru
          _
        // Predicated region
        $region25: #{tpu_custom_call.1} parent=11 // pred_check
          %p408 = pneg %p164
        $region26: #{tpu_custom_call.1} parent=11 // pred_check_branch
          %410 = sbr.rel (%p408) target = $region28
        $region27: #{tpu_custom_call.1} parent=11 // pred_region
          _
        $region28: #{tpu_custom_call.1} parent=11 // pred_fallthru
          _
        // Predicated region
        $region29: #{tpu_custom_call.1} parent=11 // pred_check
          %p411 = pneg %p185
        $region30: #{tpu_custom_call.1} parent=11 // pred_check_branch
          %413 = sbr.rel (%p411) target = $region32
        $region31: #{tpu_custom_call.1} parent=11 // pred_region
          _
        $region32: #{tpu_custom_call.1} parent=11 // pred_fallthru
          _
        // Predicated region
        $region33: #{tpu_custom_call.1} parent=11 // pred_check
          %p414 = pneg %p206
        $region34: #{tpu_custom_call.1} parent=11 // pred_check_branch
          %416 = sbr.rel (%p414) target = $region36
        $region35: #{tpu_custom_call.1} parent=11 // pred_region
          _
        $region36: #{tpu_custom_call.1} parent=11 // pred_fallthru
          _
        // Predicated region
        $region37: #{tpu_custom_call.1} parent=11 // pred_check
          %p417 = pneg %p227
        $region38: #{tpu_custom_call.1} parent=11 // pred_check_branch
          %419 = sbr.rel (%p417) target = $region40
        $region39: #{tpu_custom_call.1} parent=11 // pred_region
          _
        $region40: #{tpu_custom_call.1} parent=11 // pred_fallthru
          _
        // Predicated region
        $region41: #{tpu_custom_call.1} parent=11 // pred_check
          %p420 = pneg %p248
        $region42: #{tpu_custom_call.1} parent=11 // pred_check_branch
          %422 = sbr.rel (%p420) target = $region44
        $region43: #{tpu_custom_call.1} parent=11 // pred_region
          _
        $region44: #{tpu_custom_call.1} parent=11 // pred_fallthru
          _
        // Predicated region
        $region45: #{tpu_custom_call.1} parent=11 // pred_check
          %p423 = pneg %p269
        $region46: #{tpu_custom_call.1} parent=11 // pred_check_branch
          %425 = sbr.rel (%p423) target = $region48
        $region47: #{tpu_custom_call.1} parent=11 // pred_region
          _
        $region48: #{tpu_custom_call.1} parent=11 // pred_fallthru
          _
        // Predicated region
        $region49: #{tpu_custom_call.1} parent=11 // pred_check
          %p426 = pneg %p290
        $region50: #{tpu_custom_call.1} parent=11 // pred_check_branch
          %428 = sbr.rel (%p426) target = $region52
        $region51: #{tpu_custom_call.1} parent=11 // pred_region
          _
        $region52: #{tpu_custom_call.1} parent=11 // pred_fallthru
          _
        // Predicated region
        $region53: #{tpu_custom_call.1} parent=11 // pred_check
          %p429 = pneg %p311
        $region54: #{tpu_custom_call.1} parent=11 // pred_check_branch
          %431 = sbr.rel (%p429) target = $region56
        $region55: #{tpu_custom_call.1} parent=11 // pred_region
          _
        $region56: #{tpu_custom_call.1} parent=11 // pred_fallthru
          _
        // Predicated region
        $region57: #{tpu_custom_call.1} parent=11 // pred_check
          %p432 = pneg %p332
        $region58: #{tpu_custom_call.1} parent=11 // pred_check_branch
          %434 = sbr.rel (%p432) target = $region60
        $region59: #{tpu_custom_call.1} parent=11 // pred_region
          _
        $region60: #{tpu_custom_call.1} parent=11 // pred_fallthru
          _
      $region12: #{tpu_custom_call.1} parent=5 // pred_fallthru
        _
      %p435 = scmp.lt.s32.totalorder %s28, 2
      // Predicated region
      $region61: #{tpu_custom_call.1} parent=5 // pred_check
        %p436 = pneg %p435
      $region62: #{tpu_custom_call.1} parent=5 // pred_check_branch
        %438 = sbr.rel (%p436) target = $region64
      $region63: #{tpu_custom_call.1} parent=5 // pred_region
        // Predicated region
        $region65: #{tpu_custom_call.1} parent=63 // pred_check
          %p439 = pneg %p48
        $region66: #{tpu_custom_call.1} parent=63 // pred_check_branch
          %441 = sbr.rel (%p439) target = $region68
        $region67: #{tpu_custom_call.1} parent=63 // pred_region
          %p442 = scmp.lt.s32.totalorder %s28, 1
          %s443 = scalar_select %p442, %s28, 1
          %s444 = smul.addr %s443, 2
          %s445 = smul.addr %s444, 8
          %s446 = scalar_lea.vmem %s0, %s445
        $region68: #{tpu_custom_call.1} parent=63 // pred_fallthru
          _
        // Predicated region
        $region69: #{tpu_custom_call.1} parent=63 // pred_check
          %p447 = pneg %p74
        $region70: #{tpu_custom_call.1} parent=63 // pred_check_branch
          %449 = sbr.rel (%p447) target = $region72
        $region71: #{tpu_custom_call.1} parent=63 // pred_region
          %p450 = scmp.lt.s32.totalorder %s28, 1
          %s451 = scalar_select %p450, %s28, 1
          %s452 = smul.addr %s451, 8
          %s453 = scalar_lea.vmem %s1, %s452
        $region72: #{tpu_custom_call.1} parent=63 // pred_fallthru
          _
      $region64: #{tpu_custom_call.1} parent=5 // pred_fallthru
        _
      %p454 = scmp.le.s32.totalorder 1, %s28
      %p455 = scmp.lt.s32.totalorder %s28, 3
      %p456 = pnand %p454, %p455
      %p457 = pneg %p456
      // Predicated region
      $region73: #{tpu_custom_call.1} parent=5 // pred_check
        _
      $region74: #{tpu_custom_call.1} parent=5 // pred_check_branch
        %459 = sbr.rel (%p456) target = $region76
      $region75: #{tpu_custom_call.1} parent=5 // pred_region
        %s460 = ssub.s32 %s28, 1
        %p461 = scmp.lt.s32.totalorder %s33, 1
        %s462 = scalar_select %p461, %s33, 1
        %s463 = smul.addr %s462, 2
        %s464 = smul.addr %s463, 8
        %s465 = scalar_lea.vmem %s0, %s464
        %p466 = pneg %p54
        %p467 = pneg %p51
        %p468 = scmp.lt.s32.totalorder %s33, 1
        %s469 = scalar_select %p468, %s33, 1
        %s470 = smul.addr %s469, 8
        %s471 = scalar_lea.vmem %s1, %s470
        %p472 = pneg %p80
        %p473 = pneg %p77
        %p474 = pneg %p101
        %p475 = pneg %p98
        %p476 = pneg %p122
        %p477 = pneg %p119
        %p478 = pneg %p143
        %p479 = pneg %p140
        %p480 = pneg %p164
        %p481 = pneg %p161
        %p482 = pneg %p185
        %p483 = pneg %p182
        %p484 = pneg %p206
        %p485 = pneg %p203
        %p486 = pneg %p227
        %p487 = pneg %p224
        %p488 = pneg %p248
        %p489 = pneg %p245
        %p490 = pneg %p269
        %p491 = pneg %p266
        %p492 = pneg %p290
        %p493 = pneg %p287
        %p494 = pneg %p311
        %p495 = pneg %p308
        %p496 = pneg %p332
        %p497 = pneg %p329
        %p498 = pneg %p358
        %p499 = pneg %p355
        %s500 = sand.u32 %s345, 1
        %s501 = scalar_lea.sflag [#allocation4], %s500
        %s502 = sand.u32 %s345, 1
        %s503 = smul.addr %s502, 16
        %s504 = scalar_lea.vmem [#allocation3], %s503
        %p505 = pneg %p384
        %p506 = pneg %p381
        %s507 = sand.u32 %s371, 1
        %s508 = scalar_lea.sflag [#allocation6], %s507
        %s509 = sand.u32 %s371, 1
        %s510 = smul.addr %s509, 8
        %s511 = scalar_lea.vmem [#allocation5], %s510
        %p512 = scmp.lt.s32.totalorder %s33, 1
        %s513 = scalar_select %p512, %s33, 1
        %s514 = smul.addr %s513, 2
        %s515 = smul.addr %s514, 8
        %s516 = scalar_lea.vmem %s0, %s515
        %p517 = scmp.lt.s32.totalorder %s33, 1
        %s518 = scalar_select %p517, %s33, 1
        %s519 = smul.addr %s518, 8
        %s520 = scalar_lea.vmem %s1, %s519
        %v522 = vld [vmem:[%s516] sm:$0xff]
        %v523 = vld [vmem:[%s516 + $0x8] sm:$0xff]
        %v524 = vld [vmem:[%s520] sm:$0xff]
        %v525 = vld [vmem:[%s2] sm:$0x1]
        %v526 = vld [vmem:[%s3] sm:$0x1]
        %vm527 = vcmask 261120
        %v528 = vsel %vm527, %v522, 0.0
        %529 = vadd.xlane.f32.xlu0 %v528
        %v530 = vpop.xlane.xlu0 %529
        %v531 = vsel %vm527, %v523, 0.0
        %532 = vadd.xlane.f32.xlu0 %v531
        %v533 = vpop.xlane.xlu0 %532
        %v534 = vsel %vm527, %v524, 0.0
        %535 = vadd.xlane.f32.xlu0 %v534
        %v536 = vpop.xlane.xlu0 %535
        %v537 = vrcp.pop 32.0
        %v538 = vmul.f32 %v530, %v537
        %v539 = vmul.f32 %v533, %v537
        %v540 = vmul.f32 %v536, %v537
        %v541 = vsub.f32 %v522, %v538
        %v542 = vsub.f32 %v523, %v539
        %v543 = vsub.f32 %v524, %v540
        %v544 = vmul.f32 %v541, %v541
        %v545 = vmul.f32 %v542, %v542
        %v546 = vmul.f32 %v543, %v543
        %v547 = vsel %vm527, %v544, 0.0
        %548 = vadd.xlane.f32.xlu0 %v547
        %v549 = vpop.xlane.xlu0 %548
        %v550 = vsel %vm527, %v545, 0.0
        %551 = vadd.xlane.f32.xlu0 %v550
        %v552 = vpop.xlane.xlu0 %551
        %v553 = vsel %vm527, %v546, 0.0
        %554 = vadd.xlane.f32.xlu0 %v553
        %v555 = vpop.xlane.xlu0 %554
        %v556 = vmul.f32 %v549, %v537
        %v557 = vmul.f32 %v552, %v537
        %v558 = vmul.f32 %v555, %v537
        %v559 = vadd.f32 %v556, 1e-06
        %v560 = vadd.f32 %v557, 1e-06
        %v561 = vadd.f32 %v558, 1e-06
        %v562 = vrsqrt.pop %v559
        %v563 = vrsqrt.pop %v560
        %v564 = vrsqrt.pop %v561
        %v565 = vmul.f32 %v541, %v562
        %v566 = vmul.f32 %v542, %v563
        %v567 = vmul.f32 %v543, %v564
        %v569 = vlaneseq
        %v570 = vshrl.u32 %v569, 7
        %v571 = vsub.s32 0, %v570
        %v572 = vrot.slane %v525, %v571
        %v574 = vmul.f32 %v565, %v572
        %v575 = vmul.f32 %v566, %v572
        %v576 = vmul.f32 %v567, %v572
        %v578 = vlaneseq
        %v579 = vshrl.u32 %v578, 7
        %v580 = vsub.s32 0, %v579
        %v581 = vrot.slane %v526, %v580
        %v583 = vadd.f32 %v574, %v581
        %v584 = vadd.f32 %v575, %v581
        %v585 = vadd.f32 %v576, %v581
        %v586 = vpack.c.bf16 %v584, %v583
        %v587 = vpack.c.bf16 %v585, %v585
        %v588 = vld [vmem:[%s4] sm:$0xff]
        %v589 = vld [vmem:[%s4 + $0x8] sm:$0xff]
        %v590 = vld [vmem:[%s4 + $0x10] sm:$0xff]
        %v591 = vld [vmem:[%s4 + $0x18] sm:$0xff]
        %v592 = vpack.c.bf16 %v589, %v588
        %v593 = vpack.c.bf16 %v591, %v590
        %v594 = vld [vmem:[%s5] sm:$0x1]
        %v596 = vlaneseq
        %v597 = vshrl.u32 %v596, 7
        %v598 = vsub.s32 0, %v597
        %v599 = vrot.slane %v594, %v598
        %v602 = vsel %vm527, %v586, 0
        %v605 = vsel %vm527, %v587, 0
        %607 = vmatprep.subr.bf16.mxu0 0
        %608 = vmatpush1.bf16.msra.mxu0 0
        %609 = vmatprep.subr.bf16.mxu0 0
        %610 = vmatpush1.bf16.msra.mxu0 0
        %611 = vmatprep.subr.bf16.mxu0 0
        %612 = vmatpush1.bf16.msra.mxu0 0
        %613 = vmatprep.subr.bf16.mxu0 0
        %614 = vmatpush1.bf16.msra.mxu0 0
        %615 = vmatprep.subr.bf16.mxu0 0
        %616 = vmatpush1.bf16.msra.mxu0 0
        %617 = vmatprep.subr.bf16.mxu0 0
        %618 = vmatpush1.bf16.msra.mxu0 0
        %619 = vmatprep.subr.bf16.mxu0 0
        %620 = vmatpush1.bf16.msra.mxu0 %v593
        %621 = vmatprep.subr.bf16.mxu0 0
        %622 = vmatpush1.bf16.msra.mxu0 %v592
        %623 = vmatprep.subr.bf16.mxu0 0
        %624 = vmatpush2.bf16.msra.mxu0 0
        %625 = vmatprep.subr.bf16.mxu0 0
        %626 = vmatpush2.bf16.msra.mxu0 0
        %627 = vmatprep.subr.bf16.mxu0 0
        %628 = vmatpush2.bf16.msra.mxu0 0
        %629 = vmatprep.subr.bf16.mxu0 0
        %630 = vmatpush2.bf16.msra.mxu0 0
        %631 = vmatprep.subr.bf16.mxu0 0
        %632 = vmatpush2.bf16.msra.mxu0 0
        %633 = vmatprep.subr.bf16.mxu0 0
        %634 = vmatpush2.bf16.msra.mxu0 0
        %635 = vmatprep.subr.bf16.mxu0 0
        %636 = vmatpush2.bf16.msra.mxu0 0
        %637 = vmatprep.subr.bf16.mxu0 0
        %638 = vmatpush2.bf16.msra.mxu0 0
        %639 = vmatprep.mubr.bf16.mxu0 0
        %640 = vmatmul.mubr.bf16.gmra.mxu0 %v602
        %v641 = vpop.f32.mrf.mxu0
        %v642 = vadd.f32 %v599, %v641
        %v643 = vpop.f32.mrf.mxu0
        %v644 = vpop.f32.mrf.mxu0
        %v645 = vadd.f32 %v599, %v644
        %v646 = vpop.f32.mrf.mxu0
        %647 = vmatprep.mubr.bf16.mxu0 0
        %648 = vmatmul.mubr.bf16.gmra.mxu0 %v605
        %v649 = vpop.f32.mrf.mxu0
        %v650 = vadd.f32 %v599, %v649
        %v651 = vpop.f32.mrf.mxu0
        %v652 = vpop.f32.mrf.mxu0
        %v653 = vpop.f32.mrf.mxu0
        %654 = vdwg.mxu0
        %v655 = vpack.c.bf16 %v645, %v642
        %v656 = vpack.c.bf16 %v650, %v650
        %659 = vrot.lane.b32.xlu0 %v655, 96
        %v660 = vpop.permute.xlu0 %659
        %661 = vrot.lane.b32.xlu0 %v656, 96
        %v662 = vpop.permute.xlu0 %661
        %vm663 = vcmask 31744
        %v665 = vsel %vm663, %v655, 0
        %v668 = vsel %vm663, %v656, 0
        %v671 = vsel %vm663, %v660, 0
        %v674 = vsel %vm663, %v662, 0
        %676 = vmatprep.subr.bf16.mxu0 0
        %677 = vmatpush1.bf16.xpose.msra.mxu0 0
        %678 = vmatprep.subr.bf16.mxu0 0
        %679 = vmatpush1.bf16.xpose.msra.mxu0 0
        %680 = vmatprep.subr.bf16.mxu0 0
        %681 = vmatpush1.bf16.xpose.msra.mxu0 0
        %682 = vmatprep.subr.bf16.mxu0 0
        %683 = vmatpush1.bf16.xpose.msra.mxu0 0
        %684 = vmatprep.subr.bf16.mxu0 0
        %685 = vmatpush1.bf16.xpose.msra.mxu0 0
        %686 = vmatprep.subr.bf16.mxu0 0
        %687 = vmatpush1.bf16.xpose.msra.mxu0 0
        %688 = vmatprep.subr.bf16.mxu0 0
        %689 = vmatpush1.bf16.xpose.msra.mxu0 %v674
        %690 = vmatprep.subr.bf16.mxu0 0
        %691 = vmatpush1.bf16.xpose.msra.mxu0 %v671
        %692 = vmatprep.subr.bf16.mxu0 0
        %693 = vmatpush2.bf16.xpose.msra.mxu0 0
        %694 = vmatprep.subr.bf16.mxu0 0
        %695 = vmatpush2.bf16.xpose.msra.mxu0 0
        %696 = vmatprep.subr.bf16.mxu0 0
        %697 = vmatpush2.bf16.xpose.msra.mxu0 0
        %698 = vmatprep.subr.bf16.mxu0 0
        %699 = vmatpush2.bf16.xpose.msra.mxu0 0
        %700 = vmatprep.subr.bf16.mxu0 0
        %701 = vmatpush2.bf16.xpose.msra.mxu0 0
        %702 = vmatprep.subr.bf16.mxu0 0
        %703 = vmatpush2.bf16.xpose.msra.mxu0 0
        %704 = vmatprep.subr.bf16.mxu0 0
        %705 = vmatpush2.bf16.xpose.msra.mxu0 0
        %706 = vmatprep.subr.bf16.mxu0 0
        %707 = vmatpush2.bf16.xpose.msra.mxu0 0
        %708 = vmatprep.mubr.bf16.mxu0 0
        %709 = vmatmul.mubr.bf16.gmra.mxu0 %v665
        %v710 = vpop.f32.mrf.mxu0
        %v711 = vadd.f32 0.0, %v710
        %v712 = vpop.f32.mrf.mxu0
        %v713 = vpop.f32.mrf.mxu0
        %v714 = vadd.f32 0.0, %v713
        %v715 = vpop.f32.mrf.mxu0
        %716 = vmatprep.mubr.bf16.mxu0 0
        %717 = vmatmul.mubr.bf16.gmra.mxu0 %v668
        %v718 = vpop.f32.mrf.mxu0
        %v719 = vadd.f32 0.0, %v718
        %v720 = vpop.f32.mrf.mxu0
        %v721 = vpop.f32.mrf.mxu0
        %v722 = vpop.f32.mrf.mxu0
        %723 = vdwg.mxu0
        %v724 = vmul.f32 %v711, 0.5
        %v725 = vmul.f32 %v714, 0.5
        %v726 = vmul.f32 %v719, 0.5
        %vm727 = vcmask 195584
        %v728 = vsel %vm727, %v724, -inf
        %729 = vmax.xlane.f32.xlu0 %v728
        %v730 = vpop.xlane.xlu0 %729
        %v731 = vsel %vm727, %v725, -inf
        %732 = vmax.xlane.f32.xlu0 %v731
        %v733 = vpop.xlane.xlu0 %732
        %v734 = vsel %vm727, %v726, -inf
        %735 = vmax.xlane.f32.xlu0 %v734
        %v736 = vpop.xlane.xlu0 %735
        %v737 = vsub.f32 %v724, %v730
        %v738 = vsub.f32 %v725, %v733
        %v739 = vsub.f32 %v726, %v736
        %v740 = vmul.f32 %v737, 1.442695
        %v741 = vpow.pop %v740
        %v742 = vmul.f32 %v738, 1.442695
        %v743 = vpow.pop %v742
        %v744 = vmul.f32 %v739, 1.442695
        %v745 = vpow.pop %v744
        %v746 = vsel %vm727, %v741, 0.0
        %747 = vadd.xlane.f32.xlu0 %v746
        %v748 = vpop.xlane.xlu0 %747
        %v749 = vsel %vm727, %v743, 0.0
        %750 = vadd.xlane.f32.xlu0 %v749
        %v751 = vpop.xlane.xlu0 %750
        %v752 = vsel %vm727, %v745, 0.0
        %753 = vadd.xlane.f32.xlu0 %v752
        %v754 = vpop.xlane.xlu0 %753
        %v755 = vrcp.pop %v748
        %v756 = vmul.f32 %v741, %v755
        %v757 = vrcp.pop %v751
        %v758 = vmul.f32 %v743, %v757
        %v759 = vrcp.pop %v754
        %v760 = vmul.f32 %v745, %v759
        %v761 = vpack.c.bf16 %v758, %v756
        %v762 = vpack.c.bf16 %v760, %v760
        %763 = vrot.lane.b32.xlu0 %v655, 64
        %v764 = vpop.permute.xlu0 %763
        %765 = vrot.lane.b32.xlu0 %v656, 64
        %v766 = vpop.permute.xlu0 %765
        %v769 = vsel %vm727, %v761, 0
        %v772 = vsel %vm727, %v762, 0
        %vm774 = vcmask 1043456
        %v776 = vsel %vm774, %v766, 0
        %778 = vmatprep.subr.bf16.mxu0 0
        %779 = vmatpush1.bf16.msra.mxu0 0
        %780 = vmatprep.subr.bf16.mxu0 0
        %781 = vmatpush1.bf16.msra.mxu0 0
        %782 = vmatprep.subr.bf16.mxu0 0
        %783 = vmatpush1.bf16.msra.mxu0 0
        %784 = vmatprep.subr.bf16.mxu0 0
        %785 = vmatpush1.bf16.msra.mxu0 0
        %786 = vmatprep.subr.bf16.mxu0 0
        %787 = vmatpush1.bf16.msra.mxu0 0
        %788 = vmatprep.subr.bf16.mxu0 0
        %789 = vmatpush1.bf16.msra.mxu0 0
        %790 = vmatprep.subr.bf16.mxu0 0
        %791 = vmatpush1.bf16.msra.mxu0 %v776
        %792 = vmatprep.subr.bf16.mxu0 0
        %793 = vmatpush1.bf16.msra.mxu0 %v764
        %794 = vmatprep.subr.bf16.mxu0 0
        %795 = vmatpush2.bf16.msra.mxu0 0
        %796 = vmatprep.subr.bf16.mxu0 0
        %797 = vmatpush2.bf16.msra.mxu0 0
        %798 = vmatprep.subr.bf16.mxu0 0
        %799 = vmatpush2.bf16.msra.mxu0 0
        %800 = vmatprep.subr.bf16.mxu0 0
        %801 = vmatpush2.bf16.msra.mxu0 0
        %802 = vmatprep.subr.bf16.mxu0 0
        %803 = vmatpush2.bf16.msra.mxu0 0
        %804 = vmatprep.subr.bf16.mxu0 0
        %805 = vmatpush2.bf16.msra.mxu0 0
        %806 = vmatprep.subr.bf16.mxu0 0
        %807 = vmatpush2.bf16.msra.mxu0 0
        %808 = vmatprep.subr.bf16.mxu0 0
        %809 = vmatpush2.bf16.msra.mxu0 0
        %810 = vmatprep.mubr.bf16.mxu0 0
        %811 = vmatmul.mubr.bf16.gmra.mxu0 %v769
        %v812 = vpop.f32.mrf.mxu0
        %v813 = vadd.f32 0.0, %v812
        %v814 = vpop.f32.mrf.mxu0
        %v815 = vpop.f32.mrf.mxu0
        %v816 = vadd.f32 0.0, %v815
        %v817 = vpop.f32.mrf.mxu0
        %818 = vmatprep.mubr.bf16.mxu0 0
        %819 = vmatmul.mubr.bf16.gmra.mxu0 %v772
        %v820 = vpop.f32.mrf.mxu0
        %v821 = vadd.f32 0.0, %v820
        %v822 = vpop.f32.mrf.mxu0
        %v823 = vpop.f32.mrf.mxu0
        %v824 = vpop.f32.mrf.mxu0
        %825 = vdwg.mxu0
        %826 = vst.msk [vmem:[#allocation2] sm:$0xff] %vm663, %v813
        %827 = vst.msk [vmem:[#allocation2 + $0x8] sm:$0xff] %vm663, %v816
        %828 = vst.msk [vmem:[#allocation2 + $0x10] sm:$0xff] %vm663, %v821
        %829 = vrot.lane.b32.xlu0 %v655, 124
        %v830 = vpop.permute.xlu0 %829
        %831 = vrot.lane.b32.xlu0 %v656, 124
        %v832 = vpop.permute.xlu0 %831
        %833 = vrot.lane.b32.xlu0 %v655, 92
        %v834 = vpop.permute.xlu0 %833
        %835 = vrot.lane.b32.xlu0 %v656, 92
        %v836 = vpop.permute.xlu0 %835
        %v838 = vsel %vm663, %v830, 0
        %v841 = vsel %vm663, %v832, 0
        %v844 = vsel %vm663, %v834, 0
        %v847 = vsel %vm663, %v836, 0
        %849 = vmatprep.subr.bf16.mxu0 0
        %850 = vmatpush1.bf16.xpose.msra.mxu0 0
        %851 = vmatprep.subr.bf16.mxu0 0
        %852 = vmatpush1.bf16.xpose.msra.mxu0 0
        %853 = vmatprep.subr.bf16.mxu0 0
        %854 = vmatpush1.bf16.xpose.msra.mxu0 0
        %855 = vmatprep.subr.bf16.mxu0 0
        %856 = vmatpush1.bf16.xpose.msra.mxu0 0
        %857 = vmatprep.subr.bf16.mxu0 0
        %858 = vmatpush1.bf16.xpose.msra.mxu0 0
        %859 = vmatprep.subr.bf16.mxu0 0
        %860 = vmatpush1.bf16.xpose.msra.mxu0 0
        %861 = vmatprep.subr.bf16.mxu0 0
        %862 = vmatpush1.bf16.xpose.msra.mxu0 %v847
        %863 = vmatprep.subr.bf16.mxu0 0
        %864 = vmatpush1.bf16.xpose.msra.mxu0 %v844
        %865 = vmatprep.subr.bf16.mxu0 0
        %866 = vmatpush2.bf16.xpose.msra.mxu0 0
        %867 = vmatprep.subr.bf16.mxu0 0
        %868 = vmatpush2.bf16.xpose.msra.mxu0 0
        %869 = vmatprep.subr.bf16.mxu0 0
        %870 = vmatpush2.bf16.xpose.msra.mxu0 0
        %871 = vmatprep.subr.bf16.mxu0 0
        %872 = vmatpush2.bf16.xpose.msra.mxu0 0
        %873 = vmatprep.subr.bf16.mxu0 0
        %874 = vmatpush2.bf16.xpose.msra.mxu0 0
        %875 = vmatprep.subr.bf16.mxu0 0
        %876 = vmatpush2.bf16.xpose.msra.mxu0 0
        %877 = vmatprep.subr.bf16.mxu0 0
        %878 = vmatpush2.bf16.xpose.msra.mxu0 0
        %879 = vmatprep.subr.bf16.mxu0 0
        %880 = vmatpush2.bf16.xpose.msra.mxu0 0
        %881 = vmatprep.mubr.bf16.mxu0 0
        %882 = vmatmul.mubr.bf16.gmra.mxu0 %v838
        %v883 = vpop.f32.mrf.mxu0
        %v884 = vadd.f32 0.0, %v883
        %v885 = vpop.f32.mrf.mxu0
        %v886 = vpop.f32.mrf.mxu0
        %v887 = vadd.f32 0.0, %v886
        %v888 = vpop.f32.mrf.mxu0
        %889 = vmatprep.mubr.bf16.mxu0 0
        %890 = vmatmul.mubr.bf16.gmra.mxu0 %v841
        %v891 = vpop.f32.mrf.mxu0
        %v892 = vadd.f32 0.0, %v891
        %v893 = vpop.f32.mrf.mxu0
        %v894 = vpop.f32.mrf.mxu0
        %v895 = vpop.f32.mrf.mxu0
        %896 = vdwg.mxu0
        %v897 = vmul.f32 %v884, 0.5
        %v898 = vmul.f32 %v887, 0.5
        %v899 = vmul.f32 %v892, 0.5
        %v900 = vsel %vm727, %v897, -inf
        %901 = vmax.xlane.f32.xlu0 %v900
        %v902 = vpop.xlane.xlu0 %901
        %v903 = vsel %vm727, %v898, -inf
        %904 = vmax.xlane.f32.xlu0 %v903
        %v905 = vpop.xlane.xlu0 %904
        %v906 = vsel %vm727, %v899, -inf
        %907 = vmax.xlane.f32.xlu0 %v906
        %v908 = vpop.xlane.xlu0 %907
        %v909 = vsub.f32 %v897, %v902
        %v910 = vsub.f32 %v898, %v905
        %v911 = vsub.f32 %v899, %v908
        %v912 = vmul.f32 %v909, 1.442695
        %v913 = vpow.pop %v912
        %v914 = vmul.f32 %v910, 1.442695
        %v915 = vpow.pop %v914
        %v916 = vmul.f32 %v911, 1.442695
        %v917 = vpow.pop %v916
        %v918 = vsel %vm727, %v913, 0.0
        %919 = vadd.xlane.f32.xlu0 %v918
        %v920 = vpop.xlane.xlu0 %919
        %v921 = vsel %vm727, %v915, 0.0
        %922 = vadd.xlane.f32.xlu0 %v921
        %v923 = vpop.xlane.xlu0 %922
        %v924 = vsel %vm727, %v917, 0.0
        %925 = vadd.xlane.f32.xlu0 %v924
        %v926 = vpop.xlane.xlu0 %925
        %v927 = vrcp.pop %v920
        %v928 = vmul.f32 %v913, %v927
        %v929 = vrcp.pop %v923
        %v930 = vmul.f32 %v915, %v929
        %v931 = vrcp.pop %v926
        %v932 = vmul.f32 %v917, %v931
        %v933 = vpack.c.bf16 %v930, %v928
        %v934 = vpack.c.bf16 %v932, %v932
        %935 = vrot.lane.b32.xlu0 %v655, 60
        %v936 = vpop.permute.xlu0 %935
        %937 = vrot.lane.b32.xlu0 %v656, 60
        %v938 = vpop.permute.xlu0 %937
        %v941 = vsel %vm727, %v933, 0
        %v944 = vsel %vm727, %v934, 0
        %v947 = vsel %vm774, %v938, 0
        %949 = vmatprep.subr.bf16.mxu0 0
        %950 = vmatpush1.bf16.msra.mxu0 0
        %951 = vmatprep.subr.bf16.mxu0 0
        %952 = vmatpush1.bf16.msra.mxu0 0
        %953 = vmatprep.subr.bf16.mxu0 0
        %954 = vmatpush1.bf16.msra.mxu0 0
        %955 = vmatprep.subr.bf16.mxu0 0
        %956 = vmatpush1.bf16.msra.mxu0 0
        %957 = vmatprep.subr.bf16.mxu0 0
        %958 = vmatpush1.bf16.msra.mxu0 0
        %959 = vmatprep.subr.bf16.mxu0 0
        %960 = vmatpush1.bf16.msra.mxu0 0
        %961 = vmatprep.subr.bf16.mxu0 0
        %962 = vmatpush1.bf16.msra.mxu0 %v947
        %963 = vmatprep.subr.bf16.mxu0 0
        %964 = vmatpush1.bf16.msra.mxu0 %v936
        %965 = vmatprep.subr.bf16.mxu0 0
        %966 = vmatpush2.bf16.msra.mxu0 0
        %967 = vmatprep.subr.bf16.mxu0 0
        %968 = vmatpush2.bf16.msra.mxu0 0
        %969 = vmatprep.subr.bf16.mxu0 0
        %970 = vmatpush2.bf16.msra.mxu0 0
        %971 = vmatprep.subr.bf16.mxu0 0
        %972 = vmatpush2.bf16.msra.mxu0 0
        %973 = vmatprep.subr.bf16.mxu0 0
        %974 = vmatpush2.bf16.msra.mxu0 0
        %975 = vmatprep.subr.bf16.mxu0 0
        %976 = vmatpush2.bf16.msra.mxu0 0
        %977 = vmatprep.subr.bf16.mxu0 0
        %978 = vmatpush2.bf16.msra.mxu0 0
        %979 = vmatprep.subr.bf16.mxu0 0
        %980 = vmatpush2.bf16.msra.mxu0 0
        %981 = vmatprep.mubr.bf16.mxu0 0
        %982 = vmatmul.mubr.bf16.gmra.mxu0 %v941
        %v983 = vpop.f32.mrf.mxu0
        %v984 = vadd.f32 0.0, %v983
        %v985 = vpop.f32.mrf.mxu0
        %v986 = vpop.f32.mrf.mxu0
        %v987 = vadd.f32 0.0, %v986
        %v988 = vpop.f32.mrf.mxu0
        %989 = vmatprep.mubr.bf16.mxu0 0
        %990 = vmatmul.mubr.bf16.gmra.mxu0 %v944
        %v991 = vpop.f32.mrf.mxu0
        %v992 = vadd.f32 0.0, %v991
        %v993 = vpop.f32.mrf.mxu0
        %v994 = vpop.f32.mrf.mxu0
        %v995 = vpop.f32.mrf.mxu0
        %996 = vdwg.mxu0
        %1000 = vrot.lane.b32.xlu0 %v984, 4
        %v1001 = vpop.permute.xlu0 %1000
        %1002 = vrot.lane.b32.xlu0 %v987, 4
        %v1003 = vpop.permute.xlu0 %1002
        %1004 = vrot.lane.b32.xlu0 %v992, 4
        %v1005 = vpop.permute.xlu0 %1004
        %vm1009 = vcmask 64544
        %1010 = vst.msk [vmem:[#allocation2] sm:$0xff] %vm1009, %v1001
        %1011 = vst.msk [vmem:[#allocation2 + $0x8] sm:$0xff] %vm1009, %v1003
        %1012 = vst.msk [vmem:[#allocation2 + $0x10] sm:$0xff] %vm1009, %v1005
        %1013 = vrot.lane.b32.xlu0 %v655, 120
        %v1014 = vpop.permute.xlu0 %1013
        %1015 = vrot.lane.b32.xlu0 %v656, 120
        %v1016 = vpop.permute.xlu0 %1015
        %1017 = vrot.lane.b32.xlu0 %v655, 88
        %v1018 = vpop.permute.xlu0 %1017
        %1019 = vrot.lane.b32.xlu0 %v656, 88
        %v1020 = vpop.permute.xlu0 %1019
        %v1022 = vsel %vm663, %v1014, 0
        %v1025 = vsel %vm663, %v1016, 0
        %v1028 = vsel %vm663, %v1018, 0
        %v1031 = vsel %vm663, %v1020, 0
        %1033 = vmatprep.subr.bf16.mxu0 0
        %1034 = vmatpush1.bf16.xpose.msra.mxu0 0
        %1035 = vmatprep.subr.bf16.mxu0 0
        %1036 = vmatpush1.bf16.xpose.msra.mxu0 0
        %1037 = vmatprep.subr.bf16.mxu0 0
        %1038 = vmatpush1.bf16.xpose.msra.mxu0 0
        %1039 = vmatprep.subr.bf16.mxu0 0
        %1040 = vmatpush1.bf16.xpose.msra.mxu0 0
        %1041 = vmatprep.subr.bf16.mxu0 0
        %1042 = vmatpush1.bf16.xpose.msra.mxu0 0
        %1043 = vmatprep.subr.bf16.mxu0 0
        %1044 = vmatpush1.bf16.xpose.msra.mxu0 0
        %1045 = vmatprep.subr.bf16.mxu0 0
        %1046 = vmatpush1.bf16.xpose.msra.mxu0 %v1031
        %1047 = vmatprep.subr.bf16.mxu0 0
        %1048 = vmatpush1.bf16.xpose.msra.mxu0 %v1028
        %1049 = vmatprep.subr.bf16.mxu0 0
        %1050 = vmatpush2.bf16.xpose.msra.mxu0 0
        %1051 = vmatprep.subr.bf16.mxu0 0
        %1052 = vmatpush2.bf16.xpose.msra.mxu0 0
        %1053 = vmatprep.subr.bf16.mxu0 0
        %1054 = vmatpush2.bf16.xpose.msra.mxu0 0
        %1055 = vmatprep.subr.bf16.mxu0 0
        %1056 = vmatpush2.bf16.xpose.msra.mxu0 0
        %1057 = vmatprep.subr.bf16.mxu0 0
        %1058 = vmatpush2.bf16.xpose.msra.mxu0 0
        %1059 = vmatprep.subr.bf16.mxu0 0
        %1060 = vmatpush2.bf16.xpose.msra.mxu0 0
        %1061 = vmatprep.subr.bf16.mxu0 0
        %1062 = vmatpush2.bf16.xpose.msra.mxu0 0
        %1063 = vmatprep.subr.bf16.mxu0 0
        %1064 = vmatpush2.bf16.xpose.msra.mxu0 0
        %1065 = vmatprep.mubr.bf16.mxu0 0
        %1066 = vmatmul.mubr.bf16.gmra.mxu0 %v1022
        %v1067 = vpop.f32.mrf.mxu0
        %v1068 = vadd.f32 0.0, %v1067
        %v1069 = vpop.f32.mrf.mxu0
        %v1070 = vpop.f32.mrf.mxu0
        %v1071 = vadd.f32 0.0, %v1070
        %v1072 = vpop.f32.mrf.mxu0
        %1073 = vmatprep.mubr.bf16.mxu0 0
        %1074 = vmatmul.mubr.bf16.gmra.mxu0 %v1025
        %v1075 = vpop.f32.mrf.mxu0
        %v1076 = vadd.f32 0.0, %v1075
        %v1077 = vpop.f32.mrf.mxu0
        %v1078 = vpop.f32.mrf.mxu0
        %v1079 = vpop.f32.mrf.mxu0
        %1080 = vdwg.mxu0
        %v1081 = vmul.f32 %v1068, 0.5
        %v1082 = vmul.f32 %v1071, 0.5
        %v1083 = vmul.f32 %v1076, 0.5
        %v1084 = vsel %vm727, %v1081, -inf
        %1085 = vmax.xlane.f32.xlu0 %v1084
        %v1086 = vpop.xlane.xlu0 %1085
        %v1087 = vsel %vm727, %v1082, -inf
        %1088 = vmax.xlane.f32.xlu0 %v1087
        %v1089 = vpop.xlane.xlu0 %1088
        %v1090 = vsel %vm727, %v1083, -inf
        %1091 = vmax.xlane.f32.xlu0 %v1090
        %v1092 = vpop.xlane.xlu0 %1091
        %v1093 = vsub.f32 %v1081, %v1086
        %v1094 = vsub.f32 %v1082, %v1089
        %v1095 = vsub.f32 %v1083, %v1092
        %v1096 = vmul.f32 %v1093, 1.442695
        %v1097 = vpow.pop %v1096
        %v1098 = vmul.f32 %v1094, 1.442695
        %v1099 = vpow.pop %v1098
        %v1100 = vmul.f32 %v1095, 1.442695
        %v1101 = vpow.pop %v1100
        %v1102 = vsel %vm727, %v1097, 0.0
        %1103 = vadd.xlane.f32.xlu0 %v1102
        %v1104 = vpop.xlane.xlu0 %1103
        %v1105 = vsel %vm727, %v1099, 0.0
        %1106 = vadd.xlane.f32.xlu0 %v1105
        %v1107 = vpop.xlane.xlu0 %1106
        %v1108 = vsel %vm727, %v1101, 0.0
        %1109 = vadd.xlane.f32.xlu0 %v1108
        %v1110 = vpop.xlane.xlu0 %1109
        %v1111 = vrcp.pop %v1104
        %v1112 = vmul.f32 %v1097, %v1111
        %v1113 = vrcp.pop %v1107
        %v1114 = vmul.f32 %v1099, %v1113
        %v1115 = vrcp.pop %v1110
        %v1116 = vmul.f32 %v1101, %v1115
        %v1117 = vpack.c.bf16 %v1114, %v1112
        %v1118 = vpack.c.bf16 %v1116, %v1116
        %1119 = vrot.lane.b32.xlu0 %v655, 56
        %v1120 = vpop.permute.xlu0 %1119
        %1121 = vrot.lane.b32.xlu0 %v656, 56
        %v1122 = vpop.permute.xlu0 %1121
        %v1125 = vsel %vm727, %v1117, 0
        %v1128 = vsel %vm727, %v1118, 0
        %v1131 = vsel %vm774, %v1122, 0
        %1133 = vmatprep.subr.bf16.mxu0 0
        %1134 = vmatpush1.bf16.msra.mxu0 0
        %1135 = vmatprep.subr.bf16.mxu0 0
        %1136 = vmatpush1.bf16.msra.mxu0 0
        %1137 = vmatprep.subr.bf16.mxu0 0
        %1138 = vmatpush1.bf16.msra.mxu0 0
        %1139 = vmatprep.subr.bf16.mxu0 0
        %1140 = vmatpush1.bf16.msra.mxu0 0
        %1141 = vmatprep.subr.bf16.mxu0 0
        %1142 = vmatpush1.bf16.msra.mxu0 0
        %1143 = vmatprep.subr.bf16.mxu0 0
        %1144 = vmatpush1.bf16.msra.mxu0 0
        %1145 = vmatprep.subr.bf16.mxu0 0
        %1146 = vmatpush1.bf16.msra.mxu0 %v1131
        %1147 = vmatprep.subr.bf16.mxu0 0
        %1148 = vmatpush1.bf16.msra.mxu0 %v1120
        %1149 = vmatprep.subr.bf16.mxu0 0
        %1150 = vmatpush2.bf16.msra.mxu0 0
        %1151 = vmatprep.subr.bf16.mxu0 0
        %1152 = vmatpush2.bf16.msra.mxu0 0
        %1153 = vmatprep.subr.bf16.mxu0 0
        %1154 = vmatpush2.bf16.msra.mxu0 0
        %1155 = vmatprep.subr.bf16.mxu0 0
        %1156 = vmatpush2.bf16.msra.mxu0 0
        %1157 = vmatprep.subr.bf16.mxu0 0
        %1158 = vmatpush2.bf16.msra.mxu0 0
        %1159 = vmatprep.subr.bf16.mxu0 0
        %1160 = vmatpush2.bf16.msra.mxu0 0
        %1161 = vmatprep.subr.bf16.mxu0 0
        %1162 = vmatpush2.bf16.msra.mxu0 0
        %1163 = vmatprep.subr.bf16.mxu0 0
        %1164 = vmatpush2.bf16.msra.mxu0 0
        %1165 = vmatprep.mubr.bf16.mxu0 0
        %1166 = vmatmul.mubr.bf16.gmra.mxu0 %v1125
        %v1167 = vpop.f32.mrf.mxu0
        %v1168 = vadd.f32 0.0, %v1167
        %v1169 = vpop.f32.mrf.mxu0
        %v1170 = vpop.f32.mrf.mxu0
        %v1171 = vadd.f32 0.0, %v1170
        %v1172 = vpop.f32.mrf.mxu0
        %1173 = vmatprep.mubr.bf16.mxu0 0
        %1174 = vmatmul.mubr.bf16.gmra.mxu0 %v1128
        %v1175 = vpop.f32.mrf.mxu0
        %v1176 = vadd.f32 0.0, %v1175
        %v1177 = vpop.f32.mrf.mxu0
        %v1178 = vpop.f32.mrf.mxu0
        %v1179 = vpop.f32.mrf.mxu0
        %1180 = vdwg.mxu0
        %1184 = vrot.lane.b32.xlu0 %v1168, 8
        %v1185 = vpop.permute.xlu0 %1184
        %1186 = vrot.lane.b32.xlu0 %v1171, 8
        %v1187 = vpop.permute.xlu0 %1186
        %1188 = vrot.lane.b32.xlu0 %v1176, 8
        %v1189 = vpop.permute.xlu0 %1188
        %vm1193 = vcmask 97344
        %1194 = vst.msk [vmem:[#allocation2] sm:$0xff] %vm1193, %v1185
        %1195 = vst.msk [vmem:[#allocation2 + $0x8] sm:$0xff] %vm1193, %v1187
        %1196 = vst.msk [vmem:[#allocation2 + $0x10] sm:$0xff] %vm1193, %v1189
        %1197 = vrot.lane.b32.xlu0 %v655, 116
        %v1198 = vpop.permute.xlu0 %1197
        %1199 = vrot.lane.b32.xlu0 %v656, 116
        %v1200 = vpop.permute.xlu0 %1199
        %1201 = vrot.lane.b32.xlu0 %v655, 84
        %v1202 = vpop.permute.xlu0 %1201
        %1203 = vrot.lane.b32.xlu0 %v656, 84
        %v1204 = vpop.permute.xlu0 %1203
        %v1206 = vsel %vm663, %v1198, 0
        %v1209 = vsel %vm663, %v1200, 0
        %v1212 = vsel %vm663, %v1202, 0
        %v1215 = vsel %vm663, %v1204, 0
        %1217 = vmatprep.subr.bf16.mxu0 0
        %1218 = vmatpush1.bf16.xpose.msra.mxu0 0
        %1219 = vmatprep.subr.bf16.mxu0 0
        %1220 = vmatpush1.bf16.xpose.msra.mxu0 0
        %1221 = vmatprep.subr.bf16.mxu0 0
        %1222 = vmatpush1.bf16.xpose.msra.mxu0 0
        %1223 = vmatprep.subr.bf16.mxu0 0
        %1224 = vmatpush1.bf16.xpose.msra.mxu0 0
        %1225 = vmatprep.subr.bf16.mxu0 0
        %1226 = vmatpush1.bf16.xpose.msra.mxu0 0
        %1227 = vmatprep.subr.bf16.mxu0 0
        %1228 = vmatpush1.bf16.xpose.msra.mxu0 0
        %1229 = vmatprep.subr.bf16.mxu0 0
        %1230 = vmatpush1.bf16.xpose.msra.mxu0 %v1215
        %1231 = vmatprep.subr.bf16.mxu0 0
        %1232 = vmatpush1.bf16.xpose.msra.mxu0 %v1212
        %1233 = vmatprep.subr.bf16.mxu0 0
        %1234 = vmatpush2.bf16.xpose.msra.mxu0 0
        %1235 = vmatprep.subr.bf16.mxu0 0
        %1236 = vmatpush2.bf16.xpose.msra.mxu0 0
        %1237 = vmatprep.subr.bf16.mxu0 0
        %1238 = vmatpush2.bf16.xpose.msra.mxu0 0
        %1239 = vmatprep.subr.bf16.mxu0 0
        %1240 = vmatpush2.bf16.xpose.msra.mxu0 0
        %1241 = vmatprep.subr.bf16.mxu0 0
        %1242 = vmatpush2.bf16.xpose.msra.mxu0 0
        %1243 = vmatprep.subr.bf16.mxu0 0
        %1244 = vmatpush2.bf16.xpose.msra.mxu0 0
        %1245 = vmatprep.subr.bf16.mxu0 0
        %1246 = vmatpush2.bf16.xpose.msra.mxu0 0
        %1247 = vmatprep.subr.bf16.mxu0 0
        %1248 = vmatpush2.bf16.xpose.msra.mxu0 0
        %1249 = vmatprep.mubr.bf16.mxu0 0
        %1250 = vmatmul.mubr.bf16.gmra.mxu0 %v1206
        %v1251 = vpop.f32.mrf.mxu0
        %v1252 = vadd.f32 0.0, %v1251
        %v1253 = vpop.f32.mrf.mxu0
        %v1254 = vpop.f32.mrf.mxu0
        %v1255 = vadd.f32 0.0, %v1254
        %v1256 = vpop.f32.mrf.mxu0
        %1257 = vmatprep.mubr.bf16.mxu0 0
        %1258 = vmatmul.mubr.bf16.gmra.mxu0 %v1209
        %v1259 = vpop.f32.mrf.mxu0
        %v1260 = vadd.f32 0.0, %v1259
        %v1261 = vpop.f32.mrf.mxu0
        %v1262 = vpop.f32.mrf.mxu0
        %v1263 = vpop.f32.mrf.mxu0
        %1264 = vdwg.mxu0
        %v1265 = vmul.f32 %v1252, 0.5
        %v1266 = vmul.f32 %v1255, 0.5
        %v1267 = vmul.f32 %v1260, 0.5
        %v1268 = vsel %vm727, %v1265, -inf
        %1269 = vmax.xlane.f32.xlu0 %v1268
        %v1270 = vpop.xlane.xlu0 %1269
        %v1271 = vsel %vm727, %v1266, -inf
        %1272 = vmax.xlane.f32.xlu0 %v1271
        %v1273 = vpop.xlane.xlu0 %1272
        %v1274 = vsel %vm727, %v1267, -inf
        %1275 = vmax.xlane.f32.xlu0 %v1274
        %v1276 = vpop.xlane.xlu0 %1275
        %v1277 = vsub.f32 %v1265, %v1270
        %v1278 = vsub.f32 %v1266, %v1273
        %v1279 = vsub.f32 %v1267, %v1276
        %v1280 = vmul.f32 %v1277, 1.442695
        %v1281 = vpow.pop %v1280
        %v1282 = vmul.f32 %v1278, 1.442695
        %v1283 = vpow.pop %v1282
        %v1284 = vmul.f32 %v1279, 1.442695
        %v1285 = vpow.pop %v1284
        %v1286 = vsel %vm727, %v1281, 0.0
        %1287 = vadd.xlane.f32.xlu0 %v1286
        %v1288 = vpop.xlane.xlu0 %1287
        %v1289 = vsel %vm727, %v1283, 0.0
        %1290 = vadd.xlane.f32.xlu0 %v1289
        %v1291 = vpop.xlane.xlu0 %1290
        %v1292 = vsel %vm727, %v1285, 0.0
        %1293 = vadd.xlane.f32.xlu0 %v1292
        %v1294 = vpop.xlane.xlu0 %1293
        %v1295 = vrcp.pop %v1288
        %v1296 = vmul.f32 %v1281, %v1295
        %v1297 = vrcp.pop %v1291
        %v1298 = vmul.f32 %v1283, %v1297
        %v1299 = vrcp.pop %v1294
        %v1300 = vmul.f32 %v1285, %v1299
        %v1301 = vpack.c.bf16 %v1298, %v1296
        %v1302 = vpack.c.bf16 %v1300, %v1300
        %1303 = vrot.lane.b32.xlu0 %v655, 52
        %v1304 = vpop.permute.xlu0 %1303
        %1305 = vrot.lane.b32.xlu0 %v656, 52
        %v1306 = vpop.permute.xlu0 %1305
        %v1309 = vsel %vm727, %v1301, 0
        %v1312 = vsel %vm727, %v1302, 0
        %v1315 = vsel %vm774, %v1306, 0
        %1317 = vmatprep.subr.bf16.mxu0 0
        %1318 = vmatpush1.bf16.msra.mxu0 0
        %1319 = vmatprep.subr.bf16.mxu0 0
        %1320 = vmatpush1.bf16.msra.mxu0 0
        %1321 = vmatprep.subr.bf16.mxu0 0
        %1322 = vmatpush1.bf16.msra.mxu0 0
        %1323 = vmatprep.subr.bf16.mxu0 0
        %1324 = vmatpush1.bf16.msra.mxu0 0
        %1325 = vmatprep.subr.bf16.mxu0 0
        %1326 = vmatpush1.bf16.msra.mxu0 0
        %1327 = vmatprep.subr.bf16.mxu0 0
        %1328 = vmatpush1.bf16.msra.mxu0 0
        %1329 = vmatprep.subr.bf16.mxu0 0
        %1330 = vmatpush1.bf16.msra.mxu0 %v1315
        %1331 = vmatprep.subr.bf16.mxu0 0
        %1332 = vmatpush1.bf16.msra.mxu0 %v1304
        %1333 = vmatprep.subr.bf16.mxu0 0
        %1334 = vmatpush2.bf16.msra.mxu0 0
        %1335 = vmatprep.subr.bf16.mxu0 0
        %1336 = vmatpush2.bf16.msra.mxu0 0
        %1337 = vmatprep.subr.bf16.mxu0 0
        %1338 = vmatpush2.bf16.msra.mxu0 0
        %1339 = vmatprep.subr.bf16.mxu0 0
        %1340 = vmatpush2.bf16.msra.mxu0 0
        %1341 = vmatprep.subr.bf16.mxu0 0
        %1342 = vmatpush2.bf16.msra.mxu0 0
        %1343 = vmatprep.subr.bf16.mxu0 0
        %1344 = vmatpush2.bf16.msra.mxu0 0
        %1345 = vmatprep.subr.bf16.mxu0 0
        %1346 = vmatpush2.bf16.msra.mxu0 0
        %1347 = vmatprep.subr.bf16.mxu0 0
        %1348 = vmatpush2.bf16.msra.mxu0 0
        %1349 = vmatprep.mubr.bf16.mxu0 0
        %1350 = vmatmul.mubr.bf16.gmra.mxu0 %v1309
        %v1351 = vpop.f32.mrf.mxu0
        %v1352 = vadd.f32 0.0, %v1351
        %v1353 = vpop.f32.mrf.mxu0
        %v1354 = vpop.f32.mrf.mxu0
        %v1355 = vadd.f32 0.0, %v1354
        %v1356 = vpop.f32.mrf.mxu0
        %1357 = vmatprep.mubr.bf16.mxu0 0
        %1358 = vmatmul.mubr.bf16.gmra.mxu0 %v1312
        %v1359 = vpop.f32.mrf.mxu0
        %v1360 = vadd.f32 0.0, %v1359
        %v1361 = vpop.f32.mrf.mxu0
        %v1362 = vpop.f32.mrf.mxu0
        %v1363 = vpop.f32.mrf.mxu0
        %1364 = vdwg.mxu0
        %1368 = vrot.lane.b32.xlu0 %v1352, 12
        %v1369 = vpop.permute.xlu0 %1368
        %1370 = vrot.lane.b32.xlu0 %v1355, 12
        %v1371 = vpop.permute.xlu0 %1370
        %1372 = vrot.lane.b32.xlu0 %v1360, 12
        %v1373 = vpop.permute.xlu0 %1372
        %vm1377 = vcmask 130144
        %1378 = vst.msk [vmem:[#allocation2] sm:$0xff] %vm1377, %v1369
        %1379 = vst.msk [vmem:[#allocation2 + $0x8] sm:$0xff] %vm1377, %v1371
        %1380 = vst.msk [vmem:[#allocation2 + $0x10] sm:$0xff] %vm1377, %v1373
        %1381 = vrot.lane.b32.xlu0 %v655, 112
        %v1382 = vpop.permute.xlu0 %1381
        %1383 = vrot.lane.b32.xlu0 %v656, 112
        %v1384 = vpop.permute.xlu0 %1383
        %1385 = vrot.lane.b32.xlu0 %v655, 80
        %v1386 = vpop.permute.xlu0 %1385
        %1387 = vrot.lane.b32.xlu0 %v656, 80
        %v1388 = vpop.permute.xlu0 %1387
        %v1390 = vsel %vm663, %v1382, 0
        %v1393 = vsel %vm663, %v1384, 0
        %v1396 = vsel %vm663, %v1386, 0
        %v1399 = vsel %vm663, %v1388, 0
        %1401 = vmatprep.subr.bf16.mxu0 0
        %1402 = vmatpush1.bf16.xpose.msra.mxu0 0
        %1403 = vmatprep.subr.bf16.mxu0 0
        %1404 = vmatpush1.bf16.xpose.msra.mxu0 0
        %1405 = vmatprep.subr.bf16.mxu0 0
        %1406 = vmatpush1.bf16.xpose.msra.mxu0 0
        %1407 = vmatprep.subr.bf16.mxu0 0
        %1408 = vmatpush1.bf16.xpose.msra.mxu0 0
        %1409 = vmatprep.subr.bf16.mxu0 0
        %1410 = vmatpush1.bf16.xpose.msra.mxu0 0
        %1411 = vmatprep.subr.bf16.mxu0 0
        %1412 = vmatpush1.bf16.xpose.msra.mxu0 0
        %1413 = vmatprep.subr.bf16.mxu0 0
        %1414 = vmatpush1.bf16.xpose.msra.mxu0 %v1399
        %1415 = vmatprep.subr.bf16.mxu0 0
        %1416 = vmatpush1.bf16.xpose.msra.mxu0 %v1396
        %1417 = vmatprep.subr.bf16.mxu0 0
        %1418 = vmatpush2.bf16.xpose.msra.mxu0 0
        %1419 = vmatprep.subr.bf16.mxu0 0
        %1420 = vmatpush2.bf16.xpose.msra.mxu0 0
        %1421 = vmatprep.subr.bf16.mxu0 0
        %1422 = vmatpush2.bf16.xpose.msra.mxu0 0
        %1423 = vmatprep.subr.bf16.mxu0 0
        %1424 = vmatpush2.bf16.xpose.msra.mxu0 0
        %1425 = vmatprep.subr.bf16.mxu0 0
        %1426 = vmatpush2.bf16.xpose.msra.mxu0 0
        %1427 = vmatprep.subr.bf16.mxu0 0
        %1428 = vmatpush2.bf16.xpose.msra.mxu0 0
        %1429 = vmatprep.subr.bf16.mxu0 0
        %1430 = vmatpush2.bf16.xpose.msra.mxu0 0
        %1431 = vmatprep.subr.bf16.mxu0 0
        %1432 = vmatpush2.bf16.xpose.msra.mxu0 0
        %1433 = vmatprep.mubr.bf16.mxu0 0
        %1434 = vmatmul.mubr.bf16.gmra.mxu0 %v1390
        %v1435 = vpop.f32.mrf.mxu0
        %v1436 = vadd.f32 0.0, %v1435
        %v1437 = vpop.f32.mrf.mxu0
        %v1438 = vpop.f32.mrf.mxu0
        %v1439 = vadd.f32 0.0, %v1438
        %v1440 = vpop.f32.mrf.mxu0
        %1441 = vmatprep.mubr.bf16.mxu0 0
        %1442 = vmatmul.mubr.bf16.gmra.mxu0 %v1393
        %v1443 = vpop.f32.mrf.mxu0
        %v1444 = vadd.f32 0.0, %v1443
        %v1445 = vpop.f32.mrf.mxu0
        %v1446 = vpop.f32.mrf.mxu0
        %v1447 = vpop.f32.mrf.mxu0
        %1448 = vdwg.mxu0
        %v1449 = vmul.f32 %v1436, 0.5
        %v1450 = vmul.f32 %v1439, 0.5
        %v1451 = vmul.f32 %v1444, 0.5
        %v1452 = vsel %vm727, %v1449, -inf
        %1453 = vmax.xlane.f32.xlu0 %v1452
        %v1454 = vpop.xlane.xlu0 %1453
        %v1455 = vsel %vm727, %v1450, -inf
        %1456 = vmax.xlane.f32.xlu0 %v1455
        %v1457 = vpop.xlane.xlu0 %1456
        %v1458 = vsel %vm727, %v1451, -inf
        %1459 = vmax.xlane.f32.xlu0 %v1458
        %v1460 = vpop.xlane.xlu0 %1459
        %v1461 = vsub.f32 %v1449, %v1454
        %v1462 = vsub.f32 %v1450, %v1457
        %v1463 = vsub.f32 %v1451, %v1460
        %v1464 = vmul.f32 %v1461, 1.442695
        %v1465 = vpow.pop %v1464
        %v1466 = vmul.f32 %v1462, 1.442695
        %v1467 = vpow.pop %v1466
        %v1468 = vmul.f32 %v1463, 1.442695
        %v1469 = vpow.pop %v1468
        %v1470 = vsel %vm727, %v1465, 0.0
        %1471 = vadd.xlane.f32.xlu0 %v1470
        %v1472 = vpop.xlane.xlu0 %1471
        %v1473 = vsel %vm727, %v1467, 0.0
        %1474 = vadd.xlane.f32.xlu0 %v1473
        %v1475 = vpop.xlane.xlu0 %1474
        %v1476 = vsel %vm727, %v1469, 0.0
        %1477 = vadd.xlane.f32.xlu0 %v1476
        %v1478 = vpop.xlane.xlu0 %1477
        %v1479 = vrcp.pop %v1472
        %v1480 = vmul.f32 %v1465, %v1479
        %v1481 = vrcp.pop %v1475
        %v1482 = vmul.f32 %v1467, %v1481
        %v1483 = vrcp.pop %v1478
        %v1484 = vmul.f32 %v1469, %v1483
        %v1485 = vpack.c.bf16 %v1482, %v1480
        %v1486 = vpack.c.bf16 %v1484, %v1484
        %1487 = vrot.lane.b32.xlu0 %v655, 48
        %v1488 = vpop.permute.xlu0 %1487
        %1489 = vrot.lane.b32.xlu0 %v656, 48
        %v1490 = vpop.permute.xlu0 %1489
        %v1493 = vsel %vm727, %v1485, 0
        %v1496 = vsel %vm727, %v1486, 0
        %v1499 = vsel %vm774, %v1490, 0
        %1501 = vmatprep.subr.bf16.mxu0 0
        %1502 = vmatpush1.bf16.msra.mxu0 0
        %1503 = vmatprep.subr.bf16.mxu0 0
        %1504 = vmatpush1.bf16.msra.mxu0 0
        %1505 = vmatprep.subr.bf16.mxu0 0
        %1506 = vmatpush1.bf16.msra.mxu0 0
        %1507 = vmatprep.subr.bf16.mxu0 0
        %1508 = vmatpush1.bf16.msra.mxu0 0
        %1509 = vmatprep.subr.bf16.mxu0 0
        %1510 = vmatpush1.bf16.msra.mxu0 0
        %1511 = vmatprep.subr.bf16.mxu0 0
        %1512 = vmatpush1.bf16.msra.mxu0 0
        %1513 = vmatprep.subr.bf16.mxu0 0
        %1514 = vmatpush1.bf16.msra.mxu0 %v1499
        %1515 = vmatprep.subr.bf16.mxu0 0
        %1516 = vmatpush1.bf16.msra.mxu0 %v1488
        %1517 = vmatprep.subr.bf16.mxu0 0
        %1518 = vmatpush2.bf16.msra.mxu0 0
        %1519 = vmatprep.subr.bf16.mxu0 0
        %1520 = vmatpush2.bf16.msra.mxu0 0
        %1521 = vmatprep.subr.bf16.mxu0 0
        %1522 = vmatpush2.bf16.msra.mxu0 0
        %1523 = vmatprep.subr.bf16.mxu0 0
        %1524 = vmatpush2.bf16.msra.mxu0 0
        %1525 = vmatprep.subr.bf16.mxu0 0
        %1526 = vmatpush2.bf16.msra.mxu0 0
        %1527 = vmatprep.subr.bf16.mxu0 0
        %1528 = vmatpush2.bf16.msra.mxu0 0
        %1529 = vmatprep.subr.bf16.mxu0 0
        %1530 = vmatpush2.bf16.msra.mxu0 0
        %1531 = vmatprep.subr.bf16.mxu0 0
        %1532 = vmatpush2.bf16.msra.mxu0 0
        %1533 = vmatprep.mubr.bf16.mxu0 0
        %1534 = vmatmul.mubr.bf16.gmra.mxu0 %v1493
        %v1535 = vpop.f32.mrf.mxu0
        %v1536 = vadd.f32 0.0, %v1535
        %v1537 = vpop.f32.mrf.mxu0
        %v1538 = vpop.f32.mrf.mxu0
        %v1539 = vadd.f32 0.0, %v1538
        %v1540 = vpop.f32.mrf.mxu0
        %1541 = vmatprep.mubr.bf16.mxu0 0
        %1542 = vmatmul.mubr.bf16.gmra.mxu0 %v1496
        %v1543 = vpop.f32.mrf.mxu0
        %v1544 = vadd.f32 0.0, %v1543
        %v1545 = vpop.f32.mrf.mxu0
        %v1546 = vpop.f32.mrf.mxu0
        %v1547 = vpop.f32.mrf.mxu0
        %1548 = vdwg.mxu0
        %1552 = vrot.lane.b32.xlu0 %v1536, 16
        %v1553 = vpop.permute.xlu0 %1552
        %1554 = vrot.lane.b32.xlu0 %v1539, 16
        %v1555 = vpop.permute.xlu0 %1554
        %1556 = vrot.lane.b32.xlu0 %v1544, 16
        %v1557 = vpop.permute.xlu0 %1556
        %vm1561 = vcmask 162944
        %1562 = vst.msk [vmem:[#allocation2] sm:$0xff] %vm1561, %v1553
        %1563 = vst.msk [vmem:[#allocation2 + $0x8] sm:$0xff] %vm1561, %v1555
        %1564 = vst.msk [vmem:[#allocation2 + $0x10] sm:$0xff] %vm1561, %v1557
        %1565 = vrot.lane.b32.xlu0 %v655, 108
        %v1566 = vpop.permute.xlu0 %1565
        %1567 = vrot.lane.b32.xlu0 %v656, 108
        %v1568 = vpop.permute.xlu0 %1567
        %1569 = vrot.lane.b32.xlu0 %v655, 76
        %v1570 = vpop.permute.xlu0 %1569
        %1571 = vrot.lane.b32.xlu0 %v656, 76
        %v1572 = vpop.permute.xlu0 %1571
        %v1574 = vsel %vm663, %v1566, 0
        %v1577 = vsel %vm663, %v1568, 0
        %v1580 = vsel %vm663, %v1570, 0
        %v1583 = vsel %vm663, %v1572, 0
        %1585 = vmatprep.subr.bf16.mxu0 0
        %1586 = vmatpush1.bf16.xpose.msra.mxu0 0
        %1587 = vmatprep.subr.bf16.mxu0 0
        %1588 = vmatpush1.bf16.xpose.msra.mxu0 0
        %1589 = vmatprep.subr.bf16.mxu0 0
        %1590 = vmatpush1.bf16.xpose.msra.mxu0 0
        %1591 = vmatprep.subr.bf16.mxu0 0
        %1592 = vmatpush1.bf16.xpose.msra.mxu0 0
        %1593 = vmatprep.subr.bf16.mxu0 0
        %1594 = vmatpush1.bf16.xpose.msra.mxu0 0
        %1595 = vmatprep.subr.bf16.mxu0 0
        %1596 = vmatpush1.bf16.xpose.msra.mxu0 0
        %1597 = vmatprep.subr.bf16.mxu0 0
        %1598 = vmatpush1.bf16.xpose.msra.mxu0 %v1583
        %1599 = vmatprep.subr.bf16.mxu0 0
        %1600 = vmatpush1.bf16.xpose.msra.mxu0 %v1580
        %1601 = vmatprep.subr.bf16.mxu0 0
        %1602 = vmatpush2.bf16.xpose.msra.mxu0 0
        %1603 = vmatprep.subr.bf16.mxu0 0
        %1604 = vmatpush2.bf16.xpose.msra.mxu0 0
        %1605 = vmatprep.subr.bf16.mxu0 0
        %1606 = vmatpush2.bf16.xpose.msra.mxu0 0
        %1607 = vmatprep.subr.bf16.mxu0 0
        %1608 = vmatpush2.bf16.xpose.msra.mxu0 0
        %1609 = vmatprep.subr.bf16.mxu0 0
        %1610 = vmatpush2.bf16.xpose.msra.mxu0 0
        %1611 = vmatprep.subr.bf16.mxu0 0
        %1612 = vmatpush2.bf16.xpose.msra.mxu0 0
        %1613 = vmatprep.subr.bf16.mxu0 0
        %1614 = vmatpush2.bf16.xpose.msra.mxu0 0
        %1615 = vmatprep.subr.bf16.mxu0 0
        %1616 = vmatpush2.bf16.xpose.msra.mxu0 0
        %1617 = vmatprep.mubr.bf16.mxu0 0
        %1618 = vmatmul.mubr.bf16.gmra.mxu0 %v1574
        %v1619 = vpop.f32.mrf.mxu0
        %v1620 = vadd.f32 0.0, %v1619
        %v1621 = vpop.f32.mrf.mxu0
        %v1622 = vpop.f32.mrf.mxu0
        %v1623 = vadd.f32 0.0, %v1622
        %v1624 = vpop.f32.mrf.mxu0
        %1625 = vmatprep.mubr.bf16.mxu0 0
        %1626 = vmatmul.mubr.bf16.gmra.mxu0 %v1577
        %v1627 = vpop.f32.mrf.mxu0
        %v1628 = vadd.f32 0.0, %v1627
        %v1629 = vpop.f32.mrf.mxu0
        %v1630 = vpop.f32.mrf.mxu0
        %v1631 = vpop.f32.mrf.mxu0
        %1632 = vdwg.mxu0
        %v1633 = vmul.f32 %v1620, 0.5
        %v1634 = vmul.f32 %v1623, 0.5
        %v1635 = vmul.f32 %v1628, 0.5
        %v1636 = vsel %vm727, %v1633, -inf
        %1637 = vmax.xlane.f32.xlu0 %v1636
        %v1638 = vpop.xlane.xlu0 %1637
        %v1639 = vsel %vm727, %v1634, -inf
        %1640 = vmax.xlane.f32.xlu0 %v1639
        %v1641 = vpop.xlane.xlu0 %1640
        %v1642 = vsel %vm727, %v1635, -inf
        %1643 = vmax.xlane.f32.xlu0 %v1642
        %v1644 = vpop.xlane.xlu0 %1643
        %v1645 = vsub.f32 %v1633, %v1638
        %v1646 = vsub.f32 %v1634, %v1641
        %v1647 = vsub.f32 %v1635, %v1644
        %v1648 = vmul.f32 %v1645, 1.442695
        %v1649 = vpow.pop %v1648
        %v1650 = vmul.f32 %v1646, 1.442695
        %v1651 = vpow.pop %v1650
        %v1652 = vmul.f32 %v1647, 1.442695
        %v1653 = vpow.pop %v1652
        %v1654 = vsel %vm727, %v1649, 0.0
        %1655 = vadd.xlane.f32.xlu0 %v1654
        %v1656 = vpop.xlane.xlu0 %1655
        %v1657 = vsel %vm727, %v1651, 0.0
        %1658 = vadd.xlane.f32.xlu0 %v1657
        %v1659 = vpop.xlane.xlu0 %1658
        %v1660 = vsel %vm727, %v1653, 0.0
        %1661 = vadd.xlane.f32.xlu0 %v1660
        %v1662 = vpop.xlane.xlu0 %1661
        %v1663 = vrcp.pop %v1656
        %v1664 = vmul.f32 %v1649, %v1663
        %v1665 = vrcp.pop %v1659
        %v1666 = vmul.f32 %v1651, %v1665
        %v1667 = vrcp.pop %v1662
        %v1668 = vmul.f32 %v1653, %v1667
        %v1669 = vpack.c.bf16 %v1666, %v1664
        %v1670 = vpack.c.bf16 %v1668, %v1668
        %1671 = vrot.lane.b32.xlu0 %v655, 44
        %v1672 = vpop.permute.xlu0 %1671
        %1673 = vrot.lane.b32.xlu0 %v656, 44
        %v1674 = vpop.permute.xlu0 %1673
        %v1677 = vsel %vm727, %v1669, 0
        %v1680 = vsel %vm727, %v1670, 0
        %v1683 = vsel %vm774, %v1674, 0
        %1685 = vmatprep.subr.bf16.mxu0 0
        %1686 = vmatpush1.bf16.msra.mxu0 0
        %1687 = vmatprep.subr.bf16.mxu0 0
        %1688 = vmatpush1.bf16.msra.mxu0 0
        %1689 = vmatprep.subr.bf16.mxu0 0
        %1690 = vmatpush1.bf16.msra.mxu0 0
        %1691 = vmatprep.subr.bf16.mxu0 0
        %1692 = vmatpush1.bf16.msra.mxu0 0
        %1693 = vmatprep.subr.bf16.mxu0 0
        %1694 = vmatpush1.bf16.msra.mxu0 0
        %1695 = vmatprep.subr.bf16.mxu0 0
        %1696 = vmatpush1.bf16.msra.mxu0 0
        %1697 = vmatprep.subr.bf16.mxu0 0
        %1698 = vmatpush1.bf16.msra.mxu0 %v1683
        %1699 = vmatprep.subr.bf16.mxu0 0
        %1700 = vmatpush1.bf16.msra.mxu0 %v1672
        %1701 = vmatprep.subr.bf16.mxu0 0
        %1702 = vmatpush2.bf16.msra.mxu0 0
        %1703 = vmatprep.subr.bf16.mxu0 0
        %1704 = vmatpush2.bf16.msra.mxu0 0
        %1705 = vmatprep.subr.bf16.mxu0 0
        %1706 = vmatpush2.bf16.msra.mxu0 0
        %1707 = vmatprep.subr.bf16.mxu0 0
        %1708 = vmatpush2.bf16.msra.mxu0 0
        %1709 = vmatprep.subr.bf16.mxu0 0
        %1710 = vmatpush2.bf16.msra.mxu0 0
        %1711 = vmatprep.subr.bf16.mxu0 0
        %1712 = vmatpush2.bf16.msra.mxu0 0
        %1713 = vmatprep.subr.bf16.mxu0 0
        %1714 = vmatpush2.bf16.msra.mxu0 0
        %1715 = vmatprep.subr.bf16.mxu0 0
        %1716 = vmatpush2.bf16.msra.mxu0 0
        %1717 = vmatprep.mubr.bf16.mxu0 0
        %1718 = vmatmul.mubr.bf16.gmra.mxu0 %v1677
        %v1719 = vpop.f32.mrf.mxu0
        %v1720 = vadd.f32 0.0, %v1719
        %v1721 = vpop.f32.mrf.mxu0
        %v1722 = vpop.f32.mrf.mxu0
        %v1723 = vadd.f32 0.0, %v1722
        %v1724 = vpop.f32.mrf.mxu0
        %1725 = vmatprep.mubr.bf16.mxu0 0
        %1726 = vmatmul.mubr.bf16.gmra.mxu0 %v1680
        %v1727 = vpop.f32.mrf.mxu0
        %v1728 = vadd.f32 0.0, %v1727
        %v1729 = vpop.f32.mrf.mxu0
        %v1730 = vpop.f32.mrf.mxu0
        %v1731 = vpop.f32.mrf.mxu0
        %1732 = vdwg.mxu0
        %1736 = vrot.lane.b32.xlu0 %v1720, 20
        %v1737 = vpop.permute.xlu0 %1736
        %1738 = vrot.lane.b32.xlu0 %v1723, 20
        %v1739 = vpop.permute.xlu0 %1738
        %1740 = vrot.lane.b32.xlu0 %v1728, 20
        %v1741 = vpop.permute.xlu0 %1740
        %vm1745 = vcmask 195744
        %1746 = vst.msk [vmem:[#allocation2] sm:$0xff] %vm1745, %v1737
        %1747 = vst.msk [vmem:[#allocation2 + $0x8] sm:$0xff] %vm1745, %v1739
        %1748 = vst.msk [vmem:[#allocation2 + $0x10] sm:$0xff] %vm1745, %v1741
        %1749 = vrot.lane.b32.xlu0 %v655, 104
        %v1750 = vpop.permute.xlu0 %1749
        %1751 = vrot.lane.b32.xlu0 %v656, 104
        %v1752 = vpop.permute.xlu0 %1751
        %1753 = vrot.lane.b32.xlu0 %v655, 72
        %v1754 = vpop.permute.xlu0 %1753
        %1755 = vrot.lane.b32.xlu0 %v656, 72
        %v1756 = vpop.permute.xlu0 %1755
        %v1758 = vsel %vm663, %v1750, 0
        %v1761 = vsel %vm663, %v1752, 0
        %v1764 = vsel %vm663, %v1754, 0
        %v1767 = vsel %vm663, %v1756, 0
        %1769 = vmatprep.subr.bf16.mxu0 0
        %1770 = vmatpush1.bf16.xpose.msra.mxu0 0
        %1771 = vmatprep.subr.bf16.mxu0 0
        %1772 = vmatpush1.bf16.xpose.msra.mxu0 0
        %1773 = vmatprep.subr.bf16.mxu0 0
        %1774 = vmatpush1.bf16.xpose.msra.mxu0 0
        %1775 = vmatprep.subr.bf16.mxu0 0
        %1776 = vmatpush1.bf16.xpose.msra.mxu0 0
        %1777 = vmatprep.subr.bf16.mxu0 0
        %1778 = vmatpush1.bf16.xpose.msra.mxu0 0
        %1779 = vmatprep.subr.bf16.mxu0 0
        %1780 = vmatpush1.bf16.xpose.msra.mxu0 0
        %1781 = vmatprep.subr.bf16.mxu0 0
        %1782 = vmatpush1.bf16.xpose.msra.mxu0 %v1767
        %1783 = vmatprep.subr.bf16.mxu0 0
        %1784 = vmatpush1.bf16.xpose.msra.mxu0 %v1764
        %1785 = vmatprep.subr.bf16.mxu0 0
        %1786 = vmatpush2.bf16.xpose.msra.mxu0 0
        %1787 = vmatprep.subr.bf16.mxu0 0
        %1788 = vmatpush2.bf16.xpose.msra.mxu0 0
        %1789 = vmatprep.subr.bf16.mxu0 0
        %1790 = vmatpush2.bf16.xpose.msra.mxu0 0
        %1791 = vmatprep.subr.bf16.mxu0 0
        %1792 = vmatpush2.bf16.xpose.msra.mxu0 0
        %1793 = vmatprep.subr.bf16.mxu0 0
        %1794 = vmatpush2.bf16.xpose.msra.mxu0 0
        %1795 = vmatprep.subr.bf16.mxu0 0
        %1796 = vmatpush2.bf16.xpose.msra.mxu0 0
        %1797 = vmatprep.subr.bf16.mxu0 0
        %1798 = vmatpush2.bf16.xpose.msra.mxu0 0
        %1799 = vmatprep.subr.bf16.mxu0 0
        %1800 = vmatpush2.bf16.xpose.msra.mxu0 0
        %1801 = vmatprep.mubr.bf16.mxu0 0
        %1802 = vmatmul.mubr.bf16.gmra.mxu0 %v1758
        %v1803 = vpop.f32.mrf.mxu0
        %v1804 = vadd.f32 0.0, %v1803
        %v1805 = vpop.f32.mrf.mxu0
        %v1806 = vpop.f32.mrf.mxu0
        %v1807 = vadd.f32 0.0, %v1806
        %v1808 = vpop.f32.mrf.mxu0
        %1809 = vmatprep.mubr.bf16.mxu0 0
        %1810 = vmatmul.mubr.bf16.gmra.mxu0 %v1761
        %v1811 = vpop.f32.mrf.mxu0
        %v1812 = vadd.f32 0.0, %v1811
        %v1813 = vpop.f32.mrf.mxu0
        %v1814 = vpop.f32.mrf.mxu0
        %v1815 = vpop.f32.mrf.mxu0
        %1816 = vdwg.mxu0
        %v1817 = vmul.f32 %v1804, 0.5
        %v1818 = vmul.f32 %v1807, 0.5
        %v1819 = vmul.f32 %v1812, 0.5
        %v1820 = vsel %vm727, %v1817, -inf
        %1821 = vmax.xlane.f32.xlu0 %v1820
        %v1822 = vpop.xlane.xlu0 %1821
        %v1823 = vsel %vm727, %v1818, -inf
        %1824 = vmax.xlane.f32.xlu0 %v1823
        %v1825 = vpop.xlane.xlu0 %1824
        %v1826 = vsel %vm727, %v1819, -inf
        %1827 = vmax.xlane.f32.xlu0 %v1826
        %v1828 = vpop.xlane.xlu0 %1827
        %v1829 = vsub.f32 %v1817, %v1822
        %v1830 = vsub.f32 %v1818, %v1825
        %v1831 = vsub.f32 %v1819, %v1828
        %v1832 = vmul.f32 %v1829, 1.442695
        %v1833 = vpow.pop %v1832
        %v1834 = vmul.f32 %v1830, 1.442695
        %v1835 = vpow.pop %v1834
        %v1836 = vmul.f32 %v1831, 1.442695
        %v1837 = vpow.pop %v1836
        %v1838 = vsel %vm727, %v1833, 0.0
        %1839 = vadd.xlane.f32.xlu0 %v1838
        %v1840 = vpop.xlane.xlu0 %1839
        %v1841 = vsel %vm727, %v1835, 0.0
        %1842 = vadd.xlane.f32.xlu0 %v1841
        %v1843 = vpop.xlane.xlu0 %1842
        %v1844 = vsel %vm727, %v1837, 0.0
        %1845 = vadd.xlane.f32.xlu0 %v1844
        %v1846 = vpop.xlane.xlu0 %1845
        %v1847 = vrcp.pop %v1840
        %v1848 = vmul.f32 %v1833, %v1847
        %v1849 = vrcp.pop %v1843
        %v1850 = vmul.f32 %v1835, %v1849
        %v1851 = vrcp.pop %v1846
        %v1852 = vmul.f32 %v1837, %v1851
        %v1853 = vpack.c.bf16 %v1850, %v1848
        %v1854 = vpack.c.bf16 %v1852, %v1852
        %1855 = vrot.lane.b32.xlu0 %v655, 40
        %v1856 = vpop.permute.xlu0 %1855
        %1857 = vrot.lane.b32.xlu0 %v656, 40
        %v1858 = vpop.permute.xlu0 %1857
        %v1861 = vsel %vm727, %v1853, 0
        %v1864 = vsel %vm727, %v1854, 0
        %v1867 = vsel %vm774, %v1858, 0
        %1869 = vmatprep.subr.bf16.mxu0 0
        %1870 = vmatpush1.bf16.msra.mxu0 0
        %1871 = vmatprep.subr.bf16.mxu0 0
        %1872 = vmatpush1.bf16.msra.mxu0 0
        %1873 = vmatprep.subr.bf16.mxu0 0
        %1874 = vmatpush1.bf16.msra.mxu0 0
        %1875 = vmatprep.subr.bf16.mxu0 0
        %1876 = vmatpush1.bf16.msra.mxu0 0
        %1877 = vmatprep.subr.bf16.mxu0 0
        %1878 = vmatpush1.bf16.msra.mxu0 0
        %1879 = vmatprep.subr.bf16.mxu0 0
        %1880 = vmatpush1.bf16.msra.mxu0 0
        %1881 = vmatprep.subr.bf16.mxu0 0
        %1882 = vmatpush1.bf16.msra.mxu0 %v1867
        %1883 = vmatprep.subr.bf16.mxu0 0
        %1884 = vmatpush1.bf16.msra.mxu0 %v1856
        %1885 = vmatprep.subr.bf16.mxu0 0
        %1886 = vmatpush2.bf16.msra.mxu0 0
        %1887 = vmatprep.subr.bf16.mxu0 0
        %1888 = vmatpush2.bf16.msra.mxu0 0
        %1889 = vmatprep.subr.bf16.mxu0 0
        %1890 = vmatpush2.bf16.msra.mxu0 0
        %1891 = vmatprep.subr.bf16.mxu0 0
        %1892 = vmatpush2.bf16.msra.mxu0 0
        %1893 = vmatprep.subr.bf16.mxu0 0
        %1894 = vmatpush2.bf16.msra.mxu0 0
        %1895 = vmatprep.subr.bf16.mxu0 0
        %1896 = vmatpush2.bf16.msra.mxu0 0
        %1897 = vmatprep.subr.bf16.mxu0 0
        %1898 = vmatpush2.bf16.msra.mxu0 0
        %1899 = vmatprep.subr.bf16.mxu0 0
        %1900 = vmatpush2.bf16.msra.mxu0 0
        %1901 = vmatprep.mubr.bf16.mxu0 0
        %1902 = vmatmul.mubr.bf16.gmra.mxu0 %v1861
        %v1903 = vpop.f32.mrf.mxu0
        %v1904 = vadd.f32 0.0, %v1903
        %v1905 = vpop.f32.mrf.mxu0
        %v1906 = vpop.f32.mrf.mxu0
        %v1907 = vadd.f32 0.0, %v1906
        %v1908 = vpop.f32.mrf.mxu0
        %1909 = vmatprep.mubr.bf16.mxu0 0
        %1910 = vmatmul.mubr.bf16.gmra.mxu0 %v1864
        %v1911 = vpop.f32.mrf.mxu0
        %v1912 = vadd.f32 0.0, %v1911
        %v1913 = vpop.f32.mrf.mxu0
        %v1914 = vpop.f32.mrf.mxu0
        %v1915 = vpop.f32.mrf.mxu0
        %1916 = vdwg.mxu0
        %1920 = vrot.lane.b32.xlu0 %v1904, 24
        %v1921 = vpop.permute.xlu0 %1920
        %1922 = vrot.lane.b32.xlu0 %v1907, 24
        %v1923 = vpop.permute.xlu0 %1922
        %1924 = vrot.lane.b32.xlu0 %v1912, 24
        %v1925 = vpop.permute.xlu0 %1924
        %vm1929 = vcmask 228544
        %1930 = vst.msk [vmem:[#allocation2] sm:$0xff] %vm1929, %v1921
        %1931 = vst.msk [vmem:[#allocation2 + $0x8] sm:$0xff] %vm1929, %v1923
        %1932 = vst.msk [vmem:[#allocation2 + $0x10] sm:$0xff] %vm1929, %v1925
        %1933 = vrot.lane.b32.xlu0 %v655, 100
        %v1934 = vpop.permute.xlu0 %1933
        %1935 = vrot.lane.b32.xlu0 %v656, 100
        %v1936 = vpop.permute.xlu0 %1935
        %1937 = vrot.lane.b32.xlu0 %v655, 68
        %v1938 = vpop.permute.xlu0 %1937
        %1939 = vrot.lane.b32.xlu0 %v656, 68
        %v1940 = vpop.permute.xlu0 %1939
        %v1942 = vsel %vm663, %v1934, 0
        %v1945 = vsel %vm663, %v1936, 0
        %v1948 = vsel %vm663, %v1938, 0
        %v1951 = vsel %vm663, %v1940, 0
        %1953 = vmatprep.subr.bf16.mxu0 0
        %1954 = vmatpush1.bf16.xpose.msra.mxu0 0
        %1955 = vmatprep.subr.bf16.mxu0 0
        %1956 = vmatpush1.bf16.xpose.msra.mxu0 0
        %1957 = vmatprep.subr.bf16.mxu0 0
        %1958 = vmatpush1.bf16.xpose.msra.mxu0 0
        %1959 = vmatprep.subr.bf16.mxu0 0
        %1960 = vmatpush1.bf16.xpose.msra.mxu0 0
        %1961 = vmatprep.subr.bf16.mxu0 0
        %1962 = vmatpush1.bf16.xpose.msra.mxu0 0
        %1963 = vmatprep.subr.bf16.mxu0 0
        %1964 = vmatpush1.bf16.xpose.msra.mxu0 0
        %1965 = vmatprep.subr.bf16.mxu0 0
        %1966 = vmatpush1.bf16.xpose.msra.mxu0 %v1951
        %1967 = vmatprep.subr.bf16.mxu0 0
        %1968 = vmatpush1.bf16.xpose.msra.mxu0 %v1948
        %1969 = vmatprep.subr.bf16.mxu0 0
        %1970 = vmatpush2.bf16.xpose.msra.mxu0 0
        %1971 = vmatprep.subr.bf16.mxu0 0
        %1972 = vmatpush2.bf16.xpose.msra.mxu0 0
        %1973 = vmatprep.subr.bf16.mxu0 0
        %1974 = vmatpush2.bf16.xpose.msra.mxu0 0
        %1975 = vmatprep.subr.bf16.mxu0 0
        %1976 = vmatpush2.bf16.xpose.msra.mxu0 0
        %1977 = vmatprep.subr.bf16.mxu0 0
        %1978 = vmatpush2.bf16.xpose.msra.mxu0 0
        %1979 = vmatprep.subr.bf16.mxu0 0
        %1980 = vmatpush2.bf16.xpose.msra.mxu0 0
        %1981 = vmatprep.subr.bf16.mxu0 0
        %1982 = vmatpush2.bf16.xpose.msra.mxu0 0
        %1983 = vmatprep.subr.bf16.mxu0 0
        %1984 = vmatpush2.bf16.xpose.msra.mxu0 0
        %1985 = vmatprep.mubr.bf16.mxu0 0
        %1986 = vmatmul.mubr.bf16.gmra.mxu0 %v1942
        %v1987 = vpop.f32.mrf.mxu0
        %v1988 = vadd.f32 0.0, %v1987
        %v1989 = vpop.f32.mrf.mxu0
        %v1990 = vpop.f32.mrf.mxu0
        %v1991 = vadd.f32 0.0, %v1990
        %v1992 = vpop.f32.mrf.mxu0
        %1993 = vmatprep.mubr.bf16.mxu0 0
        %1994 = vmatmul.mubr.bf16.gmra.mxu0 %v1945
        %v1995 = vpop.f32.mrf.mxu0
        %v1996 = vadd.f32 0.0, %v1995
        %v1997 = vpop.f32.mrf.mxu0
        %v1998 = vpop.f32.mrf.mxu0
        %v1999 = vpop.f32.mrf.mxu0
        %2000 = vdwg.mxu0
        %v2001 = vmul.f32 %v1988, 0.5
        %v2002 = vmul.f32 %v1991, 0.5
        %v2003 = vmul.f32 %v1996, 0.5
        %v2004 = vsel %vm727, %v2001, -inf
        %2005 = vmax.xlane.f32.xlu0 %v2004
        %v2006 = vpop.xlane.xlu0 %2005
        %v2007 = vsel %vm727, %v2002, -inf
        %2008 = vmax.xlane.f32.xlu0 %v2007
        %v2009 = vpop.xlane.xlu0 %2008
        %v2010 = vsel %vm727, %v2003, -inf
        %2011 = vmax.xlane.f32.xlu0 %v2010
        %v2012 = vpop.xlane.xlu0 %2011
        %v2013 = vsub.f32 %v2001, %v2006
        %v2014 = vsub.f32 %v2002, %v2009
        %v2015 = vsub.f32 %v2003, %v2012
        %v2016 = vmul.f32 %v2013, 1.442695
        %v2017 = vpow.pop %v2016
        %v2018 = vmul.f32 %v2014, 1.442695
        %v2019 = vpow.pop %v2018
        %v2020 = vmul.f32 %v2015, 1.442695
        %v2021 = vpow.pop %v2020
        %v2022 = vsel %vm727, %v2017, 0.0
        %2023 = vadd.xlane.f32.xlu0 %v2022
        %v2024 = vpop.xlane.xlu0 %2023
        %v2025 = vsel %vm727, %v2019, 0.0
        %2026 = vadd.xlane.f32.xlu0 %v2025
        %v2027 = vpop.xlane.xlu0 %2026
        %v2028 = vsel %vm727, %v2021, 0.0
        %2029 = vadd.xlane.f32.xlu0 %v2028
        %v2030 = vpop.xlane.xlu0 %2029
        %v2031 = vrcp.pop %v2024
        %v2032 = vmul.f32 %v2017, %v2031
        %v2033 = vrcp.pop %v2027
        %v2034 = vmul.f32 %v2019, %v2033
        %v2035 = vrcp.pop %v2030
        %v2036 = vmul.f32 %v2021, %v2035
        %v2037 = vpack.c.bf16 %v2034, %v2032
        %v2038 = vpack.c.bf16 %v2036, %v2036
        %2039 = vrot.lane.b32.xlu0 %v655, 36
        %v2040 = vpop.permute.xlu0 %2039
        %2041 = vrot.lane.b32.xlu0 %v656, 36
        %v2042 = vpop.permute.xlu0 %2041
        %v2045 = vsel %vm727, %v2037, 0
        %v2048 = vsel %vm727, %v2038, 0
        %v2051 = vsel %vm774, %v2042, 0
        %2053 = vmatprep.subr.bf16.mxu0 0
        %2054 = vmatpush1.bf16.msra.mxu0 0
        %2055 = vmatprep.subr.bf16.mxu0 0
        %2056 = vmatpush1.bf16.msra.mxu0 0
        %2057 = vmatprep.subr.bf16.mxu0 0
        %2058 = vmatpush1.bf16.msra.mxu0 0
        %2059 = vmatprep.subr.bf16.mxu0 0
        %2060 = vmatpush1.bf16.msra.mxu0 0
        %2061 = vmatprep.subr.bf16.mxu0 0
        %2062 = vmatpush1.bf16.msra.mxu0 0
        %2063 = vmatprep.subr.bf16.mxu0 0
        %2064 = vmatpush1.bf16.msra.mxu0 0
        %2065 = vmatprep.subr.bf16.mxu0 0
        %2066 = vmatpush1.bf16.msra.mxu0 %v2051
        %2067 = vmatprep.subr.bf16.mxu0 0
        %2068 = vmatpush1.bf16.msra.mxu0 %v2040
        %2069 = vmatprep.subr.bf16.mxu0 0
        %2070 = vmatpush2.bf16.msra.mxu0 0
        %2071 = vmatprep.subr.bf16.mxu0 0
        %2072 = vmatpush2.bf16.msra.mxu0 0
        %2073 = vmatprep.subr.bf16.mxu0 0
        %2074 = vmatpush2.bf16.msra.mxu0 0
        %2075 = vmatprep.subr.bf16.mxu0 0
        %2076 = vmatpush2.bf16.msra.mxu0 0
        %2077 = vmatprep.subr.bf16.mxu0 0
        %2078 = vmatpush2.bf16.msra.mxu0 0
        %2079 = vmatprep.subr.bf16.mxu0 0
        %2080 = vmatpush2.bf16.msra.mxu0 0
        %2081 = vmatprep.subr.bf16.mxu0 0
        %2082 = vmatpush2.bf16.msra.mxu0 0
        %2083 = vmatprep.subr.bf16.mxu0 0
        %2084 = vmatpush2.bf16.msra.mxu0 0
        %2085 = vmatprep.mubr.bf16.mxu0 0
        %2086 = vmatmul.mubr.bf16.gmra.mxu0 %v2045
        %v2087 = vpop.f32.mrf.mxu0
        %v2088 = vadd.f32 0.0, %v2087
        %v2089 = vpop.f32.mrf.mxu0
        %v2090 = vpop.f32.mrf.mxu0
        %v2091 = vadd.f32 0.0, %v2090
        %v2092 = vpop.f32.mrf.mxu0
        %2093 = vmatprep.mubr.bf16.mxu0 0
        %2094 = vmatmul.mubr.bf16.gmra.mxu0 %v2048
        %v2095 = vpop.f32.mrf.mxu0
        %v2096 = vadd.f32 0.0, %v2095
        %v2097 = vpop.f32.mrf.mxu0
        %v2098 = vpop.f32.mrf.mxu0
        %v2099 = vpop.f32.mrf.mxu0
        %2100 = vdwg.mxu0
        %2104 = vrot.lane.b32.xlu0 %v2088, 28
        %v2105 = vpop.permute.xlu0 %2104
        %2106 = vrot.lane.b32.xlu0 %v2091, 28
        %v2107 = vpop.permute.xlu0 %2106
        %2108 = vrot.lane.b32.xlu0 %v2096, 28
        %v2109 = vpop.permute.xlu0 %2108
        %vm2113 = vcmask 261344
        %2114 = vst.msk [vmem:[#allocation2] sm:$0xff] %vm2113, %v2105
        %2115 = vst.msk [vmem:[#allocation2 + $0x8] sm:$0xff] %vm2113, %v2107
        %2116 = vst.msk [vmem:[#allocation2 + $0x10] sm:$0xff] %vm2113, %v2109
        %v2117 = vld [vmem:[#allocation2] sm:$0xff]
        %v2118 = vld [vmem:[#allocation2 + $0x8] sm:$0xff]
        %v2119 = vld [vmem:[#allocation2 + $0x10] sm:$0xff]
        %v2120 = vpack.c.bf16 %v2118, %v2117
        %v2121 = vpack.c.bf16 %v2119, %v2119
        %v2122 = vld [vmem:[%s6] sm:$0xff]
        %v2123 = vld [vmem:[%s6 + $0x8] sm:$0xff]
        %v2124 = vld [vmem:[%s6 + $0x10] sm:$0xff]
        %v2125 = vld [vmem:[%s6 + $0x18] sm:$0xff]
        %v2126 = vpack.c.bf16 %v2123, %v2122
        %v2127 = vpack.c.bf16 %v2125, %v2124
        %v2128 = vld [vmem:[%s7] sm:$0x1]
        %v2130 = vlaneseq
        %v2131 = vshrl.u32 %v2130, 7
        %v2132 = vsub.s32 0, %v2131
        %v2133 = vrot.slane %v2128, %v2132
        %v2136 = vsel %vm527, %v2120, 0
        %v2139 = vsel %vm527, %v2121, 0
        %2141 = vmatprep.subr.bf16.mxu0 0
        %2142 = vmatpush1.bf16.msra.mxu0 0
        %2143 = vmatprep.subr.bf16.mxu0 0
        %2144 = vmatpush1.bf16.msra.mxu0 0
        %2145 = vmatprep.subr.bf16.mxu0 0
        %2146 = vmatpush1.bf16.msra.mxu0 0
        %2147 = vmatprep.subr.bf16.mxu0 0
        %2148 = vmatpush1.bf16.msra.mxu0 0
        %2149 = vmatprep.subr.bf16.mxu0 0
        %2150 = vmatpush1.bf16.msra.mxu0 0
        %2151 = vmatprep.subr.bf16.mxu0 0
        %2152 = vmatpush1.bf16.msra.mxu0 0
        %2153 = vmatprep.subr.bf16.mxu0 0
        %2154 = vmatpush1.bf16.msra.mxu0 %v2127
        %2155 = vmatprep.subr.bf16.mxu0 0
        %2156 = vmatpush1.bf16.msra.mxu0 %v2126
        %2157 = vmatprep.subr.bf16.mxu0 0
        %2158 = vmatpush2.bf16.msra.mxu0 0
        %2159 = vmatprep.subr.bf16.mxu0 0
        %2160 = vmatpush2.bf16.msra.mxu0 0
        %2161 = vmatprep.subr.bf16.mxu0 0
        %2162 = vmatpush2.bf16.msra.mxu0 0
        %2163 = vmatprep.subr.bf16.mxu0 0
        %2164 = vmatpush2.bf16.msra.mxu0 0
        %2165 = vmatprep.subr.bf16.mxu0 0
        %2166 = vmatpush2.bf16.msra.mxu0 0
        %2167 = vmatprep.subr.bf16.mxu0 0
        %2168 = vmatpush2.bf16.msra.mxu0 0
        %2169 = vmatprep.subr.bf16.mxu0 0
        %2170 = vmatpush2.bf16.msra.mxu0 0
        %2171 = vmatprep.subr.bf16.mxu0 0
        %2172 = vmatpush2.bf16.msra.mxu0 0
        %2173 = vmatprep.mubr.bf16.mxu0 0
        %2174 = vmatmul.mubr.bf16.gmra.mxu0 %v2136
        %v2175 = vpop.f32.mrf.mxu0
        %v2176 = vadd.f32 %v2133, %v2175
        %v2177 = vpop.f32.mrf.mxu0
        %v2178 = vpop.f32.mrf.mxu0
        %v2179 = vadd.f32 %v2133, %v2178
        %v2180 = vpop.f32.mrf.mxu0
        %2181 = vmatprep.mubr.bf16.mxu0 0
        %2182 = vmatmul.mubr.bf16.gmra.mxu0 %v2139
        %v2183 = vpop.f32.mrf.mxu0
        %v2184 = vadd.f32 %v2133, %v2183
        %v2185 = vpop.f32.mrf.mxu0
        %v2186 = vpop.f32.mrf.mxu0
        %v2187 = vpop.f32.mrf.mxu0
        %2188 = vdwg.mxu0
        %v2189 = vadd.f32 %v522, %v2176
        %v2190 = vadd.f32 %v523, %v2179
        %v2191 = vadd.f32 %v524, %v2184
        %v2192 = vld [vmem:[%s8] sm:$0x1]
        %v2193 = vld [vmem:[%s9] sm:$0x1]
        %v2194 = vsel %vm527, %v2189, 0.0
        %2195 = vadd.xlane.f32.xlu0 %v2194
        %v2196 = vpop.xlane.xlu0 %2195
        %v2197 = vsel %vm527, %v2190, 0.0
        %2198 = vadd.xlane.f32.xlu0 %v2197
        %v2199 = vpop.xlane.xlu0 %2198
        %v2200 = vsel %vm527, %v2191, 0.0
        %2201 = vadd.xlane.f32.xlu0 %v2200
        %v2202 = vpop.xlane.xlu0 %2201
        %v2203 = vmul.f32 %v2196, %v537
        %v2204 = vmul.f32 %v2199, %v537
        %v2205 = vmul.f32 %v2202, %v537
        %v2206 = vsub.f32 %v2189, %v2203
        %v2207 = vsub.f32 %v2190, %v2204
        %v2208 = vsub.f32 %v2191, %v2205
        %v2209 = vmul.f32 %v2206, %v2206
        %v2210 = vmul.f32 %v2207, %v2207
        %v2211 = vmul.f32 %v2208, %v2208
        %v2212 = vsel %vm527, %v2209, 0.0
        %2213 = vadd.xlane.f32.xlu0 %v2212
        %v2214 = vpop.xlane.xlu0 %2213
        %v2215 = vsel %vm527, %v2210, 0.0
        %2216 = vadd.xlane.f32.xlu0 %v2215
        %v2217 = vpop.xlane.xlu0 %2216
        %v2218 = vsel %vm527, %v2211, 0.0
        %2219 = vadd.xlane.f32.xlu0 %v2218
        %v2220 = vpop.xlane.xlu0 %2219
        %v2221 = vmul.f32 %v2214, %v537
        %v2222 = vmul.f32 %v2217, %v537
        %v2223 = vmul.f32 %v2220, %v537
        %v2224 = vadd.f32 %v2221, 1e-06
        %v2225 = vadd.f32 %v2222, 1e-06
        %v2226 = vadd.f32 %v2223, 1e-06
        %v2227 = vrsqrt.pop %v2224
        %v2228 = vrsqrt.pop %v2225
        %v2229 = vrsqrt.pop %v2226
        %v2230 = vmul.f32 %v2206, %v2227
        %v2231 = vmul.f32 %v2207, %v2228
        %v2232 = vmul.f32 %v2208, %v2229
        %v2234 = vlaneseq
        %v2235 = vshrl.u32 %v2234, 7
        %v2236 = vsub.s32 0, %v2235
        %v2237 = vrot.slane %v2192, %v2236
        %v2239 = vmul.f32 %v2230, %v2237
        %v2240 = vmul.f32 %v2231, %v2237
        %v2241 = vmul.f32 %v2232, %v2237
        %v2243 = vlaneseq
        %v2244 = vshrl.u32 %v2243, 7
        %v2245 = vsub.s32 0, %v2244
        %v2246 = vrot.slane %v2193, %v2245
        %v2248 = vadd.f32 %v2239, %v2246
        %v2249 = vadd.f32 %v2240, %v2246
        %v2250 = vadd.f32 %v2241, %v2246
        %v2251 = vpack.c.bf16 %v2249, %v2248
        %v2252 = vpack.c.bf16 %v2250, %v2250
        %v2253 = vld [vmem:[%s10] sm:$0xff]
        %v2254 = vld [vmem:[%s10 + $0x8] sm:$0xff]
        %v2255 = vld [vmem:[%s10 + $0x10] sm:$0xff]
        %v2256 = vld [vmem:[%s10 + $0x18] sm:$0xff]
        %v2257 = vpack.c.bf16 %v2254, %v2253
        %v2258 = vpack.c.bf16 %v2256, %v2255
        %v2259 = vld [vmem:[%s11] sm:$0x1]
        %v2261 = vlaneseq
        %v2262 = vshrl.u32 %v2261, 7
        %v2263 = vsub.s32 0, %v2262
        %v2264 = vrot.slane %v2259, %v2263
        %v2267 = vsel %vm527, %v2251, 0
        %v2270 = vsel %vm527, %v2252, 0
        %2272 = vmatprep.subr.bf16.mxu0 0
        %2273 = vmatpush1.bf16.msra.mxu0 0
        %2274 = vmatprep.subr.bf16.mxu0 0
        %2275 = vmatpush1.bf16.msra.mxu0 0
        %2276 = vmatprep.subr.bf16.mxu0 0
        %2277 = vmatpush1.bf16.msra.mxu0 0
        %2278 = vmatprep.subr.bf16.mxu0 0
        %2279 = vmatpush1.bf16.msra.mxu0 0
        %2280 = vmatprep.subr.bf16.mxu0 0
        %2281 = vmatpush1.bf16.msra.mxu0 0
        %2282 = vmatprep.subr.bf16.mxu0 0
        %2283 = vmatpush1.bf16.msra.mxu0 0
        %2284 = vmatprep.subr.bf16.mxu0 0
        %2285 = vmatpush1.bf16.msra.mxu0 %v2258
        %2286 = vmatprep.subr.bf16.mxu0 0
        %2287 = vmatpush1.bf16.msra.mxu0 %v2257
        %2288 = vmatprep.subr.bf16.mxu0 0
        %2289 = vmatpush2.bf16.msra.mxu0 0
        %2290 = vmatprep.subr.bf16.mxu0 0
        %2291 = vmatpush2.bf16.msra.mxu0 0
        %2292 = vmatprep.subr.bf16.mxu0 0
        %2293 = vmatpush2.bf16.msra.mxu0 0
        %2294 = vmatprep.subr.bf16.mxu0 0
        %2295 = vmatpush2.bf16.msra.mxu0 0
        %2296 = vmatprep.subr.bf16.mxu0 0
        %2297 = vmatpush2.bf16.msra.mxu0 0
        %2298 = vmatprep.subr.bf16.mxu0 0
        %2299 = vmatpush2.bf16.msra.mxu0 0
        %2300 = vmatprep.subr.bf16.mxu0 0
        %2301 = vmatpush2.bf16.msra.mxu0 0
        %2302 = vmatprep.subr.bf16.mxu0 0
        %2303 = vmatpush2.bf16.msra.mxu0 0
        %2304 = vmatprep.mubr.bf16.mxu0 0
        %2305 = vmatmul.mubr.bf16.gmra.mxu0 %v2267
        %v2306 = vpop.f32.mrf.mxu0
        %v2307 = vadd.f32 %v2264, %v2306
        %v2308 = vpop.f32.mrf.mxu0
        %v2309 = vpop.f32.mrf.mxu0
        %v2310 = vadd.f32 %v2264, %v2309
        %v2311 = vpop.f32.mrf.mxu0
        %2312 = vmatprep.mubr.bf16.mxu0 0
        %2313 = vmatmul.mubr.bf16.gmra.mxu0 %v2270
        %v2314 = vpop.f32.mrf.mxu0
        %v2315 = vadd.f32 %v2264, %v2314
        %v2316 = vpop.f32.mrf.mxu0
        %v2317 = vpop.f32.mrf.mxu0
        %v2318 = vpop.f32.mrf.mxu0
        %2319 = vdwg.mxu0
        %v2320 = vmul.f32 %v2307, 0.5
        %v2321 = vmul.f32 %v2310, 0.5
        %v2322 = vmul.f32 %v2315, 0.5
        %v2323 = vmul.f32 %v2307, 0.044715
        %v2324 = vmul.f32 %v2310, 0.044715
        %v2325 = vmul.f32 %v2315, 0.044715
        %v2326 = vmul.f32 %v2323, %v2307
        %v2327 = vmul.f32 %v2324, %v2310
        %v2328 = vmul.f32 %v2325, %v2315
        %v2329 = vmul.f32 %v2326, %v2307
        %v2330 = vmul.f32 %v2327, %v2310
        %v2331 = vmul.f32 %v2328, %v2315
        %v2332 = vadd.f32 %v2307, %v2329
        %v2333 = vadd.f32 %v2310, %v2330
        %v2334 = vadd.f32 %v2315, %v2331
        %v2335 = vmul.f32 %v2332, 0.7978846
        %v2336 = vmul.f32 %v2333, 0.7978846
        %v2337 = vmul.f32 %v2334, 0.7978846
        %v2338 = vtanh.pop %v2335
        %v2339 = vtanh.pop %v2336
        %v2340 = vtanh.pop %v2337
        %v2341 = vadd.f32 %v2338, 1.0
        %v2342 = vadd.f32 %v2339, 1.0
        %v2343 = vadd.f32 %v2340, 1.0
        %v2344 = vmul.f32 %v2320, %v2341
        %v2345 = vmul.f32 %v2321, %v2342
        %v2346 = vmul.f32 %v2322, %v2343
        %v2347 = vpack.c.bf16 %v2345, %v2344
        %v2348 = vpack.c.bf16 %v2346, %v2346
        %v2349 = vld [vmem:[%s12] sm:$0xff]
        %v2350 = vld [vmem:[%s12 + $0x8] sm:$0xff]
        %v2351 = vld [vmem:[%s12 + $0x10] sm:$0xff]
        %v2352 = vld [vmem:[%s12 + $0x18] sm:$0xff]
        %v2353 = vld [vmem:[%s12 + $0x20] sm:$0xff]
        %v2354 = vld [vmem:[%s12 + $0x28] sm:$0xff]
        %v2355 = vld [vmem:[%s12 + $0x30] sm:$0xff]
        %v2356 = vld [vmem:[%s12 + $0x38] sm:$0xff]
        %v2357 = vld [vmem:[%s12 + $0x40] sm:$0xff]
        %v2358 = vld [vmem:[%s12 + $0x48] sm:$0xff]
        %v2359 = vld [vmem:[%s12 + $0x50] sm:$0xff]
        %v2360 = vld [vmem:[%s12 + $0x58] sm:$0xff]
        %v2361 = vld [vmem:[%s12 + $0x60] sm:$0xff]
        %v2362 = vld [vmem:[%s12 + $0x68] sm:$0xff]
        %v2363 = vld [vmem:[%s12 + $0x70] sm:$0xff]
        %v2364 = vld [vmem:[%s12 + $0x78] sm:$0xff]
        %v2365 = vpack.c.bf16 %v2350, %v2349
        %v2366 = vpack.c.bf16 %v2352, %v2351
        %v2367 = vpack.c.bf16 %v2354, %v2353
        %v2368 = vpack.c.bf16 %v2356, %v2355
        %v2369 = vpack.c.bf16 %v2358, %v2357
        %v2370 = vpack.c.bf16 %v2360, %v2359
        %v2371 = vpack.c.bf16 %v2362, %v2361
        %v2372 = vpack.c.bf16 %v2364, %v2363
        %v2373 = vld [vmem:[%s13] sm:$0x1]
        %v2375 = vlaneseq
        %v2376 = vshrl.u32 %v2375, 7
        %v2377 = vsub.s32 0, %v2376
        %v2378 = vrot.slane %v2373, %v2377
        %2380 = vmatprep.subr.bf16.mxu0 0
        %2381 = vmatpush1.bf16.msra.mxu0 %v2372
        %2382 = vmatprep.subr.bf16.mxu0 0
        %2383 = vmatpush1.bf16.msra.mxu0 %v2371
        %2384 = vmatprep.subr.bf16.mxu0 0
        %2385 = vmatpush1.bf16.msra.mxu0 %v2370
        %2386 = vmatprep.subr.bf16.mxu0 0
        %2387 = vmatpush1.bf16.msra.mxu0 %v2369
        %2388 = vmatprep.subr.bf16.mxu0 0
        %2389 = vmatpush1.bf16.msra.mxu0 %v2368
        %2390 = vmatprep.subr.bf16.mxu0 0
        %2391 = vmatpush1.bf16.msra.mxu0 %v2367
        %2392 = vmatprep.subr.bf16.mxu0 0
        %2393 = vmatpush1.bf16.msra.mxu0 %v2366
        %2394 = vmatprep.subr.bf16.mxu0 0
        %2395 = vmatpush1.bf16.msra.mxu0 %v2365
        %2396 = vmatprep.subr.bf16.mxu0 0
        %2397 = vmatpush2.bf16.msra.mxu0 0
        %2398 = vmatprep.subr.bf16.mxu0 0
        %2399 = vmatpush2.bf16.msra.mxu0 0
        %2400 = vmatprep.subr.bf16.mxu0 0
        %2401 = vmatpush2.bf16.msra.mxu0 0
        %2402 = vmatprep.subr.bf16.mxu0 0
        %2403 = vmatpush2.bf16.msra.mxu0 0
        %2404 = vmatprep.subr.bf16.mxu0 0
        %2405 = vmatpush2.bf16.msra.mxu0 0
        %2406 = vmatprep.subr.bf16.mxu0 0
        %2407 = vmatpush2.bf16.msra.mxu0 0
        %2408 = vmatprep.subr.bf16.mxu0 0
        %2409 = vmatpush2.bf16.msra.mxu0 0
        %2410 = vmatprep.subr.bf16.mxu0 0
        %2411 = vmatpush2.bf16.msra.mxu0 0
        %2412 = vmatprep.mubr.bf16.mxu0 0
        %2413 = vmatmul.mubr.bf16.gmra.mxu0 %v2347
        %v2414 = vpop.f32.mrf.mxu0
        %v2415 = vadd.f32 %v2378, %v2414
        %v2416 = vpop.f32.mrf.mxu0
        %v2417 = vpop.f32.mrf.mxu0
        %v2418 = vadd.f32 %v2378, %v2417
        %v2419 = vpop.f32.mrf.mxu0
        %2420 = vmatprep.mubr.bf16.mxu0 0
        %2421 = vmatmul.mubr.bf16.gmra.mxu0 %v2348
        %v2422 = vpop.f32.mrf.mxu0
        %v2423 = vadd.f32 %v2378, %v2422
        %v2424 = vpop.f32.mrf.mxu0
        %v2425 = vpop.f32.mrf.mxu0
        %v2426 = vpop.f32.mrf.mxu0
        %2427 = vdwg.mxu0
        %v2428 = vadd.f32 %v2189, %v2415
        %v2429 = vadd.f32 %v2190, %v2418
        %v2430 = vadd.f32 %v2191, %v2423
        %2431 = vst.msk [vmem:[%s504] sm:$0xff] %vm527, %v2428
        %2432 = vst.msk [vmem:[%s504 + $0x8] sm:$0xff] %vm527, %v2429
        %2433 = vst.msk [vmem:[%s511] sm:$0xff] %vm527, %v2430
        %s2434 = sand.u32 %s345, 1
        %s2435 = scalar_lea.sflag [#allocation4], %s2434
        %s2436 = sand.u32 %s345, 1
        %s2437 = smul.addr %s2436, 16
        %s2438 = scalar_lea.vmem [#allocation3], %s2437
        %s2439 = sand.u32 %s371, 1
        %s2440 = scalar_lea.sflag [#allocation6], %s2439
        %s2441 = sand.u32 %s371, 1
        %s2442 = smul.addr %s2441, 8
        %s2443 = scalar_lea.vmem [#allocation5], %s2442
        // Predicated region
        $region77: #{tpu_custom_call.1} parent=75 // pred_check
          %p2444 = pneg %p355
        $region78: #{tpu_custom_call.1} parent=75 // pred_check_branch
          %2446 = sbr.rel (%p2444) target = $region80
        $region79: #{tpu_custom_call.1} parent=75 // pred_region
          %s2448 = ssub.s32 256, 256
          %2449 = vsyncadd %s2435, %s2448
          %s2450 = smul.addr %s33, 2
          %s2451 = smul.addr %s2450, 128
          %s2452 = scalar_lea.hbm %s14, %s2451
          %s2453 = sshll.u32 %s2438, 4
          %s2454 = int_to_ptr.vmem [resolvable:$true] %s2453
          %2459 = dma.vmem_to_hbm [thread:$0]  %s2454, 256, %s2452, %s2435, 128, 128, 8
        $region80: #{tpu_custom_call.1} parent=75 // pred_fallthru
          _
        // Predicated region
        $region81: #{tpu_custom_call.1} parent=75 // pred_check
          %p2460 = pneg %p381
        $region82: #{tpu_custom_call.1} parent=75 // pred_check_branch
          %2462 = sbr.rel (%p2460) target = $region84
        $region83: #{tpu_custom_call.1} parent=75 // pred_region
          %s2464 = ssub.s32 128, 128
          %2465 = vsyncadd %s2440, %s2464
          %s2466 = smul.addr %s33, 128
          %s2467 = scalar_lea.hbm %s15, %s2466
          %s2469 = sshll.u32 %s2443, 4
          %s2470 = int_to_ptr.vmem [resolvable:$true] %s2469
          %2472 = dma.vmem_to_hbm [thread:$0]  %s2470, 128, %s2467, %s2440
        $region84: #{tpu_custom_call.1} parent=75 // pred_fallthru
          _
      $region76: #{tpu_custom_call.1} parent=5 // pred_fallthru
        _
      %p2473 = scmp.le.s32.totalorder 2, %s28
      // Predicated region
      $region85: #{tpu_custom_call.1} parent=5 // pred_check
        %p2474 = pneg %p2473
      $region86: #{tpu_custom_call.1} parent=5 // pred_check_branch
        %2476 = sbr.rel (%p2474) target = $region88
      $region87: #{tpu_custom_call.1} parent=5 // pred_region
        %s2477 = ssub.s32 %s28, 2
        // Predicated region
        $region89: #{tpu_custom_call.1} parent=87 // pred_check
          %p2478 = pneg %p361
        $region90: #{tpu_custom_call.1} parent=87 // pred_check_branch
          %2480 = sbr.rel (%p2478) target = $region92
        $region91: #{tpu_custom_call.1} parent=87 // pred_region
          %s2481 = sand.u32 %s346, 1
          %s2482 = scalar_lea.sflag [#allocation4], %s2481
          %s2483 = sand.u32 %s346, 1
          %s2484 = smul.addr %s2483, 16
          %s2485 = scalar_lea.vmem [#allocation3], %s2484
          %2486 = dma.done %s2482, 256
        $region92: #{tpu_custom_call.1} parent=87 // pred_fallthru
          _
        // Predicated region
        $region93: #{tpu_custom_call.1} parent=87 // pred_check
          %p2487 = pneg %p387
        $region94: #{tpu_custom_call.1} parent=87 // pred_check_branch
          %2489 = sbr.rel (%p2487) target = $region96
        $region95: #{tpu_custom_call.1} parent=87 // pred_region
          %s2490 = sand.u32 %s372, 1
          %s2491 = scalar_lea.sflag [#allocation6], %s2490
          %s2492 = sand.u32 %s372, 1
          %s2493 = smul.addr %s2492, 8
          %s2494 = scalar_lea.vmem [#allocation5], %s2493
          %2495 = dma.done %s2491, 128
        $region96: #{tpu_custom_call.1} parent=87 // pred_fallthru
          _
      $region88: #{tpu_custom_call.1} parent=5 // pred_fallthru
        _
    $region6: #{tpu_custom_call.1} parent=1 // loop_footer
      %s32 = sadd.s32 1, %s28
    $region7: #{tpu_custom_call.1} parent=1 // loop_footer_branch
      %27 = sbr.rel target = $region3
    $region8: #{tpu_custom_call.1} parent=1 // loop_exit
      _
    %2496 = vsyncpa [#allocation4], 1
    %s2497 = scalar_lea.sflag [#allocation4], 1
    %2498 = vsyncpa %s2497, 1
    %2499 = vsyncpa [#allocation6], 1
    %s2500 = scalar_lea.sflag [#allocation6], 1
    %2501 = vsyncpa %s2500, 1

</llo_original>
